<compile_context>
chip_gen: v7x
topology: tpu7x:2x2x1
jax: 0.10.0
libtpu: 0.0.40
codegen_flags: <defaults>
</compile_context>

<pallas_src>
import functools
import math

import jax
import jax.numpy as jnp
from jax.experimental import pallas as pl
from jax.experimental.pallas import tpu as pltpu

EXPANSION = 4
BN_EPS = 1e-5
LPAD = 8          # sublane-aligned left padding of the h1 halo scratch


def _round_up(x, m):
    return (x + m - 1) // m * m


# ------------------------------ fused kernel ------------------------------- #

def _bottleneck_kernel(x_ref,
                       w1_ref, s1_ref, b1_ref,
                       w2_ref, s2_ref, b2_ref,
                       w3_ref, s3_ref, b3_ref,
                       *rest,
                       stride, has_proj, H, W, Ho, Wo):
    if has_proj:
        ws_ref, ss_ref, bs_ref, o_ref, h1p_ref, im_ref = rest
    else:
        o_ref, h1p_ref, im_ref = rest

    Cin = x_ref.shape[-1]
    P = w1_ref.shape[1]
    Cout = w3_ref.shape[1]
    Wp = h1p_ref.shape[1]
    cdt = h1p_ref.dtype

    # ---- conv1 (1x1) + bn1 + relu  (MXU matmul, f32 accumulate) ----------- #
    x2d = x_ref[...].reshape(H * W, Cin)                       # compute dtype
    h1 = jnp.dot(x2d, w1_ref[...], preferred_element_type=jnp.float32)
    h1 = jnp.maximum(h1 * s1_ref[...] + b1_ref[...], 0.0)

    # Halo-ring zero only (interior is fully overwritten every step; ring must
    # be re-zeroed because the scratch persists across grid steps / cores).
    h1p_ref[0:1, :, :] = jnp.zeros((1, Wp, P), cdt)                  # top row
    h1p_ref[H + 1:H + 2, :, :] = jnp.zeros((1, Wp, P), cdt)          # bottom
    h1p_ref[:, 0:LPAD, :] = jnp.zeros((H + 2, LPAD, P), cdt)         # left band
    h1p_ref[:, LPAD + W:Wp, :] = jnp.zeros((H + 2, Wp - LPAD - W, P), cdt)

    # Sublane-aligned interior store (column offset LPAD is a multiple of 8).
    h1p_ref[1:H + 1, LPAD:LPAD + W, :] = h1.reshape(H, W, P).astype(cdt)

    # ---- conv2 (3x3, stride, pad=1): VMEM im2col -> one K=9P MXU matmul --- #
    for t in range(9):
        ky, kx = divmod(t, 3)
        c0 = LPAD - 1 + kx                      # left pad lives at column LPAD-1
        if stride == 1:
            patch = h1p_ref[pl.ds(ky, Ho), pl.ds(c0, Wo), :]
        else:
            patch = h1p_ref[pl.ds(ky, Ho, stride=stride),
                            pl.ds(c0, Wo, stride=stride), :]
        im_ref[:, :, t * P:(t + 1) * P] = patch
    h2 = jnp.dot(im_ref[...].reshape(Ho * Wo, 9 * P), w2_ref[...],
                 preferred_element_type=jnp.float32)
    h2 = jnp.maximum(h2 * s2_ref[...] + b2_ref[...], 0.0).astype(cdt)

    # ---- conv3 (1x1) + bn3, shortcut, residual add, relu ------------------ #
    main = jnp.dot(h2, w3_ref[...], preferred_element_type=jnp.float32)
    main = main * s3_ref[...] + b3_ref[...]

    if has_proj:
        if stride == 1:
            xs = x2d
        else:
            xs = x_ref[pl.ds(0, Ho, stride=stride),
                       pl.ds(0, Wo, stride=stride), :].reshape(Ho * Wo, Cin)
        sc = jnp.dot(xs, ws_ref[...], preferred_element_type=jnp.float32)
        sc = sc * ss_ref[...] + bs_ref[...]
    else:
        # identity shortcut (stride == 1, Cin == Cout): plain VPU add.
        sc = x2d.astype(jnp.float32)

    out = jnp.maximum(main + sc, 0.0)
    o_ref[...] = out.reshape(Ho, Wo, Cout).astype(o_ref.dtype)


# ------------------------------ forward pass ------------------------------- #

def bottleneck_forward_nhwc(x_nhwc, params, stride):
    """x_nhwc: (N, H, W, Cin) -> (N, Ho, Wo, 4*planes) in the compute dtype."""
    N, H, W, Cin = x_nhwc.shape
    P = params['w1'].shape[1]
    Cout = params['w3'].shape[1]
    Ho = (H - 1) // stride + 1
    Wo = (W - 1) // stride + 1
    has_proj = 'ws' in params
    cdt = params['w1'].dtype                       # compute dtype (bf16 / f32)

    if not has_proj and (stride != 1 or Cin != Cout):
        raise ValueError(
            "identity shortcut requires stride == 1 and in_planes == "
            f"expansion*planes (got stride={stride}, Cin={Cin}, Cout={Cout})")

    x = x_nhwc.astype(cdt)

    weight_args = [params['w1'], params['s1'], params['b1'],
                   params['w2'], params['s2'], params['b2'],
                   params['w3'], params['s3'], params['b3']]
    if has_proj:
        weight_args += [params['ws'], params['ss'], params['bs']]

    def const_spec(arr):
        nd = arr.ndim
        return pl.BlockSpec(arr.shape, lambda b, nd=nd: (0,) * nd)

    in_specs = [pl.BlockSpec((None, H, W, Cin), lambda b: (b, 0, 0, 0))]
    in_specs += [const_spec(a) for a in weight_args]

    # Padded h1 scratch width: aligned left pad + interior + >=8 right pad.
    Wp = _round_up(W, 8) + 2 * LPAD

    # Explicit VMEM budget: double-buffered x/out blocks, weights counted once
    # (constant index_maps -> never re-fetched), both scratches, in-kernel f32
    # temporaries, plus headroom; capped at 48 MiB (v7x per-core VMEM is 64).
    dtb = jnp.dtype(cdt).itemsize
    w_bytes = sum(int(a.size) * jnp.dtype(a.dtype).itemsize for a in weight_args)
    scratch_bytes = (H + 2) * Wp * P * dtb + Ho * Wo * 9 * P * dtb
    temps = (H * W * Cin * dtb            # x2d copy
             + H * W * P * (4 + dtb)      # h1 f32 + cdt cast
             + Ho * Wo * 9 * P * dtb      # im2col load
             + Ho * Wo * P * (4 + dtb)    # h2 f32 + cdt cast
             + 2 * Ho * Wo * Cout * 4     # main + shortcut f32
             + Ho * Wo * Cout * dtb)      # output cast
    est = (2 * H * W * Cin * dtb          # input block, double-buffered
           + 2 * Ho * Wo * Cout * dtb     # output block, double-buffered
           + w_bytes + scratch_bytes + temps)
    vmem_limit = int(min(max(est + (8 << 20), 32 << 20), 48 << 20))

    kernel = functools.partial(_bottleneck_kernel, stride=stride,
                               has_proj=has_proj, H=H, W=W, Ho=Ho, Wo=Wo)

    return pl.pallas_call(
        kernel,
        out_shape=jax.ShapeDtypeStruct((N, Ho, Wo, Cout), cdt),
        grid=(N,),
        in_specs=in_specs,
        out_specs=pl.BlockSpec((None, Ho, Wo, Cout), lambda b: (b, 0, 0, 0)),
        scratch_shapes=[pltpu.VMEM((H + 2, Wp, P), cdt),        # padded h1
                        pltpu.VMEM((Ho, Wo, 9 * P), cdt)],      # im2col
        compiler_params=pltpu.CompilerParams(
            dimension_semantics=("parallel",),
            vmem_limit_bytes=vmem_limit),
    )(x, *weight_args)


@functools.partial(jax.jit, static_argnums=(2,))
def bottleneck_forward(x_nchw, params, stride):
    """PyTorch-convention entry point: NCHW f32 in, NCHW f32 out."""
    # NCHW -> NHWC so channels land on the TPU lane axis.  The kernel emits the
    # compute dtype (bf16); cast back to f32 here to match the PyTorch module.
    x_nhwc = jnp.transpose(x_nchw, (0, 2, 3, 1))
    out = bottleneck_forward_nhwc(x_nhwc, params, stride)
    return jnp.transpose(out, (0, 3, 1, 2)).astype(jnp.float32)


# --------------------------- parameter construction ------------------------ #

def init_raw_params(key, in_planes, planes, stride):
    """PyTorch-layout weights + BatchNorm stats."""
    out_planes = EXPANSION * planes
    ks = jax.random.split(key, 8)

    def conv_weight(k, out_c, in_c, kh, kw):
        fan_in = in_c * kh * kw
        bound = 1.0 / math.sqrt(fan_in)
        return jax.random.uniform(k, (out_c, in_c, kh, kw), jnp.float32,
                                  -bound, bound)

    def bn_params(k, c):
        k1, k2, k3, k4 = jax.random.split(k, 4)
        return (jax.random.uniform(k1, (c,), jnp.float32, 0.5, 1.5),
                jax.random.uniform(k2, (c,), jnp.float32, -0.5, 0.5),
                jax.random.uniform(k3, (c,), jnp.float32, -0.2, 0.2),
                jax.random.uniform(k4, (c,), jnp.float32, 0.5, 1.5))

    raw = {
        'w1': conv_weight(ks[0], planes, in_planes, 1, 1),
        'bn1': bn_params(ks[1], planes),
        'w2': conv_weight(ks[2], planes, planes, 3, 3),
        'bn2': bn_params(ks[3], planes),
        'w3': conv_weight(ks[4], out_planes, planes, 1, 1),
        'bn3': bn_params(ks[5], out_planes),
    }
    if stride != 1 or in_planes != out_planes:
        raw['ws'] = conv_weight(ks[6], out_planes, in_planes, 1, 1)
        raw['bns'] = bn_params(ks[7], out_planes)
    return raw


def prepare_params(raw, compute_dtype):
    """Fold BN into per-channel scale/bias, reshape conv weights to matmul
    form, cast matmul operands to the compute dtype (done once, offline)."""
    def fold(bn):
        gamma, beta, rmean, rvar = bn
        inv = gamma / jnp.sqrt(rvar + BN_EPS)
        return (inv.reshape(1, -1).astype(jnp.float32),
                (beta - rmean * inv).reshape(1, -1).astype(jnp.float32))

    planes, in_planes = raw['w1'].shape[0], raw['w1'].shape[1]
    out_planes = raw['w3'].shape[0]

    p = {
        # (Cin, P)
        'w1': raw['w1'].reshape(planes, in_planes).T.astype(compute_dtype),
        # (9P, P): K index = (ky*3 + kx)*P + cin, matching the im2col layout
        'w2': jnp.transpose(raw['w2'], (2, 3, 1, 0))
                 .reshape(9 * planes, planes).astype(compute_dtype),
        # (P, 4P)
        'w3': raw['w3'].reshape(out_planes, planes).T.astype(compute_dtype),
    }
    p['s1'], p['b1'] = fold(raw['bn1'])
    p['s2'], p['b2'] = fold(raw['bn2'])
    p['s3'], p['b3'] = fold(raw['bn3'])
    if 'ws' in raw:
        p['ws'] = raw['ws'].reshape(out_planes, in_planes).T.astype(compute_dtype)
        p['ss'], p['bs'] = fold(raw['bns'])
    return p


# ------------------------------ pure-JAX reference ------------------------- #

def reference_forward(x, raw, stride):
    def conv(x, w, s=1, p=0):
        return jax.lax.conv_general_dilated(
            x, w, (s, s), [(p, p), (p, p)],
            dimension_numbers=('NCHW', 'OIHW', 'NCHW'))

    def bn(x, prm):
        gamma, beta, rmean, rvar = prm
        inv = gamma / jnp.sqrt(rvar + BN_EPS)
        return (x * inv[None, :, None, None]
                + (beta - rmean * inv)[None, :, None, None])

    out = jax.nn.relu(bn(conv(x, raw['w1']), raw['bn1']))
    out = jax.nn.relu(bn(conv(out, raw['w2'], s=stride, p=1), raw['bn2']))
    out = bn(conv(out, raw['w3']), raw['bn3'])
    sc = bn(conv(x, raw['ws'], s=stride), raw['bns']) if 'ws' in raw else x
    return jax.nn.relu(out + sc)


# ----------------------------------- test ----------------------------------- #

if __name__ == "__main__":
    key = jax.random.PRNGKey(0)
    N, H, W = 2, 16, 16
    configs = [
        # (in_planes, planes, stride)
        (16, 8, 1),   # projection shortcut (in_planes != 4*planes)
        (32, 8, 1),   # identity shortcut
        (16, 8, 2),   # strided downsampling block with projection shortcut
    ]

    for in_planes, planes, stride in configs:
        key, kx, kp = jax.random.split(key, 3)
        x = jax.random.normal(kx, (N, in_planes, H, W), jnp.float32)
        raw = init_raw_params(kp, in_planes, planes, stride)
        ref = reference_forward(x, raw, stride)
        Ho = (H - 1) // stride + 1

        for cdt, tol in ((jnp.bfloat16, 5e-2), (jnp.float32, 2e-3)):
            params = prepare_params(raw, cdt)
            out = jax.block_until_ready(bottleneck_forward(x, params, stride))
            assert out.shape == (N, EXPANSION * planes, Ho, Ho), out.shape
            if not jnp.allclose(out, ref, atol=tol, rtol=tol):
                err = float(jnp.max(jnp.abs(out - ref)))
                raise AssertionError(
                    f"Pallas bottleneck mismatch: in_planes={in_planes} "
                    f"planes={planes} stride={stride} dtype={cdt.__name__} "
                    f"max_abs_err={err}")

    print("KERNEL_OK")
</pallas_src>

<mosaic_0001>
module attributes {stable_mosaic.version = 11 : i64} {
  func.func @_bottleneck_kernel(%arg0: i32, %arg1: memref<1x16x16x16xbf16, #tpu.memory_space<vmem>>, %arg2: memref<16x8xbf16, #tpu.memory_space<vmem>>, %arg3: memref<1x8xf32, #tpu.memory_space<vmem>>, %arg4: memref<1x8xf32, #tpu.memory_space<vmem>>, %arg5: memref<72x8xbf16, #tpu.memory_space<vmem>>, %arg6: memref<1x8xf32, #tpu.memory_space<vmem>>, %arg7: memref<1x8xf32, #tpu.memory_space<vmem>>, %arg8: memref<8x32xbf16, #tpu.memory_space<vmem>>, %arg9: memref<1x32xf32, #tpu.memory_space<vmem>>, %arg10: memref<1x32xf32, #tpu.memory_space<vmem>>, %arg11: memref<16x32xbf16, #tpu.memory_space<vmem>>, %arg12: memref<1x32xf32, #tpu.memory_space<vmem>>, %arg13: memref<1x32xf32, #tpu.memory_space<vmem>>, %arg14: memref<1x16x16x32xbf16, #tpu.memory_space<vmem>>, %arg15: memref<18x32x8xbf16, #tpu.memory_space<vmem>>, %arg16: memref<16x16x72xbf16, #tpu.memory_space<vmem>>) attributes {dimension_semantics = [#tpu.dimension_semantics<parallel>], iteration_bounds = array<i64: 2>, scalar_prefetch = 0 : i64, scratch_operands = 2 : i64, tpu.core_type = #tpu.core_type<tc>, window_params = [{transform_indices = @transform_0, window_bounds = array<i64: 1, 16, 16, 16>}, {pipeline_mode = #tpu.pipeline_mode<synchronous>, transform_indices = @transform_1, window_bounds = array<i64: 16, 8>}, {pipeline_mode = #tpu.pipeline_mode<synchronous>, transform_indices = @transform_2, window_bounds = array<i64: 1, 8>}, {pipeline_mode = #tpu.pipeline_mode<synchronous>, transform_indices = @transform_3, window_bounds = array<i64: 1, 8>}, {pipeline_mode = #tpu.pipeline_mode<synchronous>, transform_indices = @transform_4, window_bounds = array<i64: 72, 8>}, {pipeline_mode = #tpu.pipeline_mode<synchronous>, transform_indices = @transform_5, window_bounds = array<i64: 1, 8>}, {pipeline_mode = #tpu.pipeline_mode<synchronous>, transform_indices = @transform_6, window_bounds = array<i64: 1, 8>}, {pipeline_mode = #tpu.pipeline_mode<synchronous>, transform_indices = @transform_7, window_bounds = array<i64: 8, 32>}, {pipeline_mode = #tpu.pipeline_mode<synchronous>, transform_indices = @transform_8, window_bounds = array<i64: 1, 32>}, {pipeline_mode = #tpu.pipeline_mode<synchronous>, transform_indices = @transform_9, window_bounds = array<i64: 1, 32>}, {pipeline_mode = #tpu.pipeline_mode<synchronous>, transform_indices = @transform_10, window_bounds = array<i64: 16, 32>}, {pipeline_mode = #tpu.pipeline_mode<synchronous>, transform_indices = @transform_11, window_bounds = array<i64: 1, 32>}, {pipeline_mode = #tpu.pipeline_mode<synchronous>, transform_indices = @transform_12, window_bounds = array<i64: 1, 32>}, {transform_indices = @transform_13, window_bounds = array<i64: 1, 16, 16, 32>}]} {
    %c0 = arith.constant 0 : index
    %c0_0 = arith.constant 0 : index
    %c0_1 = arith.constant 0 : index
    %c0_2 = arith.constant 0 : index
    %0 = vector.load %arg1[%c0, %c0_0, %c0_1, %c0_2] : memref<1x16x16x16xbf16, #tpu.memory_space<vmem>>, vector<1x16x16x16xbf16>
    %1 = vector.shape_cast %0 : vector<1x16x16x16xbf16> to vector<16x16x16xbf16>
    %2 = vector.shape_cast %1 : vector<16x16x16xbf16> to vector<256x16xbf16>
    %c0_3 = arith.constant 0 : index
    %c0_4 = arith.constant 0 : index
    %3 = vector.load %arg2[%c0_3, %c0_4] : memref<16x8xbf16, #tpu.memory_space<vmem>>, vector<16x8xbf16>
    %cst = arith.constant dense<0.000000e+00> : vector<256x8xf32>
    %4 = tpu.matmul %2, %3, %cst {dimension_numbers = #tpu.dot_dimension_numbers<[1], [0], [0], [1], [0, 0, 1, 1], [], []>} : vector<256x16xbf16>, vector<16x8xbf16>, vector<256x8xf32> -> vector<256x8xf32>
    %c0_5 = arith.constant 0 : index
    %c0_6 = arith.constant 0 : index
    %5 = vector.load %arg3[%c0_5, %c0_6] : memref<1x8xf32, #tpu.memory_space<vmem>>, vector<1x8xf32>
    %6 = vector.broadcast %5 : vector<1x8xf32> to vector<256x8xf32>
    %7 = arith.mulf %4, %6 : vector<256x8xf32>
    %c0_7 = arith.constant 0 : index
    %c0_8 = arith.constant 0 : index
    %8 = vector.load %arg4[%c0_7, %c0_8] : memref<1x8xf32, #tpu.memory_space<vmem>>, vector<1x8xf32>
    %9 = vector.broadcast %8 : vector<1x8xf32> to vector<256x8xf32>
    %10 = arith.addf %7, %9 : vector<256x8xf32>
    %cst_9 = arith.constant 0.000000e+00 : f32
    %11 = vector.broadcast %cst_9 : f32 to vector<256x8xf32>
    %12 = arith.maximumf %10, %11 : vector<256x8xf32>
    %cst_10 = arith.constant 0.000000e+00 : bf16
    %13 = vector.broadcast %cst_10 : bf16 to vector<1x32x8xbf16>
    %c0_11 = arith.constant 0 : index
    %c0_12 = arith.constant 0 : index
    %c0_13 = arith.constant 0 : index
    %14 = vector.load %arg15[%c0_11, %c0_12, %c0_13] : memref<18x32x8xbf16, #tpu.memory_space<vmem>>, vector<1x32x8xbf16>
    tpu.vector_store %arg15[%c0_11, %c0_12, %c0_13], %13 {strides = array<i32>} : memref<18x32x8xbf16, #tpu.memory_space<vmem>>, vector<1x32x8xbf16>,
    %cst_14 = arith.constant 0.000000e+00 : bf16
    %15 = vector.broadcast %cst_14 : bf16 to vector<1x32x8xbf16>
    %c17 = arith.constant 17 : index
    %c0_15 = arith.constant 0 : index
    %c0_16 = arith.constant 0 : index
    %16 = vector.load %arg15[%c17, %c0_15, %c0_16] : memref<18x32x8xbf16, #tpu.memory_space<vmem>>, vector<1x32x8xbf16>
    tpu.vector_store %arg15[%c17, %c0_15, %c0_16], %15 {strides = array<i32>} : memref<18x32x8xbf16, #tpu.memory_space<vmem>>, vector<1x32x8xbf16>,
    %cst_17 = arith.constant 0.000000e+00 : bf16
    %17 = vector.broadcast %cst_17 : bf16 to vector<18x8x8xbf16>
    %c0_18 = arith.constant 0 : index
    %c0_19 = arith.constant 0 : index
    %c0_20 = arith.constant 0 : index
    %18 = vector.load %arg15[%c0_18, %c0_19, %c0_20] : memref<18x32x8xbf16, #tpu.memory_space<vmem>>, vector<18x8x8xbf16>
    tpu.vector_store %arg15[%c0_18, %c0_19, %c0_20], %17 {strides = array<i32>} : memref<18x32x8xbf16, #tpu.memory_space<vmem>>, vector<18x8x8xbf16>,
    %cst_21 = arith.constant 0.000000e+00 : bf16
    %19 = vector.broadcast %cst_21 : bf16 to vector<18x8x8xbf16>
    %c0_22 = arith.constant 0 : index
    %c24 = arith.constant 24 : index
    %c0_23 = arith.constant 0 : index
    %20 = vector.load %arg15[%c0_22, %c24, %c0_23] : memref<18x32x8xbf16, #tpu.memory_space<vmem>>, vector<18x8x8xbf16>
    tpu.vector_store %arg15[%c0_22, %c24, %c0_23], %19 {strides = array<i32>} : memref<18x32x8xbf16, #tpu.memory_space<vmem>>, vector<18x8x8xbf16>,
    %21 = vector.shape_cast %12 : vector<256x8xf32> to vector<16x16x8xf32>
    %22 = arith.truncf %21 : vector<16x16x8xf32> to vector<16x16x8xbf16>
    %c1 = arith.constant 1 : index
    %c8 = arith.constant 8 : index
    %c0_24 = arith.constant 0 : index
    %23 = vector.load %arg15[%c1, %c8, %c0_24] : memref<18x32x8xbf16, #tpu.memory_space<vmem>>, vector<16x16x8xbf16>
    tpu.vector_store %arg15[%c1, %c8, %c0_24], %22 {strides = array<i32>} : memref<18x32x8xbf16, #tpu.memory_space<vmem>>, vector<16x16x8xbf16>,
    %c0_25 = arith.constant 0 : index
    %c7 = arith.constant 7 : index
    %c0_26 = arith.constant 0 : index
    %24 = vector.load %arg15[%c0_25, %c7, %c0_26] : memref<18x32x8xbf16, #tpu.memory_space<vmem>>, vector<16x16x8xbf16>
    %c0_27 = arith.constant 0 : index
    %c0_28 = arith.constant 0 : index
    %c0_29 = arith.constant 0 : index
    %25 = vector.load %arg16[%c0_27, %c0_28, %c0_29] : memref<16x16x72xbf16, #tpu.memory_space<vmem>>, vector<16x16x8xbf16>
    tpu.vector_store %arg16[%c0_27, %c0_28, %c0_29], %24 {strides = array<i32>} : memref<16x16x72xbf16, #tpu.memory_space<vmem>>, vector<16x16x8xbf16>,
    %c0_30 = arith.constant 0 : index
    %c8_31 = arith.constant 8 : index
    %c0_32 = arith.constant 0 : index
    %26 = vector.load %arg15[%c0_30, %c8_31, %c0_32] : memref<18x32x8xbf16, #tpu.memory_space<vmem>>, vector<16x16x8xbf16>
    %c0_33 = arith.constant 0 : index
    %c0_34 = arith.constant 0 : index
    %c8_35 = arith.constant 8 : index
    %27 = vector.load %arg16[%c0_33, %c0_34, %c8_35] : memref<16x16x72xbf16, #tpu.memory_space<vmem>>, vector<16x16x8xbf16>
    tpu.vector_store %arg16[%c0_33, %c0_34, %c8_35], %26 {strides = array<i32>} : memref<16x16x72xbf16, #tpu.memory_space<vmem>>, vector<16x16x8xbf16>,
    %c0_36 = arith.constant 0 : index
    %c9 = arith.constant 9 : index
    %c0_37 = arith.constant 0 : index
    %28 = vector.load %arg15[%c0_36, %c9, %c0_37] : memref<18x32x8xbf16, #tpu.memory_space<vmem>>, vector<16x16x8xbf16>
    %c0_38 = arith.constant 0 : index
    %c0_39 = arith.constant 0 : index
    %c16 = arith.constant 16 : index
    %29 = vector.load %arg16[%c0_38, %c0_39, %c16] : memref<16x16x72xbf16, #tpu.memory_space<vmem>>, vector<16x16x8xbf16>
    tpu.vector_store %arg16[%c0_38, %c0_39, %c16], %28 {strides = array<i32>} : memref<16x16x72xbf16, #tpu.memory_space<vmem>>, vector<16x16x8xbf16>,
    %c1_40 = arith.constant 1 : index
    %c7_41 = arith.constant 7 : index
    %c0_42 = arith.constant 0 : index
    %30 = vector.load %arg15[%c1_40, %c7_41, %c0_42] : memref<18x32x8xbf16, #tpu.memory_space<vmem>>, vector<16x16x8xbf16>
    %c0_43 = arith.constant 0 : index
    %c0_44 = arith.constant 0 : index
    %c24_45 = arith.constant 24 : index
    %31 = vector.load %arg16[%c0_43, %c0_44, %c24_45] : memref<16x16x72xbf16, #tpu.memory_space<vmem>>, vector<16x16x8xbf16>
    tpu.vector_store %arg16[%c0_43, %c0_44, %c24_45], %30 {strides = array<i32>} : memref<16x16x72xbf16, #tpu.memory_space<vmem>>, vector<16x16x8xbf16>,
    %c1_46 = arith.constant 1 : index
    %c8_47 = arith.constant 8 : index
    %c0_48 = arith.constant 0 : index
    %32 = vector.load %arg15[%c1_46, %c8_47, %c0_48] : memref<18x32x8xbf16, #tpu.memory_space<vmem>>, vector<16x16x8xbf16>
    %c0_49 = arith.constant 0 : index
    %c0_50 = arith.constant 0 : index
    %c32 = arith.constant 32 : index
    %33 = vector.load %arg16[%c0_49, %c0_50, %c32] : memref<16x16x72xbf16, #tpu.memory_space<vmem>>, vector<16x16x8xbf16>
    tpu.vector_store %arg16[%c0_49, %c0_50, %c32], %32 {strides = array<i32>} : memref<16x16x72xbf16, #tpu.memory_space<vmem>>, vector<16x16x8xbf16>,
    %c1_51 = arith.constant 1 : index
    %c9_52 = arith.constant 9 : index
    %c0_53 = arith.constant 0 : index
    %34 = vector.load %arg15[%c1_51, %c9_52, %c0_53] : memref<18x32x8xbf16, #tpu.memory_space<vmem>>, vector<16x16x8xbf16>
    %c0_54 = arith.constant 0 : index
    %c0_55 = arith.constant 0 : index
    %c40 = arith.constant 40 : index
    %35 = vector.load %arg16[%c0_54, %c0_55, %c40] : memref<16x16x72xbf16, #tpu.memory_space<vmem>>, vector<16x16x8xbf16>
    tpu.vector_store %arg16[%c0_54, %c0_55, %c40], %34 {strides = array<i32>} : memref<16x16x72xbf16, #tpu.memory_space<vmem>>, vector<16x16x8xbf16>,
    %c2 = arith.constant 2 : index
    %c7_56 = arith.constant 7 : index
    %c0_57 = arith.constant 0 : index
    %36 = vector.load %arg15[%c2, %c7_56, %c0_57] : memref<18x32x8xbf16, #tpu.memory_space<vmem>>, vector<16x16x8xbf16>
    %c0_58 = arith.constant 0 : index
    %c0_59 = arith.constant 0 : index
    %c48 = arith.constant 48 : index
    %37 = vector.load %arg16[%c0_58, %c0_59, %c48] : memref<16x16x72xbf16, #tpu.memory_space<vmem>>, vector<16x16x8xbf16>
    tpu.vector_store %arg16[%c0_58, %c0_59, %c48], %36 {strides = array<i32>} : memref<16x16x72xbf16, #tpu.memory_space<vmem>>, vector<16x16x8xbf16>,
    %c2_60 = arith.constant 2 : index
    %c8_61 = arith.constant 8 : index
    %c0_62 = arith.constant 0 : index
    %38 = vector.load %arg15[%c2_60, %c8_61, %c0_62] : memref<18x32x8xbf16, #tpu.memory_space<vmem>>, vector<16x16x8xbf16>
    %c0_63 = arith.constant 0 : index
    %c0_64 = arith.constant 0 : index
    %c56 = arith.constant 56 : index
    %39 = vector.load %arg16[%c0_63, %c0_64, %c56] : memref<16x16x72xbf16, #tpu.memory_space<vmem>>, vector<16x16x8xbf16>
    tpu.vector_store %arg16[%c0_63, %c0_64, %c56], %38 {strides = array<i32>} : memref<16x16x72xbf16, #tpu.memory_space<vmem>>, vector<16x16x8xbf16>,
    %c2_65 = arith.constant 2 : index
    %c9_66 = arith.constant 9 : index
    %c0_67 = arith.constant 0 : index
    %40 = vector.load %arg15[%c2_65, %c9_66, %c0_67] : memref<18x32x8xbf16, #tpu.memory_space<vmem>>, vector<16x16x8xbf16>
    %c0_68 = arith.constant 0 : index
    %c0_69 = arith.constant 0 : index
    %c64 = arith.constant 64 : index
    %41 = vector.load %arg16[%c0_68, %c0_69, %c64] : memref<16x16x72xbf16, #tpu.memory_space<vmem>>, vector<16x16x8xbf16>
    tpu.vector_store %arg16[%c0_68, %c0_69, %c64], %40 {strides = array<i32>} : memref<16x16x72xbf16, #tpu.memory_space<vmem>>, vector<16x16x8xbf16>,
    %c0_70 = arith.constant 0 : index
    %c0_71 = arith.constant 0 : index
    %c0_72 = arith.constant 0 : index
    %42 = vector.load %arg16[%c0_70, %c0_71, %c0_72] : memref<16x16x72xbf16, #tpu.memory_space<vmem>>, vector<16x16x72xbf16>
    %43 = vector.shape_cast %42 : vector<16x16x72xbf16> to vector<256x72xbf16>
    %c0_73 = arith.constant 0 : index
    %c0_74 = arith.constant 0 : index
    %44 = vector.load %arg5[%c0_73, %c0_74] : memref<72x8xbf16, #tpu.memory_space<vmem>>, vector<72x8xbf16>
    %cst_75 = arith.constant dense<0.000000e+00> : vector<256x8xf32>
    %45 = tpu.matmul %43, %44, %cst_75 {dimension_numbers = #tpu.dot_dimension_numbers<[1], [0], [0], [1], [0, 0, 1, 1], [], []>} : vector<256x72xbf16>, vector<72x8xbf16>, vector<256x8xf32> -> vector<256x8xf32>
    %c0_76 = arith.constant 0 : index
    %c0_77 = arith.constant 0 : index
    %46 = vector.load %arg6[%c0_76, %c0_77] : memref<1x8xf32, #tpu.memory_space<vmem>>, vector<1x8xf32>
    %47 = vector.broadcast %46 : vector<1x8xf32> to vector<256x8xf32>
    %48 = arith.mulf %45, %47 : vector<256x8xf32>
    %c0_78 = arith.constant 0 : index
    %c0_79 = arith.constant 0 : index
    %49 = vector.load %arg7[%c0_78, %c0_79] : memref<1x8xf32, #tpu.memory_space<vmem>>, vector<1x8xf32>
    %50 = vector.broadcast %49 : vector<1x8xf32> to vector<256x8xf32>
    %51 = arith.addf %48, %50 : vector<256x8xf32>
    %cst_80 = arith.constant 0.000000e+00 : f32
    %52 = vector.broadcast %cst_80 : f32 to vector<256x8xf32>
    %53 = arith.maximumf %51, %52 : vector<256x8xf32>
    %54 = arith.truncf %53 : vector<256x8xf32> to vector<256x8xbf16>
    %c0_81 = arith.constant 0 : index
    %c0_82 = arith.constant 0 : index
    %55 = vector.load %arg8[%c0_81, %c0_82] : memref<8x32xbf16, #tpu.memory_space<vmem>>, vector<8x32xbf16>
    %cst_83 = arith.constant dense<0.000000e+00> : vector<256x32xf32>
    %56 = tpu.matmul %54, %55, %cst_83 {dimension_numbers = #tpu.dot_dimension_numbers<[1], [0], [0], [1], [0, 0, 1, 1], [], []>} : vector<256x8xbf16>, vector<8x32xbf16>, vector<256x32xf32> -> vector<256x32xf32>
    %c0_84 = arith.constant 0 : index
    %c0_85 = arith.constant 0 : index
    %57 = vector.load %arg9[%c0_84, %c0_85] : memref<1x32xf32, #tpu.memory_space<vmem>>, vector<1x32xf32>
    %58 = vector.broadcast %57 : vector<1x32xf32> to vector<256x32xf32>
    %59 = arith.mulf %56, %58 : vector<256x32xf32>
    %c0_86 = arith.constant 0 : index
    %c0_87 = arith.constant 0 : index
    %60 = vector.load %arg10[%c0_86, %c0_87] : memref<1x32xf32, #tpu.memory_space<vmem>>, vector<1x32xf32>
    %61 = vector.broadcast %60 : vector<1x32xf32> to vector<256x32xf32>
    %62 = arith.addf %59, %61 : vector<256x32xf32>
    %c0_88 = arith.constant 0 : index
    %c0_89 = arith.constant 0 : index
    %63 = vector.load %arg11[%c0_88, %c0_89] : memref<16x32xbf16, #tpu.memory_space<vmem>>, vector<16x32xbf16>
    %cst_90 = arith.constant dense<0.000000e+00> : vector<256x32xf32>
    %64 = tpu.matmul %2, %63, %cst_90 {dimension_numbers = #tpu.dot_dimension_numbers<[1], [0], [0], [1], [0, 0, 1, 1], [], []>} : vector<256x16xbf16>, vector<16x32xbf16>, vector<256x32xf32> -> vector<256x32xf32>
    %c0_91 = arith.constant 0 : index
    %c0_92 = arith.constant 0 : index
    %65 = vector.load %arg12[%c0_91, %c0_92] : memref<1x32xf32, #tpu.memory_space<vmem>>, vector<1x32xf32>
    %66 = vector.broadcast %65 : vector<1x32xf32> to vector<256x32xf32>
    %67 = arith.mulf %64, %66 : vector<256x32xf32>
    %c0_93 = arith.constant 0 : index
    %c0_94 = arith.constant 0 : index
    %68 = vector.load %arg13[%c0_93, %c0_94] : memref<1x32xf32, #tpu.memory_space<vmem>>, vector<1x32xf32>
    %69 = vector.broadcast %68 : vector<1x32xf32> to vector<256x32xf32>
    %70 = arith.addf %67, %69 : vector<256x32xf32>
    %71 = arith.addf %62, %70 : vector<256x32xf32>
    %cst_95 = arith.constant 0.000000e+00 : f32
    %72 = vector.broadcast %cst_95 : f32 to vector<256x32xf32>
    %73 = arith.maximumf %71, %72 : vector<256x32xf32>
    %74 = vector.shape_cast %73 : vector<256x32xf32> to vector<16x16x32xf32>
    %75 = arith.truncf %74 : vector<16x16x32xf32> to vector<16x16x32xbf16>
    %c0_96 = arith.constant 0 : index
    %c0_97 = arith.constant 0 : index
    %c0_98 = arith.constant 0 : index
    %c0_99 = arith.constant 0 : index
    %76 = vector.load %arg14[%c0_96, %c0_97, %c0_98, %c0_99] : memref<1x16x16x32xbf16, #tpu.memory_space<vmem>>, vector<1x16x16x32xbf16>
    %77 = vector.shape_cast %76 : vector<1x16x16x32xbf16> to vector<16x16x32xbf16>
    %78 = vector.shape_cast %75 : vector<16x16x32xbf16> to vector<1x16x16x32xbf16>
    tpu.vector_store %arg14[%c0_96, %c0_97, %c0_98, %c0_99], %78 {strides = array<i32>} : memref<1x16x16x32xbf16, #tpu.memory_space<vmem>>, vector<1x16x16x32xbf16>,
    return
  }
  func.func @transform_0(%arg0: i32) -> (i32, i32, i32, i32) {
    %c0_i32 = arith.constant 0 : i32
    %c0_i32_0 = arith.constant 0 : i32
    %c0_i32_1 = arith.constant 0 : i32
    %c0_i32_2 = arith.constant 0 : i32
    return %arg0, %c0_i32, %c0_i32_0, %c0_i32_1 : i32, i32, i32, i32
  }
  func.func @transform_1(%arg0: i32) -> (i32, i32) {
    %c0_i32 = arith.constant 0 : i32
    %c0_i32_0 = arith.constant 0 : i32
    %c0_i32_1 = arith.constant 0 : i32
    return %c0_i32, %c0_i32_0 : i32, i32
  }
  func.func @transform_2(%arg0: i32) -> (i32, i32) {
    %c0_i32 = arith.constant 0 : i32
    %c0_i32_0 = arith.constant 0 : i32
    %c0_i32_1 = arith.constant 0 : i32
    return %c0_i32, %c0_i32_0 : i32, i32
  }
  func.func @transform_3(%arg0: i32) -> (i32, i32) {
    %c0_i32 = arith.constant 0 : i32
    %c0_i32_0 = arith.constant 0 : i32
    %c0_i32_1 = arith.constant 0 : i32
    return %c0_i32, %c0_i32_0 : i32, i32
  }
  func.func @transform_4(%arg0: i32) -> (i32, i32) {
    %c0_i32 = arith.constant 0 : i32
    %c0_i32_0 = arith.constant 0 : i32
    %c0_i32_1 = arith.constant 0 : i32
    return %c0_i32, %c0_i32_0 : i32, i32
  }
  func.func @transform_5(%arg0: i32) -> (i32, i32) {
    %c0_i32 = arith.constant 0 : i32
    %c0_i32_0 = arith.constant 0 : i32
    %c0_i32_1 = arith.constant 0 : i32
    return %c0_i32, %c0_i32_0 : i32, i32
  }
  func.func @transform_6(%arg0: i32) -> (i32, i32) {
    %c0_i32 = arith.constant 0 : i32
    %c0_i32_0 = arith.constant 0 : i32
    %c0_i32_1 = arith.constant 0 : i32
    return %c0_i32, %c0_i32_0 : i32, i32
  }
  func.func @transform_7(%arg0: i32) -> (i32, i32) {
    %c0_i32 = arith.constant 0 : i32
    %c0_i32_0 = arith.constant 0 : i32
    %c0_i32_1 = arith.constant 0 : i32
    return %c0_i32, %c0_i32_0 : i32, i32
  }
  func.func @transform_8(%arg0: i32) -> (i32, i32) {
    %c0_i32 = arith.constant 0 : i32
    %c0_i32_0 = arith.constant 0 : i32
    %c0_i32_1 = arith.constant 0 : i32
    return %c0_i32, %c0_i32_0 : i32, i32
  }
  func.func @transform_9(%arg0: i32) -> (i32, i32) {
    %c0_i32 = arith.constant 0 : i32
    %c0_i32_0 = arith.constant 0 : i32
    %c0_i32_1 = arith.constant 0 : i32
    return %c0_i32, %c0_i32_0 : i32, i32
  }
  func.func @transform_10(%arg0: i32) -> (i32, i32) {
    %c0_i32 = arith.constant 0 : i32
    %c0_i32_0 = arith.constant 0 : i32
    %c0_i32_1 = arith.constant 0 : i32
    return %c0_i32, %c0_i32_0 : i32, i32
  }
  func.func @transform_11(%arg0: i32) -> (i32, i32) {
    %c0_i32 = arith.constant 0 : i32
    %c0_i32_0 = arith.constant 0 : i32
    %c0_i32_1 = arith.constant 0 : i32
    return %c0_i32, %c0_i32_0 : i32, i32
  }
  func.func @transform_12(%arg0: i32) -> (i32, i32) {
    %c0_i32 = arith.constant 0 : i32
    %c0_i32_0 = arith.constant 0 : i32
    %c0_i32_1 = arith.constant 0 : i32
    return %c0_i32, %c0_i32_0 : i32, i32
  }
  func.func @transform_13(%arg0: i32) -> (i32, i32, i32, i32) {
    %c0_i32 = arith.constant 0 : i32
    %c0_i32_0 = arith.constant 0 : i32
    %c0_i32_1 = arith.constant 0 : i32
    %c0_i32_2 = arith.constant 0 : i32
    return %arg0, %c0_i32, %c0_i32_0, %c0_i32_1 : i32, i32, i32, i32
  }
}

</mosaic_0001>

<llo_original>
// kernel: bottleneck_forward.1
$region0: #{bottleneck_forward.1}
  #allocation0 [shape = 'u32[]', space=smem, size = 0x4, offset = 0x4, fixed_abs, tag = 'smem constant byte address 0x4 - core index']
  #allocation1 [shape = 'u32[144,128]{1,0:T(1,128)}', space=vmem, size = 0x12000, scoped, tag = 'internal scratch']
  #allocation2 [shape = 'bf16[18,32,8]{2,1,0:T(16,128)(2,1)}', space=vmem, size = 0x24000, scoped, tag = 'scratch operand']
  #allocation3 [shape = 'bf16[16,16,72]{2,1,0:T(16,128)(2,1)}', space=vmem, size = 0x10000, scoped, tag = 'scratch operand']
  %s0 = inlined_call_operand.vmem [shape: bf16[2,16,16,16], index: 0, kind: input, shape index: {}]
  %s1 = inlined_call_operand.vmem [shape: bf16[16,8], index: 1, kind: input, shape index: {}]
  %s2 = inlined_call_operand.vmem [shape: f32[1,8], index: 2, kind: input, shape index: {}]
  %s3 = inlined_call_operand.vmem [shape: f32[1,8], index: 3, kind: input, shape index: {}]
  %s4 = inlined_call_operand.vmem [shape: bf16[72,8], index: 4, kind: input, shape index: {}]
  %s5 = inlined_call_operand.vmem [shape: f32[1,8], index: 5, kind: input, shape index: {}]
  %s6 = inlined_call_operand.vmem [shape: f32[1,8], index: 6, kind: input, shape index: {}]
  %s7 = inlined_call_operand.vmem [shape: bf16[8,32], index: 7, kind: input, shape index: {}]
  %s8 = inlined_call_operand.vmem [shape: f32[1,32], index: 8, kind: input, shape index: {}]
  %s9 = inlined_call_operand.vmem [shape: f32[1,32], index: 9, kind: input, shape index: {}]
  %s10 = inlined_call_operand.vmem [shape: bf16[16,32], index: 10, kind: input, shape index: {}]
  %s11 = inlined_call_operand.vmem [shape: f32[1,32], index: 11, kind: input, shape index: {}]
  %s12 = inlined_call_operand.vmem [shape: f32[1,32], index: 12, kind: input, shape index: {}]
  %s13 = inlined_call_operand.vmem [shape: bf16[2,16,16,32], index: 13, kind: output, shape index: {}]
  %s14 = sld [smem:[#allocation0]]
  $region85: #{bottleneck_forward.1} parent=0
    _
  %s16 = ssub.s32 1, %s14
  %s17 = scalar_select 0, %s16, %s14
  loop: start=0, step=1, limit=4
  $region2: #{bottleneck_forward.1} parent=0 // loop_pre_header
    _
  $region3: #{bottleneck_forward.1} parent=0 // loop_header
    %s19 = sphi 0, %s23
    %p20 = scmp.ge.s32.totalorder %s19, 4
    %s29 = sphi 0, %s31
    %s32 = sphi 0, %s29
    %s33 = sphi 0, %s32
    %s49 = sphi 0, %s33
    %s53 = sphi 0, %s53
    %s55 = sphi 0, %s53
    %s56 = sphi 0, %s55
    %s70 = sphi 0, %s56
    %s74 = sphi 0, %s74
    %s76 = sphi 0, %s74
    %s77 = sphi 0, %s76
    %s91 = sphi 0, %s77
    %s95 = sphi 0, %s95
    %s97 = sphi 0, %s95
    %s98 = sphi 0, %s97
    %s112 = sphi 0, %s98
    %s116 = sphi 0, %s116
    %s118 = sphi 0, %s116
    %s119 = sphi 0, %s118
    %s133 = sphi 0, %s119
    %s137 = sphi 0, %s137
    %s139 = sphi 0, %s137
    %s140 = sphi 0, %s139
    %s154 = sphi 0, %s140
    %s158 = sphi 0, %s158
    %s160 = sphi 0, %s158
    %s161 = sphi 0, %s160
    %s175 = sphi 0, %s161
    %s179 = sphi 0, %s179
    %s181 = sphi 0, %s179
    %s182 = sphi 0, %s181
    %s196 = sphi 0, %s182
    %s200 = sphi 0, %s200
    %s202 = sphi 0, %s200
    %s203 = sphi 0, %s202
    %s217 = sphi 0, %s203
    %s221 = sphi 0, %s221
    %s223 = sphi 0, %s221
    %s224 = sphi 0, %s223
    %s238 = sphi 0, %s224
    %s242 = sphi 0, %s242
    %s244 = sphi 0, %s242
    %s245 = sphi 0, %s244
    %s259 = sphi 0, %s245
    %s263 = sphi 0, %s263
    %s265 = sphi 0, %s263
    %s266 = sphi 0, %s265
    %s280 = sphi 0, %s266
    %s284 = sphi 0, %s284
    %s286 = sphi 0, %s284
    %s287 = sphi 0, %s286
    %s301 = sphi 0, %s287
    %s307 = sphi 0, %s309
    %s310 = sphi 0, %s307
    %s311 = sphi 0, %s310
    %s327 = sphi 0, %s311
  $region4: #{bottleneck_forward.1} parent=0 // loop_header_branch
    %22 = sbr.rel (%p20) target = $region8
  $region5: #{bottleneck_forward.1} parent=0 // loop_body
    %s24 = ssub.s32 %s19, 1
    %s25 = ssub.s32 %s19, 2
    %s26 = sadd.s32 %s19, 1
    %s27 = ssub.s32 %s19, %s26
    %p28 = scmp.eq.s32.totalorder %s27, 0
    %s30 = sadd.s32 %s29, 1
    %s31 = scalar_select %p28, %s29, %s30
    %p34 = pneg %p28
    %p35 = scmp.eq.s32.totalorder %s19, 1
    %p36 = por %p34, %p35
    %p37 = scmp.ne.s32.totalorder %s29, %s32
    %p38 = scmp.eq.s32.totalorder %s19, 0
    %p39 = por %p37, %p38
    %p40 = scmp.ne.s32.totalorder %s29, %s32
    %p41 = scmp.eq.s32.totalorder %s24, 1
    %p42 = por %p40, %p41
    %p43 = scmp.ne.s32.totalorder %s32, %s33
    %p44 = scmp.eq.s32.totalorder %s24, 0
    %p45 = por %p43, %p44
    %p46 = scmp.ne.s32.totalorder %s32, %s33
    %p47 = scmp.eq.s32.totalorder %s25, 1
    %p48 = por %p46, %p47
    %p50 = scmp.ne.s32.totalorder %s33, %s49
    %p51 = scmp.eq.s32.totalorder %s25, 0
    %p52 = por %p50, %p51
    %s54 = sadd.s32 %s53, 1
    %p57 = scmp.eq.s32.totalorder %s19, 1
    %p58 = scmp.ne.s32.totalorder %s53, %s55
    %p59 = scmp.eq.s32.totalorder %s19, 0
    %p60 = por %p58, %p59
    %p61 = scmp.ne.s32.totalorder %s53, %s55
    %p62 = scmp.eq.s32.totalorder %s24, 1
    %p63 = por %p61, %p62
    %p64 = scmp.ne.s32.totalorder %s55, %s56
    %p65 = scmp.eq.s32.totalorder %s24, 0
    %p66 = por %p64, %p65
    %p67 = scmp.ne.s32.totalorder %s55, %s56
    %p68 = scmp.eq.s32.totalorder %s25, 1
    %p69 = por %p67, %p68
    %p71 = scmp.ne.s32.totalorder %s56, %s70
    %p72 = scmp.eq.s32.totalorder %s25, 0
    %p73 = por %p71, %p72
    %s75 = sadd.s32 %s74, 1
    %p78 = scmp.eq.s32.totalorder %s19, 1
    %p79 = scmp.ne.s32.totalorder %s74, %s76
    %p80 = scmp.eq.s32.totalorder %s19, 0
    %p81 = por %p79, %p80
    %p82 = scmp.ne.s32.totalorder %s74, %s76
    %p83 = scmp.eq.s32.totalorder %s24, 1
    %p84 = por %p82, %p83
    %p85 = scmp.ne.s32.totalorder %s76, %s77
    %p86 = scmp.eq.s32.totalorder %s24, 0
    %p87 = por %p85, %p86
    %p88 = scmp.ne.s32.totalorder %s76, %s77
    %p89 = scmp.eq.s32.totalorder %s25, 1
    %p90 = por %p88, %p89
    %p92 = scmp.ne.s32.totalorder %s77, %s91
    %p93 = scmp.eq.s32.totalorder %s25, 0
    %p94 = por %p92, %p93
    %s96 = sadd.s32 %s95, 1
    %p99 = scmp.eq.s32.totalorder %s19, 1
    %p100 = scmp.ne.s32.totalorder %s95, %s97
    %p101 = scmp.eq.s32.totalorder %s19, 0
    %p102 = por %p100, %p101
    %p103 = scmp.ne.s32.totalorder %s95, %s97
    %p104 = scmp.eq.s32.totalorder %s24, 1
    %p105 = por %p103, %p104
    %p106 = scmp.ne.s32.totalorder %s97, %s98
    %p107 = scmp.eq.s32.totalorder %s24, 0
    %p108 = por %p106, %p107
    %p109 = scmp.ne.s32.totalorder %s97, %s98
    %p110 = scmp.eq.s32.totalorder %s25, 1
    %p111 = por %p109, %p110
    %p113 = scmp.ne.s32.totalorder %s98, %s112
    %p114 = scmp.eq.s32.totalorder %s25, 0
    %p115 = por %p113, %p114
    %s117 = sadd.s32 %s116, 1
    %p120 = scmp.eq.s32.totalorder %s19, 1
    %p121 = scmp.ne.s32.totalorder %s116, %s118
    %p122 = scmp.eq.s32.totalorder %s19, 0
    %p123 = por %p121, %p122
    %p124 = scmp.ne.s32.totalorder %s116, %s118
    %p125 = scmp.eq.s32.totalorder %s24, 1
    %p126 = por %p124, %p125
    %p127 = scmp.ne.s32.totalorder %s118, %s119
    %p128 = scmp.eq.s32.totalorder %s24, 0
    %p129 = por %p127, %p128
    %p130 = scmp.ne.s32.totalorder %s118, %s119
    %p131 = scmp.eq.s32.totalorder %s25, 1
    %p132 = por %p130, %p131
    %p134 = scmp.ne.s32.totalorder %s119, %s133
    %p135 = scmp.eq.s32.totalorder %s25, 0
    %p136 = por %p134, %p135
    %s138 = sadd.s32 %s137, 1
    %p141 = scmp.eq.s32.totalorder %s19, 1
    %p142 = scmp.ne.s32.totalorder %s137, %s139
    %p143 = scmp.eq.s32.totalorder %s19, 0
    %p144 = por %p142, %p143
    %p145 = scmp.ne.s32.totalorder %s137, %s139
    %p146 = scmp.eq.s32.totalorder %s24, 1
    %p147 = por %p145, %p146
    %p148 = scmp.ne.s32.totalorder %s139, %s140
    %p149 = scmp.eq.s32.totalorder %s24, 0
    %p150 = por %p148, %p149
    %p151 = scmp.ne.s32.totalorder %s139, %s140
    %p152 = scmp.eq.s32.totalorder %s25, 1
    %p153 = por %p151, %p152
    %p155 = scmp.ne.s32.totalorder %s140, %s154
    %p156 = scmp.eq.s32.totalorder %s25, 0
    %p157 = por %p155, %p156
    %s159 = sadd.s32 %s158, 1
    %p162 = scmp.eq.s32.totalorder %s19, 1
    %p163 = scmp.ne.s32.totalorder %s158, %s160
    %p164 = scmp.eq.s32.totalorder %s19, 0
    %p165 = por %p163, %p164
    %p166 = scmp.ne.s32.totalorder %s158, %s160
    %p167 = scmp.eq.s32.totalorder %s24, 1
    %p168 = por %p166, %p167
    %p169 = scmp.ne.s32.totalorder %s160, %s161
    %p170 = scmp.eq.s32.totalorder %s24, 0
    %p171 = por %p169, %p170
    %p172 = scmp.ne.s32.totalorder %s160, %s161
    %p173 = scmp.eq.s32.totalorder %s25, 1
    %p174 = por %p172, %p173
    %p176 = scmp.ne.s32.totalorder %s161, %s175
    %p177 = scmp.eq.s32.totalorder %s25, 0
    %p178 = por %p176, %p177
    %s180 = sadd.s32 %s179, 1
    %p183 = scmp.eq.s32.totalorder %s19, 1
    %p184 = scmp.ne.s32.totalorder %s179, %s181
    %p185 = scmp.eq.s32.totalorder %s19, 0
    %p186 = por %p184, %p185
    %p187 = scmp.ne.s32.totalorder %s179, %s181
    %p188 = scmp.eq.s32.totalorder %s24, 1
    %p189 = por %p187, %p188
    %p190 = scmp.ne.s32.totalorder %s181, %s182
    %p191 = scmp.eq.s32.totalorder %s24, 0
    %p192 = por %p190, %p191
    %p193 = scmp.ne.s32.totalorder %s181, %s182
    %p194 = scmp.eq.s32.totalorder %s25, 1
    %p195 = por %p193, %p194
    %p197 = scmp.ne.s32.totalorder %s182, %s196
    %p198 = scmp.eq.s32.totalorder %s25, 0
    %p199 = por %p197, %p198
    %s201 = sadd.s32 %s200, 1
    %p204 = scmp.eq.s32.totalorder %s19, 1
    %p205 = scmp.ne.s32.totalorder %s200, %s202
    %p206 = scmp.eq.s32.totalorder %s19, 0
    %p207 = por %p205, %p206
    %p208 = scmp.ne.s32.totalorder %s200, %s202
    %p209 = scmp.eq.s32.totalorder %s24, 1
    %p210 = por %p208, %p209
    %p211 = scmp.ne.s32.totalorder %s202, %s203
    %p212 = scmp.eq.s32.totalorder %s24, 0
    %p213 = por %p211, %p212
    %p214 = scmp.ne.s32.totalorder %s202, %s203
    %p215 = scmp.eq.s32.totalorder %s25, 1
    %p216 = por %p214, %p215
    %p218 = scmp.ne.s32.totalorder %s203, %s217
    %p219 = scmp.eq.s32.totalorder %s25, 0
    %p220 = por %p218, %p219
    %s222 = sadd.s32 %s221, 1
    %p225 = scmp.eq.s32.totalorder %s19, 1
    %p226 = scmp.ne.s32.totalorder %s221, %s223
    %p227 = scmp.eq.s32.totalorder %s19, 0
    %p228 = por %p226, %p227
    %p229 = scmp.ne.s32.totalorder %s221, %s223
    %p230 = scmp.eq.s32.totalorder %s24, 1
    %p231 = por %p229, %p230
    %p232 = scmp.ne.s32.totalorder %s223, %s224
    %p233 = scmp.eq.s32.totalorder %s24, 0
    %p234 = por %p232, %p233
    %p235 = scmp.ne.s32.totalorder %s223, %s224
    %p236 = scmp.eq.s32.totalorder %s25, 1
    %p237 = por %p235, %p236
    %p239 = scmp.ne.s32.totalorder %s224, %s238
    %p240 = scmp.eq.s32.totalorder %s25, 0
    %p241 = por %p239, %p240
    %s243 = sadd.s32 %s242, 1
    %p246 = scmp.eq.s32.totalorder %s19, 1
    %p247 = scmp.ne.s32.totalorder %s242, %s244
    %p248 = scmp.eq.s32.totalorder %s19, 0
    %p249 = por %p247, %p248
    %p250 = scmp.ne.s32.totalorder %s242, %s244
    %p251 = scmp.eq.s32.totalorder %s24, 1
    %p252 = por %p250, %p251
    %p253 = scmp.ne.s32.totalorder %s244, %s245
    %p254 = scmp.eq.s32.totalorder %s24, 0
    %p255 = por %p253, %p254
    %p256 = scmp.ne.s32.totalorder %s244, %s245
    %p257 = scmp.eq.s32.totalorder %s25, 1
    %p258 = por %p256, %p257
    %p260 = scmp.ne.s32.totalorder %s245, %s259
    %p261 = scmp.eq.s32.totalorder %s25, 0
    %p262 = por %p260, %p261
    %s264 = sadd.s32 %s263, 1
    %p267 = scmp.eq.s32.totalorder %s19, 1
    %p268 = scmp.ne.s32.totalorder %s263, %s265
    %p269 = scmp.eq.s32.totalorder %s19, 0
    %p270 = por %p268, %p269
    %p271 = scmp.ne.s32.totalorder %s263, %s265
    %p272 = scmp.eq.s32.totalorder %s24, 1
    %p273 = por %p271, %p272
    %p274 = scmp.ne.s32.totalorder %s265, %s266
    %p275 = scmp.eq.s32.totalorder %s24, 0
    %p276 = por %p274, %p275
    %p277 = scmp.ne.s32.totalorder %s265, %s266
    %p278 = scmp.eq.s32.totalorder %s25, 1
    %p279 = por %p277, %p278
    %p281 = scmp.ne.s32.totalorder %s266, %s280
    %p282 = scmp.eq.s32.totalorder %s25, 0
    %p283 = por %p281, %p282
    %s285 = sadd.s32 %s284, 1
    %p288 = scmp.eq.s32.totalorder %s19, 1
    %p289 = scmp.ne.s32.totalorder %s284, %s286
    %p290 = scmp.eq.s32.totalorder %s19, 0
    %p291 = por %p289, %p290
    %p292 = scmp.ne.s32.totalorder %s284, %s286
    %p293 = scmp.eq.s32.totalorder %s24, 1
    %p294 = por %p292, %p293
    %p295 = scmp.ne.s32.totalorder %s286, %s287
    %p296 = scmp.eq.s32.totalorder %s24, 0
    %p297 = por %p295, %p296
    %p298 = scmp.ne.s32.totalorder %s286, %s287
    %p299 = scmp.eq.s32.totalorder %s25, 1
    %p300 = por %p298, %p299
    %p302 = scmp.ne.s32.totalorder %s287, %s301
    %p303 = scmp.eq.s32.totalorder %s25, 0
    %p304 = por %p302, %p303
    %s305 = ssub.s32 %s19, %s26
    %p306 = scmp.eq.s32.totalorder %s305, 0
    %s308 = sadd.s32 %s307, 1
    %s309 = scalar_select %p306, %s307, %s308
    %p312 = pneg %p306
    %p313 = scmp.eq.s32.totalorder %s19, 1
    %p314 = por %p312, %p313
    %p315 = scmp.ne.s32.totalorder %s307, %s310
    %p316 = scmp.eq.s32.totalorder %s19, 0
    %p317 = por %p315, %p316
    %p318 = scmp.ne.s32.totalorder %s307, %s310
    %p319 = scmp.eq.s32.totalorder %s24, 1
    %p320 = por %p318, %p319
    %p321 = scmp.ne.s32.totalorder %s310, %s311
    %p322 = scmp.eq.s32.totalorder %s24, 0
    %p323 = por %p321, %p322
    %p324 = scmp.ne.s32.totalorder %s310, %s311
    %p325 = scmp.eq.s32.totalorder %s25, 1
    %p326 = por %p324, %p325
    %p328 = scmp.ne.s32.totalorder %s311, %s327
    %p329 = scmp.eq.s32.totalorder %s25, 0
    %p330 = por %p328, %p329
    %p331 = scmp.le.s32.totalorder 1, %s19
    %p332 = scmp.lt.s32.totalorder %s19, 3
    %p333 = pnand %p331, %p332
    %p334 = pneg %p333
    // Predicated region
    $region9: #{bottleneck_forward.1} parent=5 // pred_check
      _
    $region10: #{bottleneck_forward.1} parent=5 // pred_check_branch
      %336 = sbr.rel (%p333) target = $region12
    $region11: #{bottleneck_forward.1} parent=5 // pred_region
      %s337 = ssub.s32 %s19, 1
      // Predicated region
      $region13: #{bottleneck_forward.1} parent=11 // pred_check
        %p338 = pneg %p66
      $region14: #{bottleneck_forward.1} parent=11 // pred_check_branch
        %340 = sbr.rel (%p338) target = $region16
      $region15: #{bottleneck_forward.1} parent=11 // pred_region
        _
      $region16: #{bottleneck_forward.1} parent=11 // pred_fallthru
        _
      // Predicated region
      $region17: #{bottleneck_forward.1} parent=11 // pred_check
        %p341 = pneg %p87
      $region18: #{bottleneck_forward.1} parent=11 // pred_check_branch
        %343 = sbr.rel (%p341) target = $region20
      $region19: #{bottleneck_forward.1} parent=11 // pred_region
        _
      $region20: #{bottleneck_forward.1} parent=11 // pred_fallthru
        _
      // Predicated region
      $region21: #{bottleneck_forward.1} parent=11 // pred_check
        %p344 = pneg %p108
      $region22: #{bottleneck_forward.1} parent=11 // pred_check_branch
        %346 = sbr.rel (%p344) target = $region24
      $region23: #{bottleneck_forward.1} parent=11 // pred_region
        _
      $region24: #{bottleneck_forward.1} parent=11 // pred_fallthru
        _
      // Predicated region
      $region25: #{bottleneck_forward.1} parent=11 // pred_check
        %p347 = pneg %p129
      $region26: #{bottleneck_forward.1} parent=11 // pred_check_branch
        %349 = sbr.rel (%p347) target = $region28
      $region27: #{bottleneck_forward.1} parent=11 // pred_region
        _
      $region28: #{bottleneck_forward.1} parent=11 // pred_fallthru
        _
      // Predicated region
      $region29: #{bottleneck_forward.1} parent=11 // pred_check
        %p350 = pneg %p150
      $region30: #{bottleneck_forward.1} parent=11 // pred_check_branch
        %352 = sbr.rel (%p350) target = $region32
      $region31: #{bottleneck_forward.1} parent=11 // pred_region
        _
      $region32: #{bottleneck_forward.1} parent=11 // pred_fallthru
        _
      // Predicated region
      $region33: #{bottleneck_forward.1} parent=11 // pred_check
        %p353 = pneg %p171
      $region34: #{bottleneck_forward.1} parent=11 // pred_check_branch
        %355 = sbr.rel (%p353) target = $region36
      $region35: #{bottleneck_forward.1} parent=11 // pred_region
        _
      $region36: #{bottleneck_forward.1} parent=11 // pred_fallthru
        _
      // Predicated region
      $region37: #{bottleneck_forward.1} parent=11 // pred_check
        %p356 = pneg %p192
      $region38: #{bottleneck_forward.1} parent=11 // pred_check_branch
        %358 = sbr.rel (%p356) target = $region40
      $region39: #{bottleneck_forward.1} parent=11 // pred_region
        _
      $region40: #{bottleneck_forward.1} parent=11 // pred_fallthru
        _
      // Predicated region
      $region41: #{bottleneck_forward.1} parent=11 // pred_check
        %p359 = pneg %p213
      $region42: #{bottleneck_forward.1} parent=11 // pred_check_branch
        %361 = sbr.rel (%p359) target = $region44
      $region43: #{bottleneck_forward.1} parent=11 // pred_region
        _
      $region44: #{bottleneck_forward.1} parent=11 // pred_fallthru
        _
      // Predicated region
      $region45: #{bottleneck_forward.1} parent=11 // pred_check
        %p362 = pneg %p234
      $region46: #{bottleneck_forward.1} parent=11 // pred_check_branch
        %364 = sbr.rel (%p362) target = $region48
      $region47: #{bottleneck_forward.1} parent=11 // pred_region
        _
      $region48: #{bottleneck_forward.1} parent=11 // pred_fallthru
        _
      // Predicated region
      $region49: #{bottleneck_forward.1} parent=11 // pred_check
        %p365 = pneg %p255
      $region50: #{bottleneck_forward.1} parent=11 // pred_check_branch
        %367 = sbr.rel (%p365) target = $region52
      $region51: #{bottleneck_forward.1} parent=11 // pred_region
        _
      $region52: #{bottleneck_forward.1} parent=11 // pred_fallthru
        _
      // Predicated region
      $region53: #{bottleneck_forward.1} parent=11 // pred_check
        %p368 = pneg %p276
      $region54: #{bottleneck_forward.1} parent=11 // pred_check_branch
        %370 = sbr.rel (%p368) target = $region56
      $region55: #{bottleneck_forward.1} parent=11 // pred_region
        _
      $region56: #{bottleneck_forward.1} parent=11 // pred_fallthru
        _
      // Predicated region
      $region57: #{bottleneck_forward.1} parent=11 // pred_check
        %p371 = pneg %p297
      $region58: #{bottleneck_forward.1} parent=11 // pred_check_branch
        %373 = sbr.rel (%p371) target = $region60
      $region59: #{bottleneck_forward.1} parent=11 // pred_region
        _
      $region60: #{bottleneck_forward.1} parent=11 // pred_fallthru
        _
    $region12: #{bottleneck_forward.1} parent=5 // pred_fallthru
      _
    %p374 = scmp.lt.s32.totalorder %s19, 2
    // Predicated region
    $region61: #{bottleneck_forward.1} parent=5 // pred_check
      %p375 = pneg %p374
    $region62: #{bottleneck_forward.1} parent=5 // pred_check_branch
      %377 = sbr.rel (%p375) target = $region64
    $region63: #{bottleneck_forward.1} parent=5 // pred_region
      // Predicated region
      $region65: #{bottleneck_forward.1} parent=63 // pred_check
        %p378 = pneg %p39
      $region66: #{bottleneck_forward.1} parent=63 // pred_check_branch
        %380 = sbr.rel (%p378) target = $region68
      $region67: #{bottleneck_forward.1} parent=63 // pred_region
        %p381 = scmp.lt.s32.totalorder %s19, 1
        %s382 = scalar_select %p381, %s19, 1
        %s383 = smul.addr %s382, 32
        %s384 = smul.addr %s383, 4
        %s385 = scalar_lea.vmem %s0, %s384
      $region68: #{bottleneck_forward.1} parent=63 // pred_fallthru
        _
    $region64: #{bottleneck_forward.1} parent=5 // pred_fallthru
      _
    %p386 = scmp.le.s32.totalorder 1, %s19
    %p387 = scmp.lt.s32.totalorder %s19, 3
    %p388 = pnand %p386, %p387
    %p389 = pneg %p388
    // Predicated region
    $region69: #{bottleneck_forward.1} parent=5 // pred_check
      _
    $region70: #{bottleneck_forward.1} parent=5 // pred_check_branch
      %391 = sbr.rel (%p388) target = $region72
    $region71: #{bottleneck_forward.1} parent=5 // pred_region
      %s392 = ssub.s32 %s19, 1
      %p393 = scmp.lt.s32.totalorder %s24, 1
      %s394 = scalar_select %p393, %s24, 1
      %s395 = smul.addr %s394, 32
      %s396 = smul.addr %s395, 4
      %s397 = scalar_lea.vmem %s0, %s396
      %p398 = pneg %p45
      %p399 = pneg %p42
      %p400 = pneg %p66
      %p401 = pneg %p63
      %p402 = pneg %p87
      %p403 = pneg %p84
      %p404 = pneg %p108
      %p405 = pneg %p105
      %p406 = pneg %p129
      %p407 = pneg %p126
      %p408 = pneg %p150
      %p409 = pneg %p147
      %p410 = pneg %p171
      %p411 = pneg %p168
      %p412 = pneg %p192
      %p413 = pneg %p189
      %p414 = pneg %p213
      %p415 = pneg %p210
      %p416 = pneg %p234
      %p417 = pneg %p231
      %p418 = pneg %p255
      %p419 = pneg %p252
      %p420 = pneg %p276
      %p421 = pneg %p273
      %p422 = pneg %p297
      %p423 = pneg %p294
      %p424 = pneg %p323
      %p425 = pneg %p320
      %p426 = scmp.lt.s32.totalorder %s24, 1
      %s427 = scalar_select %p426, %s24, 1
      %s428 = smul.addr %s427, 32
      %s429 = smul.addr %s428, 4
      %s430 = scalar_lea.vmem %s13, %s429
      %p431 = scmp.lt.s32.totalorder %s24, 1
      %s432 = scalar_select %p431, %s24, 1
      %s433 = smul.addr %s432, 32
      %s434 = smul.addr %s433, 4
      %s435 = scalar_lea.vmem %s0, %s434
      %p436 = scmp.lt.s32.totalorder %s24, 1
      %s437 = scalar_select %p436, %s24, 1
      %s438 = smul.addr %s437, 32
      %s439 = smul.addr %s438, 4
      %s440 = scalar_lea.vmem %s13, %s439
      %v442 = vld [vmem:[%s435] sm:$0xf]
      %v443 = vld [vmem:[%s435 + $0x4] sm:$0xf]
      %v444 = vld [vmem:[%s435 + $0x8] sm:$0xf]
      %v445 = vld [vmem:[%s435 + $0xc] sm:$0xf]
      %v446 = vld [vmem:[%s435 + $0x10] sm:$0xf]
      %v447 = vld [vmem:[%s435 + $0x14] sm:$0xf]
      %v448 = vld [vmem:[%s435 + $0x18] sm:$0xf]
      %v449 = vld [vmem:[%s435 + $0x1c] sm:$0xf]
      %v450 = vld [vmem:[%s435 + $0x20] sm:$0xf]
      %v451 = vld [vmem:[%s435 + $0x24] sm:$0xf]
      %v452 = vld [vmem:[%s435 + $0x28] sm:$0xf]
      %v453 = vld [vmem:[%s435 + $0x2c] sm:$0xf]
      %v454 = vld [vmem:[%s435 + $0x30] sm:$0xf]
      %v455 = vld [vmem:[%s435 + $0x34] sm:$0xf]
      %v456 = vld [vmem:[%s435 + $0x38] sm:$0xf]
      %v457 = vld [vmem:[%s435 + $0x3c] sm:$0xf]
      %v458 = vld [vmem:[%s435 + $0x40] sm:$0xf]
      %v459 = vld [vmem:[%s435 + $0x44] sm:$0xf]
      %v460 = vld [vmem:[%s435 + $0x48] sm:$0xf]
      %v461 = vld [vmem:[%s435 + $0x4c] sm:$0xf]
      %v462 = vld [vmem:[%s435 + $0x50] sm:$0xf]
      %v463 = vld [vmem:[%s435 + $0x54] sm:$0xf]
      %v464 = vld [vmem:[%s435 + $0x58] sm:$0xf]
      %v465 = vld [vmem:[%s435 + $0x5c] sm:$0xf]
      %v466 = vld [vmem:[%s435 + $0x60] sm:$0xf]
      %v467 = vld [vmem:[%s435 + $0x64] sm:$0xf]
      %v468 = vld [vmem:[%s435 + $0x68] sm:$0xf]
      %v469 = vld [vmem:[%s435 + $0x6c] sm:$0xf]
      %v470 = vld [vmem:[%s435 + $0x70] sm:$0xf]
      %v471 = vld [vmem:[%s435 + $0x74] sm:$0xf]
      %v472 = vld [vmem:[%s435 + $0x78] sm:$0xf]
      %v473 = vld [vmem:[%s435 + $0x7c] sm:$0xf]
      %v474 = vld [vmem:[%s1] sm:$0xf]
      %v475 = vld [vmem:[%s1 + $0x4] sm:$0xf]
      %v508 = vunpack.c.l.b16 %v442
      %v509 = vunpack.c.l.b16 %v443
      %v510 = vunpack.c.l.b16 %v444
      %v511 = vunpack.c.l.b16 %v445
      %v512 = vunpack.c.l.b16 %v446
      %v513 = vunpack.c.l.b16 %v447
      %v514 = vunpack.c.l.b16 %v448
      %v515 = vunpack.c.l.b16 %v449
      %v516 = vunpack.c.l.b16 %v450
      %v517 = vunpack.c.l.b16 %v451
      %v518 = vunpack.c.l.b16 %v452
      %v519 = vunpack.c.l.b16 %v453
      %v520 = vunpack.c.l.b16 %v454
      %v521 = vunpack.c.l.b16 %v455
      %v522 = vunpack.c.l.b16 %v456
      %v523 = vunpack.c.l.b16 %v457
      %v524 = vunpack.c.l.b16 %v458
      %v525 = vunpack.c.l.b16 %v459
      %v526 = vunpack.c.l.b16 %v460
      %v527 = vunpack.c.l.b16 %v461
      %v528 = vunpack.c.l.b16 %v462
      %v529 = vunpack.c.l.b16 %v463
      %v530 = vunpack.c.l.b16 %v464
      %v531 = vunpack.c.l.b16 %v465
      %v532 = vunpack.c.l.b16 %v466
      %v533 = vunpack.c.l.b16 %v467
      %v534 = vunpack.c.l.b16 %v468
      %v535 = vunpack.c.l.b16 %v469
      %v536 = vunpack.c.l.b16 %v470
      %v537 = vunpack.c.l.b16 %v471
      %v538 = vunpack.c.l.b16 %v472
      %v539 = vunpack.c.l.b16 %v473
      %v540 = vpack.c.b16 %v509, %v508
      %v541 = vpack.c.b16 %v511, %v510
      %v542 = vpack.c.b16 %v513, %v512
      %v543 = vpack.c.b16 %v515, %v514
      %v544 = vpack.c.b16 %v517, %v516
      %v545 = vpack.c.b16 %v519, %v518
      %v546 = vpack.c.b16 %v521, %v520
      %v547 = vpack.c.b16 %v523, %v522
      %v548 = vpack.c.b16 %v525, %v524
      %v549 = vpack.c.b16 %v527, %v526
      %v550 = vpack.c.b16 %v529, %v528
      %v551 = vpack.c.b16 %v531, %v530
      %v552 = vpack.c.b16 %v533, %v532
      %v553 = vpack.c.b16 %v535, %v534
      %v554 = vpack.c.b16 %v537, %v536
      %v555 = vpack.c.b16 %v539, %v538
      %v558 = vunpack.c.l.b16 %v474
      %v559 = vunpack.c.l.b16 %v475
      %v560 = vpack.c.b16 %v559, %v558
      %vm562 = vcmask 130048
      %v564 = vsel %vm562, %v540, 0
      %v567 = vsel %vm562, %v541, 0
      %v570 = vsel %vm562, %v542, 0
      %v573 = vsel %vm562, %v543, 0
      %v576 = vsel %vm562, %v544, 0
      %v579 = vsel %vm562, %v545, 0
      %v582 = vsel %vm562, %v546, 0
      %v585 = vsel %vm562, %v547, 0
      %v588 = vsel %vm562, %v548, 0
      %v591 = vsel %vm562, %v549, 0
      %v594 = vsel %vm562, %v550, 0
      %v597 = vsel %vm562, %v551, 0
      %v600 = vsel %vm562, %v552, 0
      %v603 = vsel %vm562, %v553, 0
      %v606 = vsel %vm562, %v554, 0
      %v609 = vsel %vm562, %v555, 0
      %611 = vmatprep.subr.bf16.mxu0 0
      %612 = vmatpush1.bf16.msra.mxu0 %v560
      %613 = vmatprep.subr.bf16.mxu0 0
      %614 = vmatpush1.bf16.msra.mxu0 0
      %615 = vmatprep.subr.bf16.mxu0 0
      %616 = vmatpush1.bf16.msra.mxu0 0
      %617 = vmatprep.subr.bf16.mxu0 0
      %618 = vmatpush1.bf16.msra.mxu0 0
      %619 = vmatprep.subr.bf16.mxu0 0
      %620 = vmatpush1.bf16.msra.mxu0 0
      %621 = vmatprep.subr.bf16.mxu0 0
      %622 = vmatpush1.bf16.msra.mxu0 0
      %623 = vmatprep.subr.bf16.mxu0 0
      %624 = vmatpush1.bf16.msra.mxu0 0
      %625 = vmatprep.subr.bf16.mxu0 0
      %626 = vmatpush1.bf16.msra.mxu0 0
      %627 = vmatprep.subr.bf16.mxu0 0
      %628 = vmatpush1.bf16.msra.mxu0 0
      %629 = vmatprep.subr.bf16.mxu0 0
      %630 = vmatpush1.bf16.msra.mxu0 0
      %631 = vmatprep.subr.bf16.mxu0 0
      %632 = vmatpush1.bf16.msra.mxu0 0
      %633 = vmatprep.subr.bf16.mxu0 0
      %634 = vmatpush1.bf16.msra.mxu0 0
      %635 = vmatprep.subr.bf16.mxu0 0
      %636 = vmatpush1.bf16.msra.mxu0 0
      %637 = vmatprep.subr.bf16.mxu0 0
      %638 = vmatpush1.bf16.msra.mxu0 0
      %639 = vmatprep.subr.bf16.mxu0 0
      %640 = vmatpush1.bf16.msra.mxu0 0
      %641 = vmatprep.subr.bf16.mxu0 0
      %642 = vmatpush1.bf16.msra.mxu0 0
      %643 = vmatprep.mubr.bf16.mxu0 0
      %644 = vmatmul.mubr.bf16.gmra.mrb[0].mxu0 %v564
      %v645 = vpop.f32.mrb[0].mxu0
      %v646 = vadd.f32 0.0, %v645
      %v647 = vpop.f32.mrb[0].mxu0
      %v648 = vpop.f32.mrb[0].mxu0
      %v649 = vadd.f32 0.0, %v648
      %v650 = vpop.f32.mrb[0].mxu0
      %651 = vmatprep.mubr.bf16.mxu0 0
      %652 = vmatmul.mubr.bf16.gmra.mrb[0].mxu0 %v567
      %v653 = vpop.f32.mrb[0].mxu0
      %v654 = vadd.f32 0.0, %v653
      %v655 = vpop.f32.mrb[0].mxu0
      %v656 = vpop.f32.mrb[0].mxu0
      %v657 = vadd.f32 0.0, %v656
      %v658 = vpop.f32.mrb[0].mxu0
      %659 = vmatprep.mubr.bf16.mxu0 0
      %660 = vmatmul.mubr.bf16.gmra.mrb[0].mxu0 %v570
      %v661 = vpop.f32.mrb[0].mxu0
      %v662 = vadd.f32 0.0, %v661
      %v663 = vpop.f32.mrb[0].mxu0
      %v664 = vpop.f32.mrb[0].mxu0
      %v665 = vadd.f32 0.0, %v664
      %v666 = vpop.f32.mrb[0].mxu0
      %667 = vmatprep.mubr.bf16.mxu0 0
      %668 = vmatmul.mubr.bf16.gmra.mrb[0].mxu0 %v573
      %v669 = vpop.f32.mrb[0].mxu0
      %v670 = vadd.f32 0.0, %v669
      %v671 = vpop.f32.mrb[0].mxu0
      %v672 = vpop.f32.mrb[0].mxu0
      %v673 = vadd.f32 0.0, %v672
      %v674 = vpop.f32.mrb[0].mxu0
      %675 = vmatprep.mubr.bf16.mxu0 0
      %676 = vmatmul.mubr.bf16.gmra.mrb[0].mxu0 %v576
      %v677 = vpop.f32.mrb[0].mxu0
      %v678 = vadd.f32 0.0, %v677
      %v679 = vpop.f32.mrb[0].mxu0
      %v680 = vpop.f32.mrb[0].mxu0
      %v681 = vadd.f32 0.0, %v680
      %v682 = vpop.f32.mrb[0].mxu0
      %683 = vmatprep.mubr.bf16.mxu0 0
      %684 = vmatmul.mubr.bf16.gmra.mrb[0].mxu0 %v579
      %v685 = vpop.f32.mrb[0].mxu0
      %v686 = vadd.f32 0.0, %v685
      %v687 = vpop.f32.mrb[0].mxu0
      %v688 = vpop.f32.mrb[0].mxu0
      %v689 = vadd.f32 0.0, %v688
      %v690 = vpop.f32.mrb[0].mxu0
      %691 = vmatprep.mubr.bf16.mxu0 0
      %692 = vmatmul.mubr.bf16.gmra.mrb[0].mxu0 %v582
      %v693 = vpop.f32.mrb[0].mxu0
      %v694 = vadd.f32 0.0, %v693
      %v695 = vpop.f32.mrb[0].mxu0
      %v696 = vpop.f32.mrb[0].mxu0
      %v697 = vadd.f32 0.0, %v696
      %v698 = vpop.f32.mrb[0].mxu0
      %699 = vmatprep.mubr.bf16.mxu0 0
      %700 = vmatmul.mubr.bf16.gmra.mrb[0].mxu0 %v585
      %v701 = vpop.f32.mrb[0].mxu0
      %v702 = vadd.f32 0.0, %v701
      %v703 = vpop.f32.mrb[0].mxu0
      %v704 = vpop.f32.mrb[0].mxu0
      %v705 = vadd.f32 0.0, %v704
      %v706 = vpop.f32.mrb[0].mxu0
      %707 = vmatprep.mubr.bf16.mxu0 0
      %708 = vmatmul.mubr.bf16.gmra.mrb[0].mxu0 %v588
      %v709 = vpop.f32.mrb[0].mxu0
      %v710 = vadd.f32 0.0, %v709
      %v711 = vpop.f32.mrb[0].mxu0
      %v712 = vpop.f32.mrb[0].mxu0
      %v713 = vadd.f32 0.0, %v712
      %v714 = vpop.f32.mrb[0].mxu0
      %715 = vmatprep.mubr.bf16.mxu0 0
      %716 = vmatmul.mubr.bf16.gmra.mrb[0].mxu0 %v591
      %v717 = vpop.f32.mrb[0].mxu0
      %v718 = vadd.f32 0.0, %v717
      %v719 = vpop.f32.mrb[0].mxu0
      %v720 = vpop.f32.mrb[0].mxu0
      %v721 = vadd.f32 0.0, %v720
      %v722 = vpop.f32.mrb[0].mxu0
      %723 = vmatprep.mubr.bf16.mxu0 0
      %724 = vmatmul.mubr.bf16.gmra.mrb[0].mxu0 %v594
      %v725 = vpop.f32.mrb[0].mxu0
      %v726 = vadd.f32 0.0, %v725
      %v727 = vpop.f32.mrb[0].mxu0
      %v728 = vpop.f32.mrb[0].mxu0
      %v729 = vadd.f32 0.0, %v728
      %v730 = vpop.f32.mrb[0].mxu0
      %731 = vmatprep.mubr.bf16.mxu0 0
      %732 = vmatmul.mubr.bf16.gmra.mrb[0].mxu0 %v597
      %v733 = vpop.f32.mrb[0].mxu0
      %v734 = vadd.f32 0.0, %v733
      %v735 = vpop.f32.mrb[0].mxu0
      %v736 = vpop.f32.mrb[0].mxu0
      %v737 = vadd.f32 0.0, %v736
      %v738 = vpop.f32.mrb[0].mxu0
      %739 = vmatprep.mubr.bf16.mxu0 0
      %740 = vmatmul.mubr.bf16.gmra.mrb[0].mxu0 %v600
      %v741 = vpop.f32.mrb[0].mxu0
      %v742 = vadd.f32 0.0, %v741
      %v743 = vpop.f32.mrb[0].mxu0
      %v744 = vpop.f32.mrb[0].mxu0
      %v745 = vadd.f32 0.0, %v744
      %v746 = vpop.f32.mrb[0].mxu0
      %747 = vmatprep.mubr.bf16.mxu0 0
      %748 = vmatmul.mubr.bf16.gmra.mrb[0].mxu0 %v603
      %v749 = vpop.f32.mrb[0].mxu0
      %v750 = vadd.f32 0.0, %v749
      %v751 = vpop.f32.mrb[0].mxu0
      %v752 = vpop.f32.mrb[0].mxu0
      %v753 = vadd.f32 0.0, %v752
      %v754 = vpop.f32.mrb[0].mxu0
      %755 = vmatprep.mubr.bf16.mxu0 0
      %756 = vmatmul.mubr.bf16.gmra.mrb[0].mxu0 %v606
      %v757 = vpop.f32.mrb[0].mxu0
      %v758 = vadd.f32 0.0, %v757
      %v759 = vpop.f32.mrb[0].mxu0
      %v760 = vpop.f32.mrb[0].mxu0
      %v761 = vadd.f32 0.0, %v760
      %v762 = vpop.f32.mrb[0].mxu0
      %763 = vmatprep.mubr.bf16.mxu0 0
      %764 = vmatmul.mubr.bf16.gmra.mrb[0].mxu0 %v609
      %v765 = vpop.f32.mrb[0].mxu0
      %v766 = vadd.f32 0.0, %v765
      %v767 = vpop.f32.mrb[0].mxu0
      %v768 = vpop.f32.mrb[0].mxu0
      %v769 = vadd.f32 0.0, %v768
      %v770 = vpop.f32.mrb[0].mxu0
      %771 = vdwg.mxu0
      %v772 = vld [vmem:[%s2] sm:$0x1]
      %v774 = vlaneseq
      %v775 = vshrl.u32 %v774, 7
      %v776 = vsub.s32 0, %v775
      %v777 = vrot.slane %v772, %v776
      %v779 = vmul.f32 %v646, %v777
      %v780 = vmul.f32 %v649, %v777
      %v781 = vmul.f32 %v654, %v777
      %v782 = vmul.f32 %v657, %v777
      %v783 = vmul.f32 %v662, %v777
      %v784 = vmul.f32 %v665, %v777
      %v785 = vmul.f32 %v670, %v777
      %v786 = vmul.f32 %v673, %v777
      %v787 = vmul.f32 %v678, %v777
      %v788 = vmul.f32 %v681, %v777
      %v789 = vmul.f32 %v686, %v777
      %v790 = vmul.f32 %v689, %v777
      %v791 = vmul.f32 %v694, %v777
      %v792 = vmul.f32 %v697, %v777
      %v793 = vmul.f32 %v702, %v777
      %v794 = vmul.f32 %v705, %v777
      %v795 = vmul.f32 %v710, %v777
      %v796 = vmul.f32 %v713, %v777
      %v797 = vmul.f32 %v718, %v777
      %v798 = vmul.f32 %v721, %v777
      %v799 = vmul.f32 %v726, %v777
      %v800 = vmul.f32 %v729, %v777
      %v801 = vmul.f32 %v734, %v777
      %v802 = vmul.f32 %v737, %v777
      %v803 = vmul.f32 %v742, %v777
      %v804 = vmul.f32 %v745, %v777
      %v805 = vmul.f32 %v750, %v777
      %v806 = vmul.f32 %v753, %v777
      %v807 = vmul.f32 %v758, %v777
      %v808 = vmul.f32 %v761, %v777
      %v809 = vmul.f32 %v766, %v777
      %v810 = vmul.f32 %v769, %v777
      %v811 = vld [vmem:[%s3] sm:$0x1]
      %v813 = vlaneseq
      %v814 = vshrl.u32 %v813, 7
      %v815 = vsub.s32 0, %v814
      %v816 = vrot.slane %v811, %v815
      %v818 = vadd.f32 %v779, %v816
      %v819 = vadd.f32 %v780, %v816
      %v820 = vadd.f32 %v781, %v816
      %v821 = vadd.f32 %v782, %v816
      %v822 = vadd.f32 %v783, %v816
      %v823 = vadd.f32 %v784, %v816
      %v824 = vadd.f32 %v785, %v816
      %v825 = vadd.f32 %v786, %v816
      %v826 = vadd.f32 %v787, %v816
      %v827 = vadd.f32 %v788, %v816
      %v828 = vadd.f32 %v789, %v816
      %v829 = vadd.f32 %v790, %v816
      %v830 = vadd.f32 %v791, %v816
      %v831 = vadd.f32 %v792, %v816
      %v832 = vadd.f32 %v793, %v816
      %v833 = vadd.f32 %v794, %v816
      %v834 = vadd.f32 %v795, %v816
      %v835 = vadd.f32 %v796, %v816
      %v836 = vadd.f32 %v797, %v816
      %v837 = vadd.f32 %v798, %v816
      %v838 = vadd.f32 %v799, %v816
      %v839 = vadd.f32 %v800, %v816
      %v840 = vadd.f32 %v801, %v816
      %v841 = vadd.f32 %v802, %v816
      %v842 = vadd.f32 %v803, %v816
      %v843 = vadd.f32 %v804, %v816
      %v844 = vadd.f32 %v805, %v816
      %v845 = vadd.f32 %v806, %v816
      %v846 = vadd.f32 %v807, %v816
      %v847 = vadd.f32 %v808, %v816
      %v848 = vadd.f32 %v809, %v816
      %v849 = vadd.f32 %v810, %v816
      %v850 = vmax.f32 %v818, 0.0
      %v851 = vmax.f32 %v819, 0.0
      %v852 = vmax.f32 %v820, 0.0
      %v853 = vmax.f32 %v821, 0.0
      %v854 = vmax.f32 %v822, 0.0
      %v855 = vmax.f32 %v823, 0.0
      %v856 = vmax.f32 %v824, 0.0
      %v857 = vmax.f32 %v825, 0.0
      %v858 = vmax.f32 %v826, 0.0
      %v859 = vmax.f32 %v827, 0.0
      %v860 = vmax.f32 %v828, 0.0
      %v861 = vmax.f32 %v829, 0.0
      %v862 = vmax.f32 %v830, 0.0
      %v863 = vmax.f32 %v831, 0.0
      %v864 = vmax.f32 %v832, 0.0
      %v865 = vmax.f32 %v833, 0.0
      %v866 = vmax.f32 %v834, 0.0
      %v867 = vmax.f32 %v835, 0.0
      %v868 = vmax.f32 %v836, 0.0
      %v869 = vmax.f32 %v837, 0.0
      %v870 = vmax.f32 %v838, 0.0
      %v871 = vmax.f32 %v839, 0.0
      %v872 = vmax.f32 %v840, 0.0
      %v873 = vmax.f32 %v841, 0.0
      %v874 = vmax.f32 %v842, 0.0
      %v875 = vmax.f32 %v843, 0.0
      %v876 = vmax.f32 %v844, 0.0
      %v877 = vmax.f32 %v845, 0.0
      %v878 = vmax.f32 %v846, 0.0
      %v879 = vmax.f32 %v847, 0.0
      %v880 = vmax.f32 %v848, 0.0
      %v881 = vmax.f32 %v849, 0.0
      %vm882 = vcmask 64512
      %883 = vst.msk [vmem:[#allocation2] sm:$0xff] %vm882, 0
      %884 = vst.msk [vmem:[#allocation2 + $0x8] sm:$0xff] %vm882, 0
      %s885 = scalar_lea.vmem [#allocation2], 272
      %886 = vst.msk [vmem:[%s885] sm:$0xff] %vm882, 0
      %887 = vst.msk [vmem:[%s885 + $0x8] sm:$0xff] %vm882, 0
      %vm888 = vcmask 60416
      %889 = vst.msk [vmem:[#allocation2] sm:$0xf] %vm888, 0
      %890 = vst.msk [vmem:[#allocation2 + $0x10] sm:$0xf] %vm888, 0
      %891 = vst.msk [vmem:[#allocation2 + $0x20] sm:$0xf] %vm888, 0
      %892 = vst.msk [vmem:[#allocation2 + $0x30] sm:$0xf] %vm888, 0
      %893 = vst.msk [vmem:[#allocation2 + $0x40] sm:$0xf] %vm888, 0
      %894 = vst.msk [vmem:[#allocation2 + $0x50] sm:$0xf] %vm888, 0
      %895 = vst.msk [vmem:[#allocation2 + $0x60] sm:$0xf] %vm888, 0
      %896 = vst.msk [vmem:[#allocation2 + $0x70] sm:$0xf] %vm888, 0
      %897 = vst.msk [vmem:[#allocation2 + $0x80] sm:$0xf] %vm888, 0
      %898 = vst.msk [vmem:[#allocation2 + $0x90] sm:$0xf] %vm888, 0
      %899 = vst.msk [vmem:[#allocation2 + $0xa0] sm:$0xf] %vm888, 0
      %900 = vst.msk [vmem:[#allocation2 + $0xb0] sm:$0xf] %vm888, 0
      %901 = vst.msk [vmem:[#allocation2 + $0xc0] sm:$0xf] %vm888, 0
      %902 = vst.msk [vmem:[#allocation2 + $0xd0] sm:$0xf] %vm888, 0
      %903 = vst.msk [vmem:[#allocation2 + $0xe0] sm:$0xf] %vm888, 0
      %904 = vst.msk [vmem:[#allocation2 + $0xf0] sm:$0xf] %vm888, 0
      %905 = vst.msk [vmem:[#allocation2 + $0x100] sm:$0xf] %vm888, 0
      %906 = vst.msk [vmem:[#allocation2 + $0x110] sm:$0xf] %vm888, 0
      %vm907 = vcmask 64516
      %908 = vst.msk [vmem:[#allocation2 + $0x8] sm:$0xf0] %vm907, 0
      %909 = vst.msk [vmem:[#allocation2 + $0x18] sm:$0xf0] %vm907, 0
      %910 = vst.msk [vmem:[#allocation2 + $0x28] sm:$0xf0] %vm907, 0
      %911 = vst.msk [vmem:[#allocation2 + $0x38] sm:$0xf0] %vm907, 0
      %912 = vst.msk [vmem:[#allocation2 + $0x48] sm:$0xf0] %vm907, 0
      %913 = vst.msk [vmem:[#allocation2 + $0x58] sm:$0xf0] %vm907, 0
      %914 = vst.msk [vmem:[#allocation2 + $0x68] sm:$0xf0] %vm907, 0
      %915 = vst.msk [vmem:[#allocation2 + $0x78] sm:$0xf0] %vm907, 0
      %916 = vst.msk [vmem:[#allocation2 + $0x88] sm:$0xf0] %vm907, 0
      %917 = vst.msk [vmem:[#allocation2 + $0x98] sm:$0xf0] %vm907, 0
      %918 = vst.msk [vmem:[#allocation2 + $0xa8] sm:$0xf0] %vm907, 0
      %919 = vst.msk [vmem:[#allocation2 + $0xb8] sm:$0xf0] %vm907, 0
      %920 = vst.msk [vmem:[#allocation2 + $0xc8] sm:$0xf0] %vm907, 0
      %921 = vst.msk [vmem:[#allocation2 + $0xd8] sm:$0xf0] %vm907, 0
      %922 = vst.msk [vmem:[#allocation2 + $0xe8] sm:$0xf0] %vm907, 0
      %923 = vst.msk [vmem:[#allocation2 + $0xf8] sm:$0xf0] %vm907, 0
      %924 = vst.msk [vmem:[#allocation2 + $0x108] sm:$0xf0] %vm907, 0
      %925 = vst.msk [vmem:[#allocation2 + $0x118] sm:$0xf0] %vm907, 0
      %v926 = vpack.c.bf16 %v851, %v850
      %v927 = vpack.c.bf16 %v853, %v852
      %v928 = vpack.c.bf16 %v855, %v854
      %v929 = vpack.c.bf16 %v857, %v856
      %v930 = vpack.c.bf16 %v859, %v858
      %v931 = vpack.c.bf16 %v861, %v860
      %v932 = vpack.c.bf16 %v863, %v862
      %v933 = vpack.c.bf16 %v865, %v864
      %v934 = vpack.c.bf16 %v867, %v866
      %v935 = vpack.c.bf16 %v869, %v868
      %v936 = vpack.c.bf16 %v871, %v870
      %v937 = vpack.c.bf16 %v873, %v872
      %v938 = vpack.c.bf16 %v875, %v874
      %v939 = vpack.c.bf16 %v877, %v876
      %v940 = vpack.c.bf16 %v879, %v878
      %v941 = vpack.c.bf16 %v881, %v880
      %v958 = vrot.slane %v926, 4
      %v959 = vrot.slane %v927, 4
      %v960 = vrot.slane %v928, 4
      %v961 = vrot.slane %v929, 4
      %v962 = vrot.slane %v930, 4
      %v963 = vrot.slane %v931, 4
      %v964 = vrot.slane %v932, 4
      %v965 = vrot.slane %v933, 4
      %v966 = vrot.slane %v934, 4
      %v967 = vrot.slane %v935, 4
      %v968 = vrot.slane %v936, 4
      %v969 = vrot.slane %v937, 4
      %v970 = vrot.slane %v938, 4
      %v971 = vrot.slane %v939, 4
      %v972 = vrot.slane %v940, 4
      %v973 = vrot.slane %v941, 4
      %s990 = scalar_lea.vmem [#allocation2], 16
      %991 = vst.msk [vmem:[%s990] sm:$0xf0] %vm907, %v958
      %992 = vst.msk [vmem:[%s990 + $0x8] sm:$0xf] %vm888, %v958
      %993 = vst.msk [vmem:[%s990 + $0x10] sm:$0xf0] %vm907, %v959
      %994 = vst.msk [vmem:[%s990 + $0x18] sm:$0xf] %vm888, %v959
      %995 = vst.msk [vmem:[%s990 + $0x20] sm:$0xf0] %vm907, %v960
      %996 = vst.msk [vmem:[%s990 + $0x28] sm:$0xf] %vm888, %v960
      %997 = vst.msk [vmem:[%s990 + $0x30] sm:$0xf0] %vm907, %v961
      %998 = vst.msk [vmem:[%s990 + $0x38] sm:$0xf] %vm888, %v961
      %999 = vst.msk [vmem:[%s990 + $0x40] sm:$0xf0] %vm907, %v962
      %1000 = vst.msk [vmem:[%s990 + $0x48] sm:$0xf] %vm888, %v962
      %1001 = vst.msk [vmem:[%s990 + $0x50] sm:$0xf0] %vm907, %v963
      %1002 = vst.msk [vmem:[%s990 + $0x58] sm:$0xf] %vm888, %v963
      %1003 = vst.msk [vmem:[%s990 + $0x60] sm:$0xf0] %vm907, %v964
      %1004 = vst.msk [vmem:[%s990 + $0x68] sm:$0xf] %vm888, %v964
      %1005 = vst.msk [vmem:[%s990 + $0x70] sm:$0xf0] %vm907, %v965
      %1006 = vst.msk [vmem:[%s990 + $0x78] sm:$0xf] %vm888, %v965
      %1007 = vst.msk [vmem:[%s990 + $0x80] sm:$0xf0] %vm907, %v966
      %1008 = vst.msk [vmem:[%s990 + $0x88] sm:$0xf] %vm888, %v966
      %1009 = vst.msk [vmem:[%s990 + $0x90] sm:$0xf0] %vm907, %v967
      %1010 = vst.msk [vmem:[%s990 + $0x98] sm:$0xf] %vm888, %v967
      %1011 = vst.msk [vmem:[%s990 + $0xa0] sm:$0xf0] %vm907, %v968
      %1012 = vst.msk [vmem:[%s990 + $0xa8] sm:$0xf] %vm888, %v968
      %1013 = vst.msk [vmem:[%s990 + $0xb0] sm:$0xf0] %vm907, %v969
      %1014 = vst.msk [vmem:[%s990 + $0xb8] sm:$0xf] %vm888, %v969
      %1015 = vst.msk [vmem:[%s990 + $0xc0] sm:$0xf0] %vm907, %v970
      %1016 = vst.msk [vmem:[%s990 + $0xc8] sm:$0xf] %vm888, %v970
      %1017 = vst.msk [vmem:[%s990 + $0xd0] sm:$0xf0] %vm907, %v971
      %1018 = vst.msk [vmem:[%s990 + $0xd8] sm:$0xf] %vm888, %v971
      %1019 = vst.msk [vmem:[%s990 + $0xe0] sm:$0xf0] %vm907, %v972
      %1020 = vst.msk [vmem:[%s990 + $0xe8] sm:$0xf] %vm888, %v972
      %1021 = vst.msk [vmem:[%s990 + $0xf0] sm:$0xf0] %vm907, %v973
      %1022 = vst.msk [vmem:[%s990 + $0xf8] sm:$0xf] %vm888, %v973
      %v1023 = vld [vmem:[#allocation2] sm:$0xf8]
      %v1024 = vld [vmem:[#allocation2 + $0x8] sm:$0xf]
      %v1025 = vld [vmem:[#allocation2 + $0x10] sm:$0xf8]
      %v1026 = vld [vmem:[#allocation2 + $0x18] sm:$0xf]
      %v1027 = vld [vmem:[#allocation2 + $0x20] sm:$0xf8]
      %v1028 = vld [vmem:[#allocation2 + $0x28] sm:$0xf]
      %v1029 = vld [vmem:[#allocation2 + $0x30] sm:$0xf8]
      %v1030 = vld [vmem:[#allocation2 + $0x38] sm:$0xf]
      %v1031 = vld [vmem:[#allocation2 + $0x40] sm:$0xf8]
      %v1032 = vld [vmem:[#allocation2 + $0x48] sm:$0xf]
      %v1033 = vld [vmem:[#allocation2 + $0x50] sm:$0xf8]
      %v1034 = vld [vmem:[#allocation2 + $0x58] sm:$0xf]
      %v1035 = vld [vmem:[#allocation2 + $0x60] sm:$0xf8]
      %v1036 = vld [vmem:[#allocation2 + $0x68] sm:$0xf]
      %v1037 = vld [vmem:[#allocation2 + $0x70] sm:$0xf8]
      %v1038 = vld [vmem:[#allocation2 + $0x78] sm:$0xf]
      %v1039 = vld [vmem:[#allocation2 + $0x80] sm:$0xf8]
      %v1040 = vld [vmem:[#allocation2 + $0x88] sm:$0xf]
      %v1041 = vld [vmem:[#allocation2 + $0x90] sm:$0xf8]
      %v1042 = vld [vmem:[#allocation2 + $0x98] sm:$0xf]
      %v1043 = vld [vmem:[#allocation2 + $0xa0] sm:$0xf8]
      %v1044 = vld [vmem:[#allocation2 + $0xa8] sm:$0xf]
      %v1045 = vld [vmem:[#allocation2 + $0xb0] sm:$0xf8]
      %v1046 = vld [vmem:[#allocation2 + $0xb8] sm:$0xf]
      %v1047 = vld [vmem:[#allocation2 + $0xc0] sm:$0xf8]
      %v1048 = vld [vmem:[#allocation2 + $0xc8] sm:$0xf]
      %v1049 = vld [vmem:[#allocation2 + $0xd0] sm:$0xf8]
      %v1050 = vld [vmem:[#allocation2 + $0xd8] sm:$0xf]
      %v1051 = vld [vmem:[#allocation2 + $0xe0] sm:$0xf8]
      %v1052 = vld [vmem:[#allocation2 + $0xe8] sm:$0xf]
      %v1053 = vld [vmem:[#allocation2 + $0xf0] sm:$0xf8]
      %v1054 = vld [vmem:[#allocation2 + $0xf8] sm:$0xf]
      %vm1055 = vsmask.f32 4352
      %v1057 = vshrl.u32 %v1023, 16
      %v1059 = vrot.slane %v1057, 3
      %v1060 = vshll.u32 %v1023, 16
      %v1062 = vrot.slane %v1060, 4
      %v1063 = vor.u32 %v1059, %v1062
      %v1065 = vshrl.u32 %v1024, 16
      %v1067 = vrot.slane %v1065, 3
      %v1068 = vshll.u32 %v1024, 16
      %v1070 = vrot.slane %v1068, 4
      %v1071 = vor.u32 %v1067, %v1070
      %v1072 = vsel %vm1055, %v1063, %v1071
      %v1074 = vshrl.u32 %v1025, 16
      %v1076 = vrot.slane %v1074, 3
      %v1077 = vshll.u32 %v1025, 16
      %v1079 = vrot.slane %v1077, 4
      %v1080 = vor.u32 %v1076, %v1079
      %v1082 = vshrl.u32 %v1026, 16
      %v1084 = vrot.slane %v1082, 3
      %v1085 = vshll.u32 %v1026, 16
      %v1087 = vrot.slane %v1085, 4
      %v1088 = vor.u32 %v1084, %v1087
      %v1089 = vsel %vm1055, %v1080, %v1088
      %v1091 = vshrl.u32 %v1027, 16
      %v1093 = vrot.slane %v1091, 3
      %v1094 = vshll.u32 %v1027, 16
      %v1096 = vrot.slane %v1094, 4
      %v1097 = vor.u32 %v1093, %v1096
      %v1099 = vshrl.u32 %v1028, 16
      %v1101 = vrot.slane %v1099, 3
      %v1102 = vshll.u32 %v1028, 16
      %v1104 = vrot.slane %v1102, 4
      %v1105 = vor.u32 %v1101, %v1104
      %v1106 = vsel %vm1055, %v1097, %v1105
      %v1108 = vshrl.u32 %v1029, 16
      %v1110 = vrot.slane %v1108, 3
      %v1111 = vshll.u32 %v1029, 16
      %v1113 = vrot.slane %v1111, 4
      %v1114 = vor.u32 %v1110, %v1113
      %v1116 = vshrl.u32 %v1030, 16
      %v1118 = vrot.slane %v1116, 3
      %v1119 = vshll.u32 %v1030, 16
      %v1121 = vrot.slane %v1119, 4
      %v1122 = vor.u32 %v1118, %v1121
      %v1123 = vsel %vm1055, %v1114, %v1122
      %v1125 = vshrl.u32 %v1031, 16
      %v1127 = vrot.slane %v1125, 3
      %v1128 = vshll.u32 %v1031, 16
      %v1130 = vrot.slane %v1128, 4
      %v1131 = vor.u32 %v1127, %v1130
      %v1133 = vshrl.u32 %v1032, 16
      %v1135 = vrot.slane %v1133, 3
      %v1136 = vshll.u32 %v1032, 16
      %v1138 = vrot.slane %v1136, 4
      %v1139 = vor.u32 %v1135, %v1138
      %v1140 = vsel %vm1055, %v1131, %v1139
      %v1142 = vshrl.u32 %v1033, 16
      %v1144 = vrot.slane %v1142, 3
      %v1145 = vshll.u32 %v1033, 16
      %v1147 = vrot.slane %v1145, 4
      %v1148 = vor.u32 %v1144, %v1147
      %v1150 = vshrl.u32 %v1034, 16
      %v1152 = vrot.slane %v1150, 3
      %v1153 = vshll.u32 %v1034, 16
      %v1155 = vrot.slane %v1153, 4
      %v1156 = vor.u32 %v1152, %v1155
      %v1157 = vsel %vm1055, %v1148, %v1156
      %v1159 = vshrl.u32 %v1035, 16
      %v1161 = vrot.slane %v1159, 3
      %v1162 = vshll.u32 %v1035, 16
      %v1164 = vrot.slane %v1162, 4
      %v1165 = vor.u32 %v1161, %v1164
      %v1167 = vshrl.u32 %v1036, 16
      %v1169 = vrot.slane %v1167, 3
      %v1170 = vshll.u32 %v1036, 16
      %v1172 = vrot.slane %v1170, 4
      %v1173 = vor.u32 %v1169, %v1172
      %v1174 = vsel %vm1055, %v1165, %v1173
      %v1176 = vshrl.u32 %v1037, 16
      %v1178 = vrot.slane %v1176, 3
      %v1179 = vshll.u32 %v1037, 16
      %v1181 = vrot.slane %v1179, 4
      %v1182 = vor.u32 %v1178, %v1181
      %v1184 = vshrl.u32 %v1038, 16
      %v1186 = vrot.slane %v1184, 3
      %v1187 = vshll.u32 %v1038, 16
      %v1189 = vrot.slane %v1187, 4
      %v1190 = vor.u32 %v1186, %v1189
      %v1191 = vsel %vm1055, %v1182, %v1190
      %v1193 = vshrl.u32 %v1039, 16
      %v1195 = vrot.slane %v1193, 3
      %v1196 = vshll.u32 %v1039, 16
      %v1198 = vrot.slane %v1196, 4
      %v1199 = vor.u32 %v1195, %v1198
      %v1201 = vshrl.u32 %v1040, 16
      %v1203 = vrot.slane %v1201, 3
      %v1204 = vshll.u32 %v1040, 16
      %v1206 = vrot.slane %v1204, 4
      %v1207 = vor.u32 %v1203, %v1206
      %v1208 = vsel %vm1055, %v1199, %v1207
      %v1210 = vshrl.u32 %v1041, 16
      %v1212 = vrot.slane %v1210, 3
      %v1213 = vshll.u32 %v1041, 16
      %v1215 = vrot.slane %v1213, 4
      %v1216 = vor.u32 %v1212, %v1215
      %v1218 = vshrl.u32 %v1042, 16
      %v1220 = vrot.slane %v1218, 3
      %v1221 = vshll.u32 %v1042, 16
      %v1223 = vrot.slane %v1221, 4
      %v1224 = vor.u32 %v1220, %v1223
      %v1225 = vsel %vm1055, %v1216, %v1224
      %v1227 = vshrl.u32 %v1043, 16
      %v1229 = vrot.slane %v1227, 3
      %v1230 = vshll.u32 %v1043, 16
      %v1232 = vrot.slane %v1230, 4
      %v1233 = vor.u32 %v1229, %v1232
      %v1235 = vshrl.u32 %v1044, 16
      %v1237 = vrot.slane %v1235, 3
      %v1238 = vshll.u32 %v1044, 16
      %v1240 = vrot.slane %v1238, 4
      %v1241 = vor.u32 %v1237, %v1240
      %v1242 = vsel %vm1055, %v1233, %v1241
      %v1244 = vshrl.u32 %v1045, 16
      %v1246 = vrot.slane %v1244, 3
      %v1247 = vshll.u32 %v1045, 16
      %v1249 = vrot.slane %v1247, 4
      %v1250 = vor.u32 %v1246, %v1249
      %v1252 = vshrl.u32 %v1046, 16
      %v1254 = vrot.slane %v1252, 3
      %v1255 = vshll.u32 %v1046, 16
      %v1257 = vrot.slane %v1255, 4
      %v1258 = vor.u32 %v1254, %v1257
      %v1259 = vsel %vm1055, %v1250, %v1258
      %v1261 = vshrl.u32 %v1047, 16
      %v1263 = vrot.slane %v1261, 3
      %v1264 = vshll.u32 %v1047, 16
      %v1266 = vrot.slane %v1264, 4
      %v1267 = vor.u32 %v1263, %v1266
      %v1269 = vshrl.u32 %v1048, 16
      %v1271 = vrot.slane %v1269, 3
      %v1272 = vshll.u32 %v1048, 16
      %v1274 = vrot.slane %v1272, 4
      %v1275 = vor.u32 %v1271, %v1274
      %v1276 = vsel %vm1055, %v1267, %v1275
      %v1278 = vshrl.u32 %v1049, 16
      %v1280 = vrot.slane %v1278, 3
      %v1281 = vshll.u32 %v1049, 16
      %v1283 = vrot.slane %v1281, 4
      %v1284 = vor.u32 %v1280, %v1283
      %v1286 = vshrl.u32 %v1050, 16
      %v1288 = vrot.slane %v1286, 3
      %v1289 = vshll.u32 %v1050, 16
      %v1291 = vrot.slane %v1289, 4
      %v1292 = vor.u32 %v1288, %v1291
      %v1293 = vsel %vm1055, %v1284, %v1292
      %v1295 = vshrl.u32 %v1051, 16
      %v1297 = vrot.slane %v1295, 3
      %v1298 = vshll.u32 %v1051, 16
      %v1300 = vrot.slane %v1298, 4
      %v1301 = vor.u32 %v1297, %v1300
      %v1303 = vshrl.u32 %v1052, 16
      %v1305 = vrot.slane %v1303, 3
      %v1306 = vshll.u32 %v1052, 16
      %v1308 = vrot.slane %v1306, 4
      %v1309 = vor.u32 %v1305, %v1308
      %v1310 = vsel %vm1055, %v1301, %v1309
      %v1312 = vshrl.u32 %v1053, 16
      %v1314 = vrot.slane %v1312, 3
      %v1315 = vshll.u32 %v1053, 16
      %v1317 = vrot.slane %v1315, 4
      %v1318 = vor.u32 %v1314, %v1317
      %v1320 = vshrl.u32 %v1054, 16
      %v1322 = vrot.slane %v1320, 3
      %v1323 = vshll.u32 %v1054, 16
      %v1325 = vrot.slane %v1323, 4
      %v1326 = vor.u32 %v1322, %v1325
      %v1327 = vsel %vm1055, %v1318, %v1326
      %1344 = vst.msk [vmem:[#allocation3] sm:$0xff] %vm882, %v1072
      %1345 = vst.msk [vmem:[#allocation3 + $0x8] sm:$0xff] %vm882, %v1089
      %1346 = vst.msk [vmem:[#allocation3 + $0x10] sm:$0xff] %vm882, %v1106
      %1347 = vst.msk [vmem:[#allocation3 + $0x18] sm:$0xff] %vm882, %v1123
      %1348 = vst.msk [vmem:[#allocation3 + $0x20] sm:$0xff] %vm882, %v1140
      %1349 = vst.msk [vmem:[#allocation3 + $0x28] sm:$0xff] %vm882, %v1157
      %1350 = vst.msk [vmem:[#allocation3 + $0x30] sm:$0xff] %vm882, %v1174
      %1351 = vst.msk [vmem:[#allocation3 + $0x38] sm:$0xff] %vm882, %v1191
      %1352 = vst.msk [vmem:[#allocation3 + $0x40] sm:$0xff] %vm882, %v1208
      %1353 = vst.msk [vmem:[#allocation3 + $0x48] sm:$0xff] %vm882, %v1225
      %1354 = vst.msk [vmem:[#allocation3 + $0x50] sm:$0xff] %vm882, %v1242
      %1355 = vst.msk [vmem:[#allocation3 + $0x58] sm:$0xff] %vm882, %v1259
      %1356 = vst.msk [vmem:[#allocation3 + $0x60] sm:$0xff] %vm882, %v1276
      %1357 = vst.msk [vmem:[#allocation3 + $0x68] sm:$0xff] %vm882, %v1293
      %1358 = vst.msk [vmem:[#allocation3 + $0x70] sm:$0xff] %vm882, %v1310
      %1359 = vst.msk [vmem:[#allocation3 + $0x78] sm:$0xff] %vm882, %v1327
      %v1360 = vld [vmem:[#allocation2] sm:$0xf0]
      %v1361 = vld [vmem:[#allocation2 + $0x8] sm:$0xf]
      %v1362 = vld [vmem:[#allocation2 + $0x10] sm:$0xf0]
      %v1363 = vld [vmem:[#allocation2 + $0x18] sm:$0xf]
      %v1364 = vld [vmem:[#allocation2 + $0x20] sm:$0xf0]
      %v1365 = vld [vmem:[#allocation2 + $0x28] sm:$0xf]
      %v1366 = vld [vmem:[#allocation2 + $0x30] sm:$0xf0]
      %v1367 = vld [vmem:[#allocation2 + $0x38] sm:$0xf]
      %v1368 = vld [vmem:[#allocation2 + $0x40] sm:$0xf0]
      %v1369 = vld [vmem:[#allocation2 + $0x48] sm:$0xf]
      %v1370 = vld [vmem:[#allocation2 + $0x50] sm:$0xf0]
      %v1371 = vld [vmem:[#allocation2 + $0x58] sm:$0xf]
      %v1372 = vld [vmem:[#allocation2 + $0x60] sm:$0xf0]
      %v1373 = vld [vmem:[#allocation2 + $0x68] sm:$0xf]
      %v1374 = vld [vmem:[#allocation2 + $0x70] sm:$0xf0]
      %v1375 = vld [vmem:[#allocation2 + $0x78] sm:$0xf]
      %v1376 = vld [vmem:[#allocation2 + $0x80] sm:$0xf0]
      %v1377 = vld [vmem:[#allocation2 + $0x88] sm:$0xf]
      %v1378 = vld [vmem:[#allocation2 + $0x90] sm:$0xf0]
      %v1379 = vld [vmem:[#allocation2 + $0x98] sm:$0xf]
      %v1380 = vld [vmem:[#allocation2 + $0xa0] sm:$0xf0]
      %v1381 = vld [vmem:[#allocation2 + $0xa8] sm:$0xf]
      %v1382 = vld [vmem:[#allocation2 + $0xb0] sm:$0xf0]
      %v1383 = vld [vmem:[#allocation2 + $0xb8] sm:$0xf]
      %v1384 = vld [vmem:[#allocation2 + $0xc0] sm:$0xf0]
      %v1385 = vld [vmem:[#allocation2 + $0xc8] sm:$0xf]
      %v1386 = vld [vmem:[#allocation2 + $0xd0] sm:$0xf0]
      %v1387 = vld [vmem:[#allocation2 + $0xd8] sm:$0xf]
      %v1388 = vld [vmem:[#allocation2 + $0xe0] sm:$0xf0]
      %v1389 = vld [vmem:[#allocation2 + $0xe8] sm:$0xf]
      %v1390 = vld [vmem:[#allocation2 + $0xf0] sm:$0xf0]
      %v1391 = vld [vmem:[#allocation2 + $0xf8] sm:$0xf]
      %vm1424 = vcmask 1043456
      %v1425 = vrot.slane %v1360, 4
      %v1426 = vrot.slane %v1361, 4
      %v1427 = vsel %vm1424, %v1425, %v1426
      %v1428 = vrot.slane %v1362, 4
      %v1429 = vrot.slane %v1363, 4
      %v1430 = vsel %vm1424, %v1428, %v1429
      %v1431 = vrot.slane %v1364, 4
      %v1432 = vrot.slane %v1365, 4
      %v1433 = vsel %vm1424, %v1431, %v1432
      %v1434 = vrot.slane %v1366, 4
      %v1435 = vrot.slane %v1367, 4
      %v1436 = vsel %vm1424, %v1434, %v1435
      %v1437 = vrot.slane %v1368, 4
      %v1438 = vrot.slane %v1369, 4
      %v1439 = vsel %vm1424, %v1437, %v1438
      %v1440 = vrot.slane %v1370, 4
      %v1441 = vrot.slane %v1371, 4
      %v1442 = vsel %vm1424, %v1440, %v1441
      %v1443 = vrot.slane %v1372, 4
      %v1444 = vrot.slane %v1373, 4
      %v1445 = vsel %vm1424, %v1443, %v1444
      %v1446 = vrot.slane %v1374, 4
      %v1447 = vrot.slane %v1375, 4
      %v1448 = vsel %vm1424, %v1446, %v1447
      %v1449 = vrot.slane %v1376, 4
      %v1450 = vrot.slane %v1377, 4
      %v1451 = vsel %vm1424, %v1449, %v1450
      %v1452 = vrot.slane %v1378, 4
      %v1453 = vrot.slane %v1379, 4
      %v1454 = vsel %vm1424, %v1452, %v1453
      %v1455 = vrot.slane %v1380, 4
      %v1456 = vrot.slane %v1381, 4
      %v1457 = vsel %vm1424, %v1455, %v1456
      %v1458 = vrot.slane %v1382, 4
      %v1459 = vrot.slane %v1383, 4
      %v1460 = vsel %vm1424, %v1458, %v1459
      %v1461 = vrot.slane %v1384, 4
      %v1462 = vrot.slane %v1385, 4
      %v1463 = vsel %vm1424, %v1461, %v1462
      %v1464 = vrot.slane %v1386, 4
      %v1465 = vrot.slane %v1387, 4
      %v1466 = vsel %vm1424, %v1464, %v1465
      %v1467 = vrot.slane %v1388, 4
      %v1468 = vrot.slane %v1389, 4
      %v1469 = vsel %vm1424, %v1467, %v1468
      %v1470 = vrot.slane %v1390, 4
      %v1471 = vrot.slane %v1391, 4
      %v1472 = vsel %vm1424, %v1470, %v1471
      %1473 = vrot.lane.b32.xlu0 %v1427, 8
      %v1474 = vpop.permute.xlu0 %1473
      %1475 = vrot.lane.b32.xlu0 %v1430, 8
      %v1476 = vpop.permute.xlu0 %1475
      %1477 = vrot.lane.b32.xlu0 %v1433, 8
      %v1478 = vpop.permute.xlu0 %1477
      %1479 = vrot.lane.b32.xlu0 %v1436, 8
      %v1480 = vpop.permute.xlu0 %1479
      %1481 = vrot.lane.b32.xlu0 %v1439, 8
      %v1482 = vpop.permute.xlu0 %1481
      %1483 = vrot.lane.b32.xlu0 %v1442, 8
      %v1484 = vpop.permute.xlu0 %1483
      %1485 = vrot.lane.b32.xlu0 %v1445, 8
      %v1486 = vpop.permute.xlu0 %1485
      %1487 = vrot.lane.b32.xlu0 %v1448, 8
      %v1488 = vpop.permute.xlu0 %1487
      %1489 = vrot.lane.b32.xlu0 %v1451, 8
      %v1490 = vpop.permute.xlu0 %1489
      %1491 = vrot.lane.b32.xlu0 %v1454, 8
      %v1492 = vpop.permute.xlu0 %1491
      %1493 = vrot.lane.b32.xlu0 %v1457, 8
      %v1494 = vpop.permute.xlu0 %1493
      %1495 = vrot.lane.b32.xlu0 %v1460, 8
      %v1496 = vpop.permute.xlu0 %1495
      %1497 = vrot.lane.b32.xlu0 %v1463, 8
      %v1498 = vpop.permute.xlu0 %1497
      %1499 = vrot.lane.b32.xlu0 %v1466, 8
      %v1500 = vpop.permute.xlu0 %1499
      %1501 = vrot.lane.b32.xlu0 %v1469, 8
      %v1502 = vpop.permute.xlu0 %1501
      %1503 = vrot.lane.b32.xlu0 %v1472, 8
      %v1504 = vpop.permute.xlu0 %1503
      %vm1521 = vcmask 130112
      %1522 = vst.msk [vmem:[#allocation3] sm:$0xff] %vm1521, %v1474
      %1523 = vst.msk [vmem:[#allocation3 + $0x8] sm:$0xff] %vm1521, %v1476
      %1524 = vst.msk [vmem:[#allocation3 + $0x10] sm:$0xff] %vm1521, %v1478
      %1525 = vst.msk [vmem:[#allocation3 + $0x18] sm:$0xff] %vm1521, %v1480
      %1526 = vst.msk [vmem:[#allocation3 + $0x20] sm:$0xff] %vm1521, %v1482
      %1527 = vst.msk [vmem:[#allocation3 + $0x28] sm:$0xff] %vm1521, %v1484
      %1528 = vst.msk [vmem:[#allocation3 + $0x30] sm:$0xff] %vm1521, %v1486
      %1529 = vst.msk [vmem:[#allocation3 + $0x38] sm:$0xff] %vm1521, %v1488
      %1530 = vst.msk [vmem:[#allocation3 + $0x40] sm:$0xff] %vm1521, %v1490
      %1531 = vst.msk [vmem:[#allocation3 + $0x48] sm:$0xff] %vm1521, %v1492
      %1532 = vst.msk [vmem:[#allocation3 + $0x50] sm:$0xff] %vm1521, %v1494
      %1533 = vst.msk [vmem:[#allocation3 + $0x58] sm:$0xff] %vm1521, %v1496
      %1534 = vst.msk [vmem:[#allocation3 + $0x60] sm:$0xff] %vm1521, %v1498
      %1535 = vst.msk [vmem:[#allocation3 + $0x68] sm:$0xff] %vm1521, %v1500
      %1536 = vst.msk [vmem:[#allocation3 + $0x70] sm:$0xff] %vm1521, %v1502
      %1537 = vst.msk [vmem:[#allocation3 + $0x78] sm:$0xff] %vm1521, %v1504
      %v1538 = vld [vmem:[#allocation2] sm:$0xf0]
      %v1539 = vld [vmem:[#allocation2 + $0x8] sm:$0x1f]
      %v1540 = vld [vmem:[#allocation2 + $0x10] sm:$0xf0]
      %v1541 = vld [vmem:[#allocation2 + $0x18] sm:$0x1f]
      %v1542 = vld [vmem:[#allocation2 + $0x20] sm:$0xf0]
      %v1543 = vld [vmem:[#allocation2 + $0x28] sm:$0x1f]
      %v1544 = vld [vmem:[#allocation2 + $0x30] sm:$0xf0]
      %v1545 = vld [vmem:[#allocation2 + $0x38] sm:$0x1f]
      %v1546 = vld [vmem:[#allocation2 + $0x40] sm:$0xf0]
      %v1547 = vld [vmem:[#allocation2 + $0x48] sm:$0x1f]
      %v1548 = vld [vmem:[#allocation2 + $0x50] sm:$0xf0]
      %v1549 = vld [vmem:[#allocation2 + $0x58] sm:$0x1f]
      %v1550 = vld [vmem:[#allocation2 + $0x60] sm:$0xf0]
      %v1551 = vld [vmem:[#allocation2 + $0x68] sm:$0x1f]
      %v1552 = vld [vmem:[#allocation2 + $0x70] sm:$0xf0]
      %v1553 = vld [vmem:[#allocation2 + $0x78] sm:$0x1f]
      %v1554 = vld [vmem:[#allocation2 + $0x80] sm:$0xf0]
      %v1555 = vld [vmem:[#allocation2 + $0x88] sm:$0x1f]
      %v1556 = vld [vmem:[#allocation2 + $0x90] sm:$0xf0]
      %v1557 = vld [vmem:[#allocation2 + $0x98] sm:$0x1f]
      %v1558 = vld [vmem:[#allocation2 + $0xa0] sm:$0xf0]
      %v1559 = vld [vmem:[#allocation2 + $0xa8] sm:$0x1f]
      %v1560 = vld [vmem:[#allocation2 + $0xb0] sm:$0xf0]
      %v1561 = vld [vmem:[#allocation2 + $0xb8] sm:$0x1f]
      %v1562 = vld [vmem:[#allocation2 + $0xc0] sm:$0xf0]
      %v1563 = vld [vmem:[#allocation2 + $0xc8] sm:$0x1f]
      %v1564 = vld [vmem:[#allocation2 + $0xd0] sm:$0xf0]
      %v1565 = vld [vmem:[#allocation2 + $0xd8] sm:$0x1f]
      %v1566 = vld [vmem:[#allocation2 + $0xe0] sm:$0xf0]
      %v1567 = vld [vmem:[#allocation2 + $0xe8] sm:$0x1f]
      %v1568 = vld [vmem:[#allocation2 + $0xf0] sm:$0xf0]
      %v1569 = vld [vmem:[#allocation2 + $0xf8] sm:$0x1f]
      %vm1570 = vsmask.f32 3328
      %v1572 = vshrl.u32 %v1538, 16
      %v1574 = vrot.slane %v1572, 4
      %v1575 = vshll.u32 %v1538, 16
      %v1577 = vrot.slane %v1575, 5
      %v1578 = vor.u32 %v1574, %v1577
      %v1580 = vshrl.u32 %v1539, 16
      %v1582 = vrot.slane %v1580, 4
      %v1583 = vshll.u32 %v1539, 16
      %v1585 = vrot.slane %v1583, 5
      %v1586 = vor.u32 %v1582, %v1585
      %v1587 = vsel %vm1570, %v1578, %v1586
      %v1589 = vshrl.u32 %v1540, 16
      %v1591 = vrot.slane %v1589, 4
      %v1592 = vshll.u32 %v1540, 16
      %v1594 = vrot.slane %v1592, 5
      %v1595 = vor.u32 %v1591, %v1594
      %v1597 = vshrl.u32 %v1541, 16
      %v1599 = vrot.slane %v1597, 4
      %v1600 = vshll.u32 %v1541, 16
      %v1602 = vrot.slane %v1600, 5
      %v1603 = vor.u32 %v1599, %v1602
      %v1604 = vsel %vm1570, %v1595, %v1603
      %v1606 = vshrl.u32 %v1542, 16
      %v1608 = vrot.slane %v1606, 4
      %v1609 = vshll.u32 %v1542, 16
      %v1611 = vrot.slane %v1609, 5
      %v1612 = vor.u32 %v1608, %v1611
      %v1614 = vshrl.u32 %v1543, 16
      %v1616 = vrot.slane %v1614, 4
      %v1617 = vshll.u32 %v1543, 16
      %v1619 = vrot.slane %v1617, 5
      %v1620 = vor.u32 %v1616, %v1619
      %v1621 = vsel %vm1570, %v1612, %v1620
      %v1623 = vshrl.u32 %v1544, 16
      %v1625 = vrot.slane %v1623, 4
      %v1626 = vshll.u32 %v1544, 16
      %v1628 = vrot.slane %v1626, 5
      %v1629 = vor.u32 %v1625, %v1628
      %v1631 = vshrl.u32 %v1545, 16
      %v1633 = vrot.slane %v1631, 4
      %v1634 = vshll.u32 %v1545, 16
      %v1636 = vrot.slane %v1634, 5
      %v1637 = vor.u32 %v1633, %v1636
      %v1638 = vsel %vm1570, %v1629, %v1637
      %v1640 = vshrl.u32 %v1546, 16
      %v1642 = vrot.slane %v1640, 4
      %v1643 = vshll.u32 %v1546, 16
      %v1645 = vrot.slane %v1643, 5
      %v1646 = vor.u32 %v1642, %v1645
      %v1648 = vshrl.u32 %v1547, 16
      %v1650 = vrot.slane %v1648, 4
      %v1651 = vshll.u32 %v1547, 16
      %v1653 = vrot.slane %v1651, 5
      %v1654 = vor.u32 %v1650, %v1653
      %v1655 = vsel %vm1570, %v1646, %v1654
      %v1657 = vshrl.u32 %v1548, 16
      %v1659 = vrot.slane %v1657, 4
      %v1660 = vshll.u32 %v1548, 16
      %v1662 = vrot.slane %v1660, 5
      %v1663 = vor.u32 %v1659, %v1662
      %v1665 = vshrl.u32 %v1549, 16
      %v1667 = vrot.slane %v1665, 4
      %v1668 = vshll.u32 %v1549, 16
      %v1670 = vrot.slane %v1668, 5
      %v1671 = vor.u32 %v1667, %v1670
      %v1672 = vsel %vm1570, %v1663, %v1671
      %v1674 = vshrl.u32 %v1550, 16
      %v1676 = vrot.slane %v1674, 4
      %v1677 = vshll.u32 %v1550, 16
      %v1679 = vrot.slane %v1677, 5
      %v1680 = vor.u32 %v1676, %v1679
      %v1682 = vshrl.u32 %v1551, 16
      %v1684 = vrot.slane %v1682, 4
      %v1685 = vshll.u32 %v1551, 16
      %v1687 = vrot.slane %v1685, 5
      %v1688 = vor.u32 %v1684, %v1687
      %v1689 = vsel %vm1570, %v1680, %v1688
      %v1691 = vshrl.u32 %v1552, 16
      %v1693 = vrot.slane %v1691, 4
      %v1694 = vshll.u32 %v1552, 16
      %v1696 = vrot.slane %v1694, 5
      %v1697 = vor.u32 %v1693, %v1696
      %v1699 = vshrl.u32 %v1553, 16
      %v1701 = vrot.slane %v1699, 4
      %v1702 = vshll.u32 %v1553, 16
      %v1704 = vrot.slane %v1702, 5
      %v1705 = vor.u32 %v1701, %v1704
      %v1706 = vsel %vm1570, %v1697, %v1705
      %v1708 = vshrl.u32 %v1554, 16
      %v1710 = vrot.slane %v1708, 4
      %v1711 = vshll.u32 %v1554, 16
      %v1713 = vrot.slane %v1711, 5
      %v1714 = vor.u32 %v1710, %v1713
      %v1716 = vshrl.u32 %v1555, 16
      %v1718 = vrot.slane %v1716, 4
      %v1719 = vshll.u32 %v1555, 16
      %v1721 = vrot.slane %v1719, 5
      %v1722 = vor.u32 %v1718, %v1721
      %v1723 = vsel %vm1570, %v1714, %v1722
      %v1725 = vshrl.u32 %v1556, 16
      %v1727 = vrot.slane %v1725, 4
      %v1728 = vshll.u32 %v1556, 16
      %v1730 = vrot.slane %v1728, 5
      %v1731 = vor.u32 %v1727, %v1730
      %v1733 = vshrl.u32 %v1557, 16
      %v1735 = vrot.slane %v1733, 4
      %v1736 = vshll.u32 %v1557, 16
      %v1738 = vrot.slane %v1736, 5
      %v1739 = vor.u32 %v1735, %v1738
      %v1740 = vsel %vm1570, %v1731, %v1739
      %v1742 = vshrl.u32 %v1558, 16
      %v1744 = vrot.slane %v1742, 4
      %v1745 = vshll.u32 %v1558, 16
      %v1747 = vrot.slane %v1745, 5
      %v1748 = vor.u32 %v1744, %v1747
      %v1750 = vshrl.u32 %v1559, 16
      %v1752 = vrot.slane %v1750, 4
      %v1753 = vshll.u32 %v1559, 16
      %v1755 = vrot.slane %v1753, 5
      %v1756 = vor.u32 %v1752, %v1755
      %v1757 = vsel %vm1570, %v1748, %v1756
      %v1759 = vshrl.u32 %v1560, 16
      %v1761 = vrot.slane %v1759, 4
      %v1762 = vshll.u32 %v1560, 16
      %v1764 = vrot.slane %v1762, 5
      %v1765 = vor.u32 %v1761, %v1764
      %v1767 = vshrl.u32 %v1561, 16
      %v1769 = vrot.slane %v1767, 4
      %v1770 = vshll.u32 %v1561, 16
      %v1772 = vrot.slane %v1770, 5
      %v1773 = vor.u32 %v1769, %v1772
      %v1774 = vsel %vm1570, %v1765, %v1773
      %v1776 = vshrl.u32 %v1562, 16
      %v1778 = vrot.slane %v1776, 4
      %v1779 = vshll.u32 %v1562, 16
      %v1781 = vrot.slane %v1779, 5
      %v1782 = vor.u32 %v1778, %v1781
      %v1784 = vshrl.u32 %v1563, 16
      %v1786 = vrot.slane %v1784, 4
      %v1787 = vshll.u32 %v1563, 16
      %v1789 = vrot.slane %v1787, 5
      %v1790 = vor.u32 %v1786, %v1789
      %v1791 = vsel %vm1570, %v1782, %v1790
      %v1793 = vshrl.u32 %v1564, 16
      %v1795 = vrot.slane %v1793, 4
      %v1796 = vshll.u32 %v1564, 16
      %v1798 = vrot.slane %v1796, 5
      %v1799 = vor.u32 %v1795, %v1798
      %v1801 = vshrl.u32 %v1565, 16
      %v1803 = vrot.slane %v1801, 4
      %v1804 = vshll.u32 %v1565, 16
      %v1806 = vrot.slane %v1804, 5
      %v1807 = vor.u32 %v1803, %v1806
      %v1808 = vsel %vm1570, %v1799, %v1807
      %v1810 = vshrl.u32 %v1566, 16
      %v1812 = vrot.slane %v1810, 4
      %v1813 = vshll.u32 %v1566, 16
      %v1815 = vrot.slane %v1813, 5
      %v1816 = vor.u32 %v1812, %v1815
      %v1818 = vshrl.u32 %v1567, 16
      %v1820 = vrot.slane %v1818, 4
      %v1821 = vshll.u32 %v1567, 16
      %v1823 = vrot.slane %v1821, 5
      %v1824 = vor.u32 %v1820, %v1823
      %v1825 = vsel %vm1570, %v1816, %v1824
      %v1827 = vshrl.u32 %v1568, 16
      %v1829 = vrot.slane %v1827, 4
      %v1830 = vshll.u32 %v1568, 16
      %v1832 = vrot.slane %v1830, 5
      %v1833 = vor.u32 %v1829, %v1832
      %v1835 = vshrl.u32 %v1569, 16
      %v1837 = vrot.slane %v1835, 4
      %v1838 = vshll.u32 %v1569, 16
      %v1840 = vrot.slane %v1838, 5
      %v1841 = vor.u32 %v1837, %v1840
      %v1842 = vsel %vm1570, %v1833, %v1841
      %1843 = vrot.lane.b32.xlu0 %v1587, 16
      %v1844 = vpop.permute.xlu0 %1843
      %1845 = vrot.lane.b32.xlu0 %v1604, 16
      %v1846 = vpop.permute.xlu0 %1845
      %1847 = vrot.lane.b32.xlu0 %v1621, 16
      %v1848 = vpop.permute.xlu0 %1847
      %1849 = vrot.lane.b32.xlu0 %v1638, 16
      %v1850 = vpop.permute.xlu0 %1849
      %1851 = vrot.lane.b32.xlu0 %v1655, 16
      %v1852 = vpop.permute.xlu0 %1851
      %1853 = vrot.lane.b32.xlu0 %v1672, 16
      %v1854 = vpop.permute.xlu0 %1853
      %1855 = vrot.lane.b32.xlu0 %v1689, 16
      %v1856 = vpop.permute.xlu0 %1855
      %1857 = vrot.lane.b32.xlu0 %v1706, 16
      %v1858 = vpop.permute.xlu0 %1857
      %1859 = vrot.lane.b32.xlu0 %v1723, 16
      %v1860 = vpop.permute.xlu0 %1859
      %1861 = vrot.lane.b32.xlu0 %v1740, 16
      %v1862 = vpop.permute.xlu0 %1861
      %1863 = vrot.lane.b32.xlu0 %v1757, 16
      %v1864 = vpop.permute.xlu0 %1863
      %1865 = vrot.lane.b32.xlu0 %v1774, 16
      %v1866 = vpop.permute.xlu0 %1865
      %1867 = vrot.lane.b32.xlu0 %v1791, 16
      %v1868 = vpop.permute.xlu0 %1867
      %1869 = vrot.lane.b32.xlu0 %v1808, 16
      %v1870 = vpop.permute.xlu0 %1869
      %1871 = vrot.lane.b32.xlu0 %v1825, 16
      %v1872 = vpop.permute.xlu0 %1871
      %1873 = vrot.lane.b32.xlu0 %v1842, 16
      %v1874 = vpop.permute.xlu0 %1873
      %vm1891 = vcmask 195712
      %1892 = vst.msk [vmem:[#allocation3] sm:$0xff] %vm1891, %v1844
      %1893 = vst.msk [vmem:[#allocation3 + $0x8] sm:$0xff] %vm1891, %v1846
      %1894 = vst.msk [vmem:[#allocation3 + $0x10] sm:$0xff] %vm1891, %v1848
      %1895 = vst.msk [vmem:[#allocation3 + $0x18] sm:$0xff] %vm1891, %v1850
      %1896 = vst.msk [vmem:[#allocation3 + $0x20] sm:$0xff] %vm1891, %v1852
      %1897 = vst.msk [vmem:[#allocation3 + $0x28] sm:$0xff] %vm1891, %v1854
      %1898 = vst.msk [vmem:[#allocation3 + $0x30] sm:$0xff] %vm1891, %v1856
      %1899 = vst.msk [vmem:[#allocation3 + $0x38] sm:$0xff] %vm1891, %v1858
      %1900 = vst.msk [vmem:[#allocation3 + $0x40] sm:$0xff] %vm1891, %v1860
      %1901 = vst.msk [vmem:[#allocation3 + $0x48] sm:$0xff] %vm1891, %v1862
      %1902 = vst.msk [vmem:[#allocation3 + $0x50] sm:$0xff] %vm1891, %v1864
      %1903 = vst.msk [vmem:[#allocation3 + $0x58] sm:$0xff] %vm1891, %v1866
      %1904 = vst.msk [vmem:[#allocation3 + $0x60] sm:$0xff] %vm1891, %v1868
      %1905 = vst.msk [vmem:[#allocation3 + $0x68] sm:$0xff] %vm1891, %v1870
      %1906 = vst.msk [vmem:[#allocation3 + $0x70] sm:$0xff] %vm1891, %v1872
      %1907 = vst.msk [vmem:[#allocation3 + $0x78] sm:$0xff] %vm1891, %v1874
      %v1908 = vld [vmem:[%s990] sm:$0xf8]
      %v1909 = vld [vmem:[%s990 + $0x8] sm:$0xf]
      %v1910 = vld [vmem:[%s990 + $0x10] sm:$0xf8]
      %v1911 = vld [vmem:[%s990 + $0x18] sm:$0xf]
      %v1912 = vld [vmem:[%s990 + $0x20] sm:$0xf8]
      %v1913 = vld [vmem:[%s990 + $0x28] sm:$0xf]
      %v1914 = vld [vmem:[%s990 + $0x30] sm:$0xf8]
      %v1915 = vld [vmem:[%s990 + $0x38] sm:$0xf]
      %v1916 = vld [vmem:[%s990 + $0x40] sm:$0xf8]
      %v1917 = vld [vmem:[%s990 + $0x48] sm:$0xf]
      %v1918 = vld [vmem:[%s990 + $0x50] sm:$0xf8]
      %v1919 = vld [vmem:[%s990 + $0x58] sm:$0xf]
      %v1920 = vld [vmem:[%s990 + $0x60] sm:$0xf8]
      %v1921 = vld [vmem:[%s990 + $0x68] sm:$0xf]
      %v1922 = vld [vmem:[%s990 + $0x70] sm:$0xf8]
      %v1923 = vld [vmem:[%s990 + $0x78] sm:$0xf]
      %v1924 = vld [vmem:[%s990 + $0x80] sm:$0xf8]
      %v1925 = vld [vmem:[%s990 + $0x88] sm:$0xf]
      %v1926 = vld [vmem:[%s990 + $0x90] sm:$0xf8]
      %v1927 = vld [vmem:[%s990 + $0x98] sm:$0xf]
      %v1928 = vld [vmem:[%s990 + $0xa0] sm:$0xf8]
      %v1929 = vld [vmem:[%s990 + $0xa8] sm:$0xf]
      %v1930 = vld [vmem:[%s990 + $0xb0] sm:$0xf8]
      %v1931 = vld [vmem:[%s990 + $0xb8] sm:$0xf]
      %v1932 = vld [vmem:[%s990 + $0xc0] sm:$0xf8]
      %v1933 = vld [vmem:[%s990 + $0xc8] sm:$0xf]
      %v1934 = vld [vmem:[%s990 + $0xd0] sm:$0xf8]
      %v1935 = vld [vmem:[%s990 + $0xd8] sm:$0xf]
      %v1936 = vld [vmem:[%s990 + $0xe0] sm:$0xf8]
      %v1937 = vld [vmem:[%s990 + $0xe8] sm:$0xf]
      %v1938 = vld [vmem:[%s990 + $0xf0] sm:$0xf8]
      %v1939 = vld [vmem:[%s990 + $0xf8] sm:$0xf]
      %v1941 = vshrl.u32 %v1908, 16
      %v1943 = vrot.slane %v1941, 3
      %v1944 = vshll.u32 %v1908, 16
      %v1946 = vrot.slane %v1944, 4
      %v1947 = vor.u32 %v1943, %v1946
      %v1949 = vshrl.u32 %v1909, 16
      %v1951 = vrot.slane %v1949, 3
      %v1952 = vshll.u32 %v1909, 16
      %v1954 = vrot.slane %v1952, 4
      %v1955 = vor.u32 %v1951, %v1954
      %v1956 = vsel %vm1055, %v1947, %v1955
      %v1958 = vshrl.u32 %v1910, 16
      %v1960 = vrot.slane %v1958, 3
      %v1961 = vshll.u32 %v1910, 16
      %v1963 = vrot.slane %v1961, 4
      %v1964 = vor.u32 %v1960, %v1963
      %v1966 = vshrl.u32 %v1911, 16
      %v1968 = vrot.slane %v1966, 3
      %v1969 = vshll.u32 %v1911, 16
      %v1971 = vrot.slane %v1969, 4
      %v1972 = vor.u32 %v1968, %v1971
      %v1973 = vsel %vm1055, %v1964, %v1972
      %v1975 = vshrl.u32 %v1912, 16
      %v1977 = vrot.slane %v1975, 3
      %v1978 = vshll.u32 %v1912, 16
      %v1980 = vrot.slane %v1978, 4
      %v1981 = vor.u32 %v1977, %v1980
      %v1983 = vshrl.u32 %v1913, 16
      %v1985 = vrot.slane %v1983, 3
      %v1986 = vshll.u32 %v1913, 16
      %v1988 = vrot.slane %v1986, 4
      %v1989 = vor.u32 %v1985, %v1988
      %v1990 = vsel %vm1055, %v1981, %v1989
      %v1992 = vshrl.u32 %v1914, 16
      %v1994 = vrot.slane %v1992, 3
      %v1995 = vshll.u32 %v1914, 16
      %v1997 = vrot.slane %v1995, 4
      %v1998 = vor.u32 %v1994, %v1997
      %v2000 = vshrl.u32 %v1915, 16
      %v2002 = vrot.slane %v2000, 3
      %v2003 = vshll.u32 %v1915, 16
      %v2005 = vrot.slane %v2003, 4
      %v2006 = vor.u32 %v2002, %v2005
      %v2007 = vsel %vm1055, %v1998, %v2006
      %v2009 = vshrl.u32 %v1916, 16
      %v2011 = vrot.slane %v2009, 3
      %v2012 = vshll.u32 %v1916, 16
      %v2014 = vrot.slane %v2012, 4
      %v2015 = vor.u32 %v2011, %v2014
      %v2017 = vshrl.u32 %v1917, 16
      %v2019 = vrot.slane %v2017, 3
      %v2020 = vshll.u32 %v1917, 16
      %v2022 = vrot.slane %v2020, 4
      %v2023 = vor.u32 %v2019, %v2022
      %v2024 = vsel %vm1055, %v2015, %v2023
      %v2026 = vshrl.u32 %v1918, 16
      %v2028 = vrot.slane %v2026, 3
      %v2029 = vshll.u32 %v1918, 16
      %v2031 = vrot.slane %v2029, 4
      %v2032 = vor.u32 %v2028, %v2031
      %v2034 = vshrl.u32 %v1919, 16
      %v2036 = vrot.slane %v2034, 3
      %v2037 = vshll.u32 %v1919, 16
      %v2039 = vrot.slane %v2037, 4
      %v2040 = vor.u32 %v2036, %v2039
      %v2041 = vsel %vm1055, %v2032, %v2040
      %v2043 = vshrl.u32 %v1920, 16
      %v2045 = vrot.slane %v2043, 3
      %v2046 = vshll.u32 %v1920, 16
      %v2048 = vrot.slane %v2046, 4
      %v2049 = vor.u32 %v2045, %v2048
      %v2051 = vshrl.u32 %v1921, 16
      %v2053 = vrot.slane %v2051, 3
      %v2054 = vshll.u32 %v1921, 16
      %v2056 = vrot.slane %v2054, 4
      %v2057 = vor.u32 %v2053, %v2056
      %v2058 = vsel %vm1055, %v2049, %v2057
      %v2060 = vshrl.u32 %v1922, 16
      %v2062 = vrot.slane %v2060, 3
      %v2063 = vshll.u32 %v1922, 16
      %v2065 = vrot.slane %v2063, 4
      %v2066 = vor.u32 %v2062, %v2065
      %v2068 = vshrl.u32 %v1923, 16
      %v2070 = vrot.slane %v2068, 3
      %v2071 = vshll.u32 %v1923, 16
      %v2073 = vrot.slane %v2071, 4
      %v2074 = vor.u32 %v2070, %v2073
      %v2075 = vsel %vm1055, %v2066, %v2074
      %v2077 = vshrl.u32 %v1924, 16
      %v2079 = vrot.slane %v2077, 3
      %v2080 = vshll.u32 %v1924, 16
      %v2082 = vrot.slane %v2080, 4
      %v2083 = vor.u32 %v2079, %v2082
      %v2085 = vshrl.u32 %v1925, 16
      %v2087 = vrot.slane %v2085, 3
      %v2088 = vshll.u32 %v1925, 16
      %v2090 = vrot.slane %v2088, 4
      %v2091 = vor.u32 %v2087, %v2090
      %v2092 = vsel %vm1055, %v2083, %v2091
      %v2094 = vshrl.u32 %v1926, 16
      %v2096 = vrot.slane %v2094, 3
      %v2097 = vshll.u32 %v1926, 16
      %v2099 = vrot.slane %v2097, 4
      %v2100 = vor.u32 %v2096, %v2099
      %v2102 = vshrl.u32 %v1927, 16
      %v2104 = vrot.slane %v2102, 3
      %v2105 = vshll.u32 %v1927, 16
      %v2107 = vrot.slane %v2105, 4
      %v2108 = vor.u32 %v2104, %v2107
      %v2109 = vsel %vm1055, %v2100, %v2108
      %v2111 = vshrl.u32 %v1928, 16
      %v2113 = vrot.slane %v2111, 3
      %v2114 = vshll.u32 %v1928, 16
      %v2116 = vrot.slane %v2114, 4
      %v2117 = vor.u32 %v2113, %v2116
      %v2119 = vshrl.u32 %v1929, 16
      %v2121 = vrot.slane %v2119, 3
      %v2122 = vshll.u32 %v1929, 16
      %v2124 = vrot.slane %v2122, 4
      %v2125 = vor.u32 %v2121, %v2124
      %v2126 = vsel %vm1055, %v2117, %v2125
      %v2128 = vshrl.u32 %v1930, 16
      %v2130 = vrot.slane %v2128, 3
      %v2131 = vshll.u32 %v1930, 16
      %v2133 = vrot.slane %v2131, 4
      %v2134 = vor.u32 %v2130, %v2133
      %v2136 = vshrl.u32 %v1931, 16
      %v2138 = vrot.slane %v2136, 3
      %v2139 = vshll.u32 %v1931, 16
      %v2141 = vrot.slane %v2139, 4
      %v2142 = vor.u32 %v2138, %v2141
      %v2143 = vsel %vm1055, %v2134, %v2142
      %v2145 = vshrl.u32 %v1932, 16
      %v2147 = vrot.slane %v2145, 3
      %v2148 = vshll.u32 %v1932, 16
      %v2150 = vrot.slane %v2148, 4
      %v2151 = vor.u32 %v2147, %v2150
      %v2153 = vshrl.u32 %v1933, 16
      %v2155 = vrot.slane %v2153, 3
      %v2156 = vshll.u32 %v1933, 16
      %v2158 = vrot.slane %v2156, 4
      %v2159 = vor.u32 %v2155, %v2158
      %v2160 = vsel %vm1055, %v2151, %v2159
      %v2162 = vshrl.u32 %v1934, 16
      %v2164 = vrot.slane %v2162, 3
      %v2165 = vshll.u32 %v1934, 16
      %v2167 = vrot.slane %v2165, 4
      %v2168 = vor.u32 %v2164, %v2167
      %v2170 = vshrl.u32 %v1935, 16
      %v2172 = vrot.slane %v2170, 3
      %v2173 = vshll.u32 %v1935, 16
      %v2175 = vrot.slane %v2173, 4
      %v2176 = vor.u32 %v2172, %v2175
      %v2177 = vsel %vm1055, %v2168, %v2176
      %v2179 = vshrl.u32 %v1936, 16
      %v2181 = vrot.slane %v2179, 3
      %v2182 = vshll.u32 %v1936, 16
      %v2184 = vrot.slane %v2182, 4
      %v2185 = vor.u32 %v2181, %v2184
      %v2187 = vshrl.u32 %v1937, 16
      %v2189 = vrot.slane %v2187, 3
      %v2190 = vshll.u32 %v1937, 16
      %v2192 = vrot.slane %v2190, 4
      %v2193 = vor.u32 %v2189, %v2192
      %v2194 = vsel %vm1055, %v2185, %v2193
      %v2196 = vshrl.u32 %v1938, 16
      %v2198 = vrot.slane %v2196, 3
      %v2199 = vshll.u32 %v1938, 16
      %v2201 = vrot.slane %v2199, 4
      %v2202 = vor.u32 %v2198, %v2201
      %v2204 = vshrl.u32 %v1939, 16
      %v2206 = vrot.slane %v2204, 3
      %v2207 = vshll.u32 %v1939, 16
      %v2209 = vrot.slane %v2207, 4
      %v2210 = vor.u32 %v2206, %v2209
      %v2211 = vsel %vm1055, %v2202, %v2210
      %2212 = vrot.lane.b32.xlu0 %v1956, 24
      %v2213 = vpop.permute.xlu0 %2212
      %2214 = vrot.lane.b32.xlu0 %v1973, 24
      %v2215 = vpop.permute.xlu0 %2214
      %2216 = vrot.lane.b32.xlu0 %v1990, 24
      %v2217 = vpop.permute.xlu0 %2216
      %2218 = vrot.lane.b32.xlu0 %v2007, 24
      %v2219 = vpop.permute.xlu0 %2218
      %2220 = vrot.lane.b32.xlu0 %v2024, 24
      %v2221 = vpop.permute.xlu0 %2220
      %2222 = vrot.lane.b32.xlu0 %v2041, 24
      %v2223 = vpop.permute.xlu0 %2222
      %2224 = vrot.lane.b32.xlu0 %v2058, 24
      %v2225 = vpop.permute.xlu0 %2224
      %2226 = vrot.lane.b32.xlu0 %v2075, 24
      %v2227 = vpop.permute.xlu0 %2226
      %2228 = vrot.lane.b32.xlu0 %v2092, 24
      %v2229 = vpop.permute.xlu0 %2228
      %2230 = vrot.lane.b32.xlu0 %v2109, 24
      %v2231 = vpop.permute.xlu0 %2230
      %2232 = vrot.lane.b32.xlu0 %v2126, 24
      %v2233 = vpop.permute.xlu0 %2232
      %2234 = vrot.lane.b32.xlu0 %v2143, 24
      %v2235 = vpop.permute.xlu0 %2234
      %2236 = vrot.lane.b32.xlu0 %v2160, 24
      %v2237 = vpop.permute.xlu0 %2236
      %2238 = vrot.lane.b32.xlu0 %v2177, 24
      %v2239 = vpop.permute.xlu0 %2238
      %2240 = vrot.lane.b32.xlu0 %v2194, 24
      %v2241 = vpop.permute.xlu0 %2240
      %2242 = vrot.lane.b32.xlu0 %v2211, 24
      %v2243 = vpop.permute.xlu0 %2242
      %vm2260 = vcmask 261312
      %2261 = vst.msk [vmem:[#allocation3] sm:$0xff] %vm2260, %v2213
      %2262 = vst.msk [vmem:[#allocation3 + $0x8] sm:$0xff] %vm2260, %v2215
      %2263 = vst.msk [vmem:[#allocation3 + $0x10] sm:$0xff] %vm2260, %v2217
      %2264 = vst.msk [vmem:[#allocation3 + $0x18] sm:$0xff] %vm2260, %v2219
      %2265 = vst.msk [vmem:[#allocation3 + $0x20] sm:$0xff] %vm2260, %v2221
      %2266 = vst.msk [vmem:[#allocation3 + $0x28] sm:$0xff] %vm2260, %v2223
      %2267 = vst.msk [vmem:[#allocation3 + $0x30] sm:$0xff] %vm2260, %v2225
      %2268 = vst.msk [vmem:[#allocation3 + $0x38] sm:$0xff] %vm2260, %v2227
      %2269 = vst.msk [vmem:[#allocation3 + $0x40] sm:$0xff] %vm2260, %v2229
      %2270 = vst.msk [vmem:[#allocation3 + $0x48] sm:$0xff] %vm2260, %v2231
      %2271 = vst.msk [vmem:[#allocation3 + $0x50] sm:$0xff] %vm2260, %v2233
      %2272 = vst.msk [vmem:[#allocation3 + $0x58] sm:$0xff] %vm2260, %v2235
      %2273 = vst.msk [vmem:[#allocation3 + $0x60] sm:$0xff] %vm2260, %v2237
      %2274 = vst.msk [vmem:[#allocation3 + $0x68] sm:$0xff] %vm2260, %v2239
      %2275 = vst.msk [vmem:[#allocation3 + $0x70] sm:$0xff] %vm2260, %v2241
      %2276 = vst.msk [vmem:[#allocation3 + $0x78] sm:$0xff] %vm2260, %v2243
      %v2277 = vld [vmem:[%s990] sm:$0xf0]
      %v2278 = vld [vmem:[%s990 + $0x8] sm:$0xf]
      %v2279 = vld [vmem:[%s990 + $0x10] sm:$0xf0]
      %v2280 = vld [vmem:[%s990 + $0x18] sm:$0xf]
      %v2281 = vld [vmem:[%s990 + $0x20] sm:$0xf0]
      %v2282 = vld [vmem:[%s990 + $0x28] sm:$0xf]
      %v2283 = vld [vmem:[%s990 + $0x30] sm:$0xf0]
      %v2284 = vld [vmem:[%s990 + $0x38] sm:$0xf]
      %v2285 = vld [vmem:[%s990 + $0x40] sm:$0xf0]
      %v2286 = vld [vmem:[%s990 + $0x48] sm:$0xf]
      %v2287 = vld [vmem:[%s990 + $0x50] sm:$0xf0]
      %v2288 = vld [vmem:[%s990 + $0x58] sm:$0xf]
      %v2289 = vld [vmem:[%s990 + $0x60] sm:$0xf0]
      %v2290 = vld [vmem:[%s990 + $0x68] sm:$0xf]
      %v2291 = vld [vmem:[%s990 + $0x70] sm:$0xf0]
      %v2292 = vld [vmem:[%s990 + $0x78] sm:$0xf]
      %v2293 = vld [vmem:[%s990 + $0x80] sm:$0xf0]
      %v2294 = vld [vmem:[%s990 + $0x88] sm:$0xf]
      %v2295 = vld [vmem:[%s990 + $0x90] sm:$0xf0]
      %v2296 = vld [vmem:[%s990 + $0x98] sm:$0xf]
      %v2297 = vld [vmem:[%s990 + $0xa0] sm:$0xf0]
      %v2298 = vld [vmem:[%s990 + $0xa8] sm:$0xf]
      %v2299 = vld [vmem:[%s990 + $0xb0] sm:$0xf0]
      %v2300 = vld [vmem:[%s990 + $0xb8] sm:$0xf]
      %v2301 = vld [vmem:[%s990 + $0xc0] sm:$0xf0]
      %v2302 = vld [vmem:[%s990 + $0xc8] sm:$0xf]
      %v2303 = vld [vmem:[%s990 + $0xd0] sm:$0xf0]
      %v2304 = vld [vmem:[%s990 + $0xd8] sm:$0xf]
      %v2305 = vld [vmem:[%s990 + $0xe0] sm:$0xf0]
      %v2306 = vld [vmem:[%s990 + $0xe8] sm:$0xf]
      %v2307 = vld [vmem:[%s990 + $0xf0] sm:$0xf0]
      %v2308 = vld [vmem:[%s990 + $0xf8] sm:$0xf]
      %v2341 = vrot.slane %v2277, 4
      %v2342 = vrot.slane %v2278, 4
      %v2343 = vsel %vm1424, %v2341, %v2342
      %v2344 = vrot.slane %v2279, 4
      %v2345 = vrot.slane %v2280, 4
      %v2346 = vsel %vm1424, %v2344, %v2345
      %v2347 = vrot.slane %v2281, 4
      %v2348 = vrot.slane %v2282, 4
      %v2349 = vsel %vm1424, %v2347, %v2348
      %v2350 = vrot.slane %v2283, 4
      %v2351 = vrot.slane %v2284, 4
      %v2352 = vsel %vm1424, %v2350, %v2351
      %v2353 = vrot.slane %v2285, 4
      %v2354 = vrot.slane %v2286, 4
      %v2355 = vsel %vm1424, %v2353, %v2354
      %v2356 = vrot.slane %v2287, 4
      %v2357 = vrot.slane %v2288, 4
      %v2358 = vsel %vm1424, %v2356, %v2357
      %v2359 = vrot.slane %v2289, 4
      %v2360 = vrot.slane %v2290, 4
      %v2361 = vsel %vm1424, %v2359, %v2360
      %v2362 = vrot.slane %v2291, 4
      %v2363 = vrot.slane %v2292, 4
      %v2364 = vsel %vm1424, %v2362, %v2363
      %v2365 = vrot.slane %v2293, 4
      %v2366 = vrot.slane %v2294, 4
      %v2367 = vsel %vm1424, %v2365, %v2366
      %v2368 = vrot.slane %v2295, 4
      %v2369 = vrot.slane %v2296, 4
      %v2370 = vsel %vm1424, %v2368, %v2369
      %v2371 = vrot.slane %v2297, 4
      %v2372 = vrot.slane %v2298, 4
      %v2373 = vsel %vm1424, %v2371, %v2372
      %v2374 = vrot.slane %v2299, 4
      %v2375 = vrot.slane %v2300, 4
      %v2376 = vsel %vm1424, %v2374, %v2375
      %v2377 = vrot.slane %v2301, 4
      %v2378 = vrot.slane %v2302, 4
      %v2379 = vsel %vm1424, %v2377, %v2378
      %v2380 = vrot.slane %v2303, 4
      %v2381 = vrot.slane %v2304, 4
      %v2382 = vsel %vm1424, %v2380, %v2381
      %v2383 = vrot.slane %v2305, 4
      %v2384 = vrot.slane %v2306, 4
      %v2385 = vsel %vm1424, %v2383, %v2384
      %v2386 = vrot.slane %v2307, 4
      %v2387 = vrot.slane %v2308, 4
      %v2388 = vsel %vm1424, %v2386, %v2387
      %2389 = vrot.lane.b32.xlu0 %v2343, 32
      %v2390 = vpop.permute.xlu0 %2389
      %2391 = vrot.lane.b32.xlu0 %v2346, 32
      %v2392 = vpop.permute.xlu0 %2391
      %2393 = vrot.lane.b32.xlu0 %v2349, 32
      %v2394 = vpop.permute.xlu0 %2393
      %2395 = vrot.lane.b32.xlu0 %v2352, 32
      %v2396 = vpop.permute.xlu0 %2395
      %2397 = vrot.lane.b32.xlu0 %v2355, 32
      %v2398 = vpop.permute.xlu0 %2397
      %2399 = vrot.lane.b32.xlu0 %v2358, 32
      %v2400 = vpop.permute.xlu0 %2399
      %2401 = vrot.lane.b32.xlu0 %v2361, 32
      %v2402 = vpop.permute.xlu0 %2401
      %2403 = vrot.lane.b32.xlu0 %v2364, 32
      %v2404 = vpop.permute.xlu0 %2403
      %2405 = vrot.lane.b32.xlu0 %v2367, 32
      %v2406 = vpop.permute.xlu0 %2405
      %2407 = vrot.lane.b32.xlu0 %v2370, 32
      %v2408 = vpop.permute.xlu0 %2407
      %2409 = vrot.lane.b32.xlu0 %v2373, 32
      %v2410 = vpop.permute.xlu0 %2409
      %2411 = vrot.lane.b32.xlu0 %v2376, 32
      %v2412 = vpop.permute.xlu0 %2411
      %2413 = vrot.lane.b32.xlu0 %v2379, 32
      %v2414 = vpop.permute.xlu0 %2413
      %2415 = vrot.lane.b32.xlu0 %v2382, 32
      %v2416 = vpop.permute.xlu0 %2415
      %2417 = vrot.lane.b32.xlu0 %v2385, 32
      %v2418 = vpop.permute.xlu0 %2417
      %2419 = vrot.lane.b32.xlu0 %v2388, 32
      %v2420 = vpop.permute.xlu0 %2419
      %vm2437 = vcmask 326912
      %2438 = vst.msk [vmem:[#allocation3] sm:$0xff] %vm2437, %v2390
      %2439 = vst.msk [vmem:[#allocation3 + $0x8] sm:$0xff] %vm2437, %v2392
      %2440 = vst.msk [vmem:[#allocation3 + $0x10] sm:$0xff] %vm2437, %v2394
      %2441 = vst.msk [vmem:[#allocation3 + $0x18] sm:$0xff] %vm2437, %v2396
      %2442 = vst.msk [vmem:[#allocation3 + $0x20] sm:$0xff] %vm2437, %v2398
      %2443 = vst.msk [vmem:[#allocation3 + $0x28] sm:$0xff] %vm2437, %v2400
      %2444 = vst.msk [vmem:[#allocation3 + $0x30] sm:$0xff] %vm2437, %v2402
      %2445 = vst.msk [vmem:[#allocation3 + $0x38] sm:$0xff] %vm2437, %v2404
      %2446 = vst.msk [vmem:[#allocation3 + $0x40] sm:$0xff] %vm2437, %v2406
      %2447 = vst.msk [vmem:[#allocation3 + $0x48] sm:$0xff] %vm2437, %v2408
      %2448 = vst.msk [vmem:[#allocation3 + $0x50] sm:$0xff] %vm2437, %v2410
      %2449 = vst.msk [vmem:[#allocation3 + $0x58] sm:$0xff] %vm2437, %v2412
      %2450 = vst.msk [vmem:[#allocation3 + $0x60] sm:$0xff] %vm2437, %v2414
      %2451 = vst.msk [vmem:[#allocation3 + $0x68] sm:$0xff] %vm2437, %v2416
      %2452 = vst.msk [vmem:[#allocation3 + $0x70] sm:$0xff] %vm2437, %v2418
      %2453 = vst.msk [vmem:[#allocation3 + $0x78] sm:$0xff] %vm2437, %v2420
      %v2454 = vld [vmem:[%s990] sm:$0xf0]
      %v2455 = vld [vmem:[%s990 + $0x8] sm:$0x1f]
      %v2456 = vld [vmem:[%s990 + $0x10] sm:$0xf0]
      %v2457 = vld [vmem:[%s990 + $0x18] sm:$0x1f]
      %v2458 = vld [vmem:[%s990 + $0x20] sm:$0xf0]
      %v2459 = vld [vmem:[%s990 + $0x28] sm:$0x1f]
      %v2460 = vld [vmem:[%s990 + $0x30] sm:$0xf0]
      %v2461 = vld [vmem:[%s990 + $0x38] sm:$0x1f]
      %v2462 = vld [vmem:[%s990 + $0x40] sm:$0xf0]
      %v2463 = vld [vmem:[%s990 + $0x48] sm:$0x1f]
      %v2464 = vld [vmem:[%s990 + $0x50] sm:$0xf0]
      %v2465 = vld [vmem:[%s990 + $0x58] sm:$0x1f]
      %v2466 = vld [vmem:[%s990 + $0x60] sm:$0xf0]
      %v2467 = vld [vmem:[%s990 + $0x68] sm:$0x1f]
      %v2468 = vld [vmem:[%s990 + $0x70] sm:$0xf0]
      %v2469 = vld [vmem:[%s990 + $0x78] sm:$0x1f]
      %v2470 = vld [vmem:[%s990 + $0x80] sm:$0xf0]
      %v2471 = vld [vmem:[%s990 + $0x88] sm:$0x1f]
      %v2472 = vld [vmem:[%s990 + $0x90] sm:$0xf0]
      %v2473 = vld [vmem:[%s990 + $0x98] sm:$0x1f]
      %v2474 = vld [vmem:[%s990 + $0xa0] sm:$0xf0]
      %v2475 = vld [vmem:[%s990 + $0xa8] sm:$0x1f]
      %v2476 = vld [vmem:[%s990 + $0xb0] sm:$0xf0]
      %v2477 = vld [vmem:[%s990 + $0xb8] sm:$0x1f]
      %v2478 = vld [vmem:[%s990 + $0xc0] sm:$0xf0]
      %v2479 = vld [vmem:[%s990 + $0xc8] sm:$0x1f]
      %v2480 = vld [vmem:[%s990 + $0xd0] sm:$0xf0]
      %v2481 = vld [vmem:[%s990 + $0xd8] sm:$0x1f]
      %v2482 = vld [vmem:[%s990 + $0xe0] sm:$0xf0]
      %v2483 = vld [vmem:[%s990 + $0xe8] sm:$0x1f]
      %v2484 = vld [vmem:[%s990 + $0xf0] sm:$0xf0]
      %v2485 = vld [vmem:[%s990 + $0xf8] sm:$0x1f]
      %v2487 = vshrl.u32 %v2454, 16
      %v2489 = vrot.slane %v2487, 4
      %v2490 = vshll.u32 %v2454, 16
      %v2492 = vrot.slane %v2490, 5
      %v2493 = vor.u32 %v2489, %v2492
      %v2495 = vshrl.u32 %v2455, 16
      %v2497 = vrot.slane %v2495, 4
      %v2498 = vshll.u32 %v2455, 16
      %v2500 = vrot.slane %v2498, 5
      %v2501 = vor.u32 %v2497, %v2500
      %v2502 = vsel %vm1570, %v2493, %v2501
      %v2504 = vshrl.u32 %v2456, 16
      %v2506 = vrot.slane %v2504, 4
      %v2507 = vshll.u32 %v2456, 16
      %v2509 = vrot.slane %v2507, 5
      %v2510 = vor.u32 %v2506, %v2509
      %v2512 = vshrl.u32 %v2457, 16
      %v2514 = vrot.slane %v2512, 4
      %v2515 = vshll.u32 %v2457, 16
      %v2517 = vrot.slane %v2515, 5
      %v2518 = vor.u32 %v2514, %v2517
      %v2519 = vsel %vm1570, %v2510, %v2518
      %v2521 = vshrl.u32 %v2458, 16
      %v2523 = vrot.slane %v2521, 4
      %v2524 = vshll.u32 %v2458, 16
      %v2526 = vrot.slane %v2524, 5
      %v2527 = vor.u32 %v2523, %v2526
      %v2529 = vshrl.u32 %v2459, 16
      %v2531 = vrot.slane %v2529, 4
      %v2532 = vshll.u32 %v2459, 16
      %v2534 = vrot.slane %v2532, 5
      %v2535 = vor.u32 %v2531, %v2534
      %v2536 = vsel %vm1570, %v2527, %v2535
      %v2538 = vshrl.u32 %v2460, 16
      %v2540 = vrot.slane %v2538, 4
      %v2541 = vshll.u32 %v2460, 16
      %v2543 = vrot.slane %v2541, 5
      %v2544 = vor.u32 %v2540, %v2543
      %v2546 = vshrl.u32 %v2461, 16
      %v2548 = vrot.slane %v2546, 4
      %v2549 = vshll.u32 %v2461, 16
      %v2551 = vrot.slane %v2549, 5
      %v2552 = vor.u32 %v2548, %v2551
      %v2553 = vsel %vm1570, %v2544, %v2552
      %v2555 = vshrl.u32 %v2462, 16
      %v2557 = vrot.slane %v2555, 4
      %v2558 = vshll.u32 %v2462, 16
      %v2560 = vrot.slane %v2558, 5
      %v2561 = vor.u32 %v2557, %v2560
      %v2563 = vshrl.u32 %v2463, 16
      %v2565 = vrot.slane %v2563, 4
      %v2566 = vshll.u32 %v2463, 16
      %v2568 = vrot.slane %v2566, 5
      %v2569 = vor.u32 %v2565, %v2568
      %v2570 = vsel %vm1570, %v2561, %v2569
      %v2572 = vshrl.u32 %v2464, 16
      %v2574 = vrot.slane %v2572, 4
      %v2575 = vshll.u32 %v2464, 16
      %v2577 = vrot.slane %v2575, 5
      %v2578 = vor.u32 %v2574, %v2577
      %v2580 = vshrl.u32 %v2465, 16
      %v2582 = vrot.slane %v2580, 4
      %v2583 = vshll.u32 %v2465, 16
      %v2585 = vrot.slane %v2583, 5
      %v2586 = vor.u32 %v2582, %v2585
      %v2587 = vsel %vm1570, %v2578, %v2586
      %v2589 = vshrl.u32 %v2466, 16
      %v2591 = vrot.slane %v2589, 4
      %v2592 = vshll.u32 %v2466, 16
      %v2594 = vrot.slane %v2592, 5
      %v2595 = vor.u32 %v2591, %v2594
      %v2597 = vshrl.u32 %v2467, 16
      %v2599 = vrot.slane %v2597, 4
      %v2600 = vshll.u32 %v2467, 16
      %v2602 = vrot.slane %v2600, 5
      %v2603 = vor.u32 %v2599, %v2602
      %v2604 = vsel %vm1570, %v2595, %v2603
      %v2606 = vshrl.u32 %v2468, 16
      %v2608 = vrot.slane %v2606, 4
      %v2609 = vshll.u32 %v2468, 16
      %v2611 = vrot.slane %v2609, 5
      %v2612 = vor.u32 %v2608, %v2611
      %v2614 = vshrl.u32 %v2469, 16
      %v2616 = vrot.slane %v2614, 4
      %v2617 = vshll.u32 %v2469, 16
      %v2619 = vrot.slane %v2617, 5
      %v2620 = vor.u32 %v2616, %v2619
      %v2621 = vsel %vm1570, %v2612, %v2620
      %v2623 = vshrl.u32 %v2470, 16
      %v2625 = vrot.slane %v2623, 4
      %v2626 = vshll.u32 %v2470, 16
      %v2628 = vrot.slane %v2626, 5
      %v2629 = vor.u32 %v2625, %v2628
      %v2631 = vshrl.u32 %v2471, 16
      %v2633 = vrot.slane %v2631, 4
      %v2634 = vshll.u32 %v2471, 16
      %v2636 = vrot.slane %v2634, 5
      %v2637 = vor.u32 %v2633, %v2636
      %v2638 = vsel %vm1570, %v2629, %v2637
      %v2640 = vshrl.u32 %v2472, 16
      %v2642 = vrot.slane %v2640, 4
      %v2643 = vshll.u32 %v2472, 16
      %v2645 = vrot.slane %v2643, 5
      %v2646 = vor.u32 %v2642, %v2645
      %v2648 = vshrl.u32 %v2473, 16
      %v2650 = vrot.slane %v2648, 4
      %v2651 = vshll.u32 %v2473, 16
      %v2653 = vrot.slane %v2651, 5
      %v2654 = vor.u32 %v2650, %v2653
      %v2655 = vsel %vm1570, %v2646, %v2654
      %v2657 = vshrl.u32 %v2474, 16
      %v2659 = vrot.slane %v2657, 4
      %v2660 = vshll.u32 %v2474, 16
      %v2662 = vrot.slane %v2660, 5
      %v2663 = vor.u32 %v2659, %v2662
      %v2665 = vshrl.u32 %v2475, 16
      %v2667 = vrot.slane %v2665, 4
      %v2668 = vshll.u32 %v2475, 16
      %v2670 = vrot.slane %v2668, 5
      %v2671 = vor.u32 %v2667, %v2670
      %v2672 = vsel %vm1570, %v2663, %v2671
      %v2674 = vshrl.u32 %v2476, 16
      %v2676 = vrot.slane %v2674, 4
      %v2677 = vshll.u32 %v2476, 16
      %v2679 = vrot.slane %v2677, 5
      %v2680 = vor.u32 %v2676, %v2679
      %v2682 = vshrl.u32 %v2477, 16
      %v2684 = vrot.slane %v2682, 4
      %v2685 = vshll.u32 %v2477, 16
      %v2687 = vrot.slane %v2685, 5
      %v2688 = vor.u32 %v2684, %v2687
      %v2689 = vsel %vm1570, %v2680, %v2688
      %v2691 = vshrl.u32 %v2478, 16
      %v2693 = vrot.slane %v2691, 4
      %v2694 = vshll.u32 %v2478, 16
      %v2696 = vrot.slane %v2694, 5
      %v2697 = vor.u32 %v2693, %v2696
      %v2699 = vshrl.u32 %v2479, 16
      %v2701 = vrot.slane %v2699, 4
      %v2702 = vshll.u32 %v2479, 16
      %v2704 = vrot.slane %v2702, 5
      %v2705 = vor.u32 %v2701, %v2704
      %v2706 = vsel %vm1570, %v2697, %v2705
      %v2708 = vshrl.u32 %v2480, 16
      %v2710 = vrot.slane %v2708, 4
      %v2711 = vshll.u32 %v2480, 16
      %v2713 = vrot.slane %v2711, 5
      %v2714 = vor.u32 %v2710, %v2713
      %v2716 = vshrl.u32 %v2481, 16
      %v2718 = vrot.slane %v2716, 4
      %v2719 = vshll.u32 %v2481, 16
      %v2721 = vrot.slane %v2719, 5
      %v2722 = vor.u32 %v2718, %v2721
      %v2723 = vsel %vm1570, %v2714, %v2722
      %v2725 = vshrl.u32 %v2482, 16
      %v2727 = vrot.slane %v2725, 4
      %v2728 = vshll.u32 %v2482, 16
      %v2730 = vrot.slane %v2728, 5
      %v2731 = vor.u32 %v2727, %v2730
      %v2733 = vshrl.u32 %v2483, 16
      %v2735 = vrot.slane %v2733, 4
      %v2736 = vshll.u32 %v2483, 16
      %v2738 = vrot.slane %v2736, 5
      %v2739 = vor.u32 %v2735, %v2738
      %v2740 = vsel %vm1570, %v2731, %v2739
      %v2742 = vshrl.u32 %v2484, 16
      %v2744 = vrot.slane %v2742, 4
      %v2745 = vshll.u32 %v2484, 16
      %v2747 = vrot.slane %v2745, 5
      %v2748 = vor.u32 %v2744, %v2747
      %v2750 = vshrl.u32 %v2485, 16
      %v2752 = vrot.slane %v2750, 4
      %v2753 = vshll.u32 %v2485, 16
      %v2755 = vrot.slane %v2753, 5
      %v2756 = vor.u32 %v2752, %v2755
      %v2757 = vsel %vm1570, %v2748, %v2756
      %2758 = vrot.lane.b32.xlu0 %v2502, 40
      %v2759 = vpop.permute.xlu0 %2758
      %2760 = vrot.lane.b32.xlu0 %v2519, 40
      %v2761 = vpop.permute.xlu0 %2760
      %2762 = vrot.lane.b32.xlu0 %v2536, 40
      %v2763 = vpop.permute.xlu0 %2762
      %2764 = vrot.lane.b32.xlu0 %v2553, 40
      %v2765 = vpop.permute.xlu0 %2764
      %2766 = vrot.lane.b32.xlu0 %v2570, 40
      %v2767 = vpop.permute.xlu0 %2766
      %2768 = vrot.lane.b32.xlu0 %v2587, 40
      %v2769 = vpop.permute.xlu0 %2768
      %2770 = vrot.lane.b32.xlu0 %v2604, 40
      %v2771 = vpop.permute.xlu0 %2770
      %2772 = vrot.lane.b32.xlu0 %v2621, 40
      %v2773 = vpop.permute.xlu0 %2772
      %2774 = vrot.lane.b32.xlu0 %v2638, 40
      %v2775 = vpop.permute.xlu0 %2774
      %2776 = vrot.lane.b32.xlu0 %v2655, 40
      %v2777 = vpop.permute.xlu0 %2776
      %2778 = vrot.lane.b32.xlu0 %v2672, 40
      %v2779 = vpop.permute.xlu0 %2778
      %2780 = vrot.lane.b32.xlu0 %v2689, 40
      %v2781 = vpop.permute.xlu0 %2780
      %2782 = vrot.lane.b32.xlu0 %v2706, 40
      %v2783 = vpop.permute.xlu0 %2782
      %2784 = vrot.lane.b32.xlu0 %v2723, 40
      %v2785 = vpop.permute.xlu0 %2784
      %2786 = vrot.lane.b32.xlu0 %v2740, 40
      %v2787 = vpop.permute.xlu0 %2786
      %2788 = vrot.lane.b32.xlu0 %v2757, 40
      %v2789 = vpop.permute.xlu0 %2788
      %vm2806 = vcmask 392512
      %2807 = vst.msk [vmem:[#allocation3] sm:$0xff] %vm2806, %v2759
      %2808 = vst.msk [vmem:[#allocation3 + $0x8] sm:$0xff] %vm2806, %v2761
      %2809 = vst.msk [vmem:[#allocation3 + $0x10] sm:$0xff] %vm2806, %v2763
      %2810 = vst.msk [vmem:[#allocation3 + $0x18] sm:$0xff] %vm2806, %v2765
      %2811 = vst.msk [vmem:[#allocation3 + $0x20] sm:$0xff] %vm2806, %v2767
      %2812 = vst.msk [vmem:[#allocation3 + $0x28] sm:$0xff] %vm2806, %v2769
      %2813 = vst.msk [vmem:[#allocation3 + $0x30] sm:$0xff] %vm2806, %v2771
      %2814 = vst.msk [vmem:[#allocation3 + $0x38] sm:$0xff] %vm2806, %v2773
      %2815 = vst.msk [vmem:[#allocation3 + $0x40] sm:$0xff] %vm2806, %v2775
      %2816 = vst.msk [vmem:[#allocation3 + $0x48] sm:$0xff] %vm2806, %v2777
      %2817 = vst.msk [vmem:[#allocation3 + $0x50] sm:$0xff] %vm2806, %v2779
      %2818 = vst.msk [vmem:[#allocation3 + $0x58] sm:$0xff] %vm2806, %v2781
      %2819 = vst.msk [vmem:[#allocation3 + $0x60] sm:$0xff] %vm2806, %v2783
      %2820 = vst.msk [vmem:[#allocation3 + $0x68] sm:$0xff] %vm2806, %v2785
      %2821 = vst.msk [vmem:[#allocation3 + $0x70] sm:$0xff] %vm2806, %v2787
      %2822 = vst.msk [vmem:[#allocation3 + $0x78] sm:$0xff] %vm2806, %v2789
      %s2823 = scalar_lea.vmem [#allocation2], 32
      %v2824 = vld [vmem:[%s2823] sm:$0xf8]
      %v2825 = vld [vmem:[%s2823 + $0x8] sm:$0xf]
      %v2826 = vld [vmem:[%s2823 + $0x10] sm:$0xf8]
      %v2827 = vld [vmem:[%s2823 + $0x18] sm:$0xf]
      %v2828 = vld [vmem:[%s2823 + $0x20] sm:$0xf8]
      %v2829 = vld [vmem:[%s2823 + $0x28] sm:$0xf]
      %v2830 = vld [vmem:[%s2823 + $0x30] sm:$0xf8]
      %v2831 = vld [vmem:[%s2823 + $0x38] sm:$0xf]
      %v2832 = vld [vmem:[%s2823 + $0x40] sm:$0xf8]
      %v2833 = vld [vmem:[%s2823 + $0x48] sm:$0xf]
      %v2834 = vld [vmem:[%s2823 + $0x50] sm:$0xf8]
      %v2835 = vld [vmem:[%s2823 + $0x58] sm:$0xf]
      %v2836 = vld [vmem:[%s2823 + $0x60] sm:$0xf8]
      %v2837 = vld [vmem:[%s2823 + $0x68] sm:$0xf]
      %v2838 = vld [vmem:[%s2823 + $0x70] sm:$0xf8]
      %v2839 = vld [vmem:[%s2823 + $0x78] sm:$0xf]
      %v2840 = vld [vmem:[%s2823 + $0x80] sm:$0xf8]
      %v2841 = vld [vmem:[%s2823 + $0x88] sm:$0xf]
      %v2842 = vld [vmem:[%s2823 + $0x90] sm:$0xf8]
      %v2843 = vld [vmem:[%s2823 + $0x98] sm:$0xf]
      %v2844 = vld [vmem:[%s2823 + $0xa0] sm:$0xf8]
      %v2845 = vld [vmem:[%s2823 + $0xa8] sm:$0xf]
      %v2846 = vld [vmem:[%s2823 + $0xb0] sm:$0xf8]
      %v2847 = vld [vmem:[%s2823 + $0xb8] sm:$0xf]
      %v2848 = vld [vmem:[%s2823 + $0xc0] sm:$0xf8]
      %v2849 = vld [vmem:[%s2823 + $0xc8] sm:$0xf]
      %v2850 = vld [vmem:[%s2823 + $0xd0] sm:$0xf8]
      %v2851 = vld [vmem:[%s2823 + $0xd8] sm:$0xf]
      %v2852 = vld [vmem:[%s2823 + $0xe0] sm:$0xf8]
      %v2853 = vld [vmem:[%s2823 + $0xe8] sm:$0xf]
      %v2854 = vld [vmem:[%s2823 + $0xf0] sm:$0xf8]
      %v2855 = vld [vmem:[%s2823 + $0xf8] sm:$0xf]
      %v2857 = vshrl.u32 %v2824, 16
      %v2859 = vrot.slane %v2857, 3
      %v2860 = vshll.u32 %v2824, 16
      %v2862 = vrot.slane %v2860, 4
      %v2863 = vor.u32 %v2859, %v2862
      %v2865 = vshrl.u32 %v2825, 16
      %v2867 = vrot.slane %v2865, 3
      %v2868 = vshll.u32 %v2825, 16
      %v2870 = vrot.slane %v2868, 4
      %v2871 = vor.u32 %v2867, %v2870
      %v2872 = vsel %vm1055, %v2863, %v2871
      %v2874 = vshrl.u32 %v2826, 16
      %v2876 = vrot.slane %v2874, 3
      %v2877 = vshll.u32 %v2826, 16
      %v2879 = vrot.slane %v2877, 4
      %v2880 = vor.u32 %v2876, %v2879
      %v2882 = vshrl.u32 %v2827, 16
      %v2884 = vrot.slane %v2882, 3
      %v2885 = vshll.u32 %v2827, 16
      %v2887 = vrot.slane %v2885, 4
      %v2888 = vor.u32 %v2884, %v2887
      %v2889 = vsel %vm1055, %v2880, %v2888
      %v2891 = vshrl.u32 %v2828, 16
      %v2893 = vrot.slane %v2891, 3
      %v2894 = vshll.u32 %v2828, 16
      %v2896 = vrot.slane %v2894, 4
      %v2897 = vor.u32 %v2893, %v2896
      %v2899 = vshrl.u32 %v2829, 16
      %v2901 = vrot.slane %v2899, 3
      %v2902 = vshll.u32 %v2829, 16
      %v2904 = vrot.slane %v2902, 4
      %v2905 = vor.u32 %v2901, %v2904
      %v2906 = vsel %vm1055, %v2897, %v2905
      %v2908 = vshrl.u32 %v2830, 16
      %v2910 = vrot.slane %v2908, 3
      %v2911 = vshll.u32 %v2830, 16
      %v2913 = vrot.slane %v2911, 4
      %v2914 = vor.u32 %v2910, %v2913
      %v2916 = vshrl.u32 %v2831, 16
      %v2918 = vrot.slane %v2916, 3
      %v2919 = vshll.u32 %v2831, 16
      %v2921 = vrot.slane %v2919, 4
      %v2922 = vor.u32 %v2918, %v2921
      %v2923 = vsel %vm1055, %v2914, %v2922
      %v2925 = vshrl.u32 %v2832, 16
      %v2927 = vrot.slane %v2925, 3
      %v2928 = vshll.u32 %v2832, 16
      %v2930 = vrot.slane %v2928, 4
      %v2931 = vor.u32 %v2927, %v2930
      %v2933 = vshrl.u32 %v2833, 16
      %v2935 = vrot.slane %v2933, 3
      %v2936 = vshll.u32 %v2833, 16
      %v2938 = vrot.slane %v2936, 4
      %v2939 = vor.u32 %v2935, %v2938
      %v2940 = vsel %vm1055, %v2931, %v2939
      %v2942 = vshrl.u32 %v2834, 16
      %v2944 = vrot.slane %v2942, 3
      %v2945 = vshll.u32 %v2834, 16
      %v2947 = vrot.slane %v2945, 4
      %v2948 = vor.u32 %v2944, %v2947
      %v2950 = vshrl.u32 %v2835, 16
      %v2952 = vrot.slane %v2950, 3
      %v2953 = vshll.u32 %v2835, 16
      %v2955 = vrot.slane %v2953, 4
      %v2956 = vor.u32 %v2952, %v2955
      %v2957 = vsel %vm1055, %v2948, %v2956
      %v2959 = vshrl.u32 %v2836, 16
      %v2961 = vrot.slane %v2959, 3
      %v2962 = vshll.u32 %v2836, 16
      %v2964 = vrot.slane %v2962, 4
      %v2965 = vor.u32 %v2961, %v2964
      %v2967 = vshrl.u32 %v2837, 16
      %v2969 = vrot.slane %v2967, 3
      %v2970 = vshll.u32 %v2837, 16
      %v2972 = vrot.slane %v2970, 4
      %v2973 = vor.u32 %v2969, %v2972
      %v2974 = vsel %vm1055, %v2965, %v2973
      %v2976 = vshrl.u32 %v2838, 16
      %v2978 = vrot.slane %v2976, 3
      %v2979 = vshll.u32 %v2838, 16
      %v2981 = vrot.slane %v2979, 4
      %v2982 = vor.u32 %v2978, %v2981
      %v2984 = vshrl.u32 %v2839, 16
      %v2986 = vrot.slane %v2984, 3
      %v2987 = vshll.u32 %v2839, 16
      %v2989 = vrot.slane %v2987, 4
      %v2990 = vor.u32 %v2986, %v2989
      %v2991 = vsel %vm1055, %v2982, %v2990
      %v2993 = vshrl.u32 %v2840, 16
      %v2995 = vrot.slane %v2993, 3
      %v2996 = vshll.u32 %v2840, 16
      %v2998 = vrot.slane %v2996, 4
      %v2999 = vor.u32 %v2995, %v2998
      %v3001 = vshrl.u32 %v2841, 16
      %v3003 = vrot.slane %v3001, 3
      %v3004 = vshll.u32 %v2841, 16
      %v3006 = vrot.slane %v3004, 4
      %v3007 = vor.u32 %v3003, %v3006
      %v3008 = vsel %vm1055, %v2999, %v3007
      %v3010 = vshrl.u32 %v2842, 16
      %v3012 = vrot.slane %v3010, 3
      %v3013 = vshll.u32 %v2842, 16
      %v3015 = vrot.slane %v3013, 4
      %v3016 = vor.u32 %v3012, %v3015
      %v3018 = vshrl.u32 %v2843, 16
      %v3020 = vrot.slane %v3018, 3
      %v3021 = vshll.u32 %v2843, 16
      %v3023 = vrot.slane %v3021, 4
      %v3024 = vor.u32 %v3020, %v3023
      %v3025 = vsel %vm1055, %v3016, %v3024
      %v3027 = vshrl.u32 %v2844, 16
      %v3029 = vrot.slane %v3027, 3
      %v3030 = vshll.u32 %v2844, 16
      %v3032 = vrot.slane %v3030, 4
      %v3033 = vor.u32 %v3029, %v3032
      %v3035 = vshrl.u32 %v2845, 16
      %v3037 = vrot.slane %v3035, 3
      %v3038 = vshll.u32 %v2845, 16
      %v3040 = vrot.slane %v3038, 4
      %v3041 = vor.u32 %v3037, %v3040
      %v3042 = vsel %vm1055, %v3033, %v3041
      %v3044 = vshrl.u32 %v2846, 16
      %v3046 = vrot.slane %v3044, 3
      %v3047 = vshll.u32 %v2846, 16
      %v3049 = vrot.slane %v3047, 4
      %v3050 = vor.u32 %v3046, %v3049
      %v3052 = vshrl.u32 %v2847, 16
      %v3054 = vrot.slane %v3052, 3
      %v3055 = vshll.u32 %v2847, 16
      %v3057 = vrot.slane %v3055, 4
      %v3058 = vor.u32 %v3054, %v3057
      %v3059 = vsel %vm1055, %v3050, %v3058
      %v3061 = vshrl.u32 %v2848, 16
      %v3063 = vrot.slane %v3061, 3
      %v3064 = vshll.u32 %v2848, 16
      %v3066 = vrot.slane %v3064, 4
      %v3067 = vor.u32 %v3063, %v3066
      %v3069 = vshrl.u32 %v2849, 16
      %v3071 = vrot.slane %v3069, 3
      %v3072 = vshll.u32 %v2849, 16
      %v3074 = vrot.slane %v3072, 4
      %v3075 = vor.u32 %v3071, %v3074
      %v3076 = vsel %vm1055, %v3067, %v3075
      %v3078 = vshrl.u32 %v2850, 16
      %v3080 = vrot.slane %v3078, 3
      %v3081 = vshll.u32 %v2850, 16
      %v3083 = vrot.slane %v3081, 4
      %v3084 = vor.u32 %v3080, %v3083
      %v3086 = vshrl.u32 %v2851, 16
      %v3088 = vrot.slane %v3086, 3
      %v3089 = vshll.u32 %v2851, 16
      %v3091 = vrot.slane %v3089, 4
      %v3092 = vor.u32 %v3088, %v3091
      %v3093 = vsel %vm1055, %v3084, %v3092
      %v3095 = vshrl.u32 %v2852, 16
      %v3097 = vrot.slane %v3095, 3
      %v3098 = vshll.u32 %v2852, 16
      %v3100 = vrot.slane %v3098, 4
      %v3101 = vor.u32 %v3097, %v3100
      %v3103 = vshrl.u32 %v2853, 16
      %v3105 = vrot.slane %v3103, 3
      %v3106 = vshll.u32 %v2853, 16
      %v3108 = vrot.slane %v3106, 4
      %v3109 = vor.u32 %v3105, %v3108
      %v3110 = vsel %vm1055, %v3101, %v3109
      %v3112 = vshrl.u32 %v2854, 16
      %v3114 = vrot.slane %v3112, 3
      %v3115 = vshll.u32 %v2854, 16
      %v3117 = vrot.slane %v3115, 4
      %v3118 = vor.u32 %v3114, %v3117
      %v3120 = vshrl.u32 %v2855, 16
      %v3122 = vrot.slane %v3120, 3
      %v3123 = vshll.u32 %v2855, 16
      %v3125 = vrot.slane %v3123, 4
      %v3126 = vor.u32 %v3122, %v3125
      %v3127 = vsel %vm1055, %v3118, %v3126
      %3128 = vrot.lane.b32.xlu0 %v2872, 48
      %v3129 = vpop.permute.xlu0 %3128
      %3130 = vrot.lane.b32.xlu0 %v2889, 48
      %v3131 = vpop.permute.xlu0 %3130
      %3132 = vrot.lane.b32.xlu0 %v2906, 48
      %v3133 = vpop.permute.xlu0 %3132
      %3134 = vrot.lane.b32.xlu0 %v2923, 48
      %v3135 = vpop.permute.xlu0 %3134
      %3136 = vrot.lane.b32.xlu0 %v2940, 48
      %v3137 = vpop.permute.xlu0 %3136
      %3138 = vrot.lane.b32.xlu0 %v2957, 48
      %v3139 = vpop.permute.xlu0 %3138
      %3140 = vrot.lane.b32.xlu0 %v2974, 48
      %v3141 = vpop.permute.xlu0 %3140
      %3142 = vrot.lane.b32.xlu0 %v2991, 48
      %v3143 = vpop.permute.xlu0 %3142
      %3144 = vrot.lane.b32.xlu0 %v3008, 48
      %v3145 = vpop.permute.xlu0 %3144
      %3146 = vrot.lane.b32.xlu0 %v3025, 48
      %v3147 = vpop.permute.xlu0 %3146
      %3148 = vrot.lane.b32.xlu0 %v3042, 48
      %v3149 = vpop.permute.xlu0 %3148
      %3150 = vrot.lane.b32.xlu0 %v3059, 48
      %v3151 = vpop.permute.xlu0 %3150
      %3152 = vrot.lane.b32.xlu0 %v3076, 48
      %v3153 = vpop.permute.xlu0 %3152
      %3154 = vrot.lane.b32.xlu0 %v3093, 48
      %v3155 = vpop.permute.xlu0 %3154
      %3156 = vrot.lane.b32.xlu0 %v3110, 48
      %v3157 = vpop.permute.xlu0 %3156
      %3158 = vrot.lane.b32.xlu0 %v3127, 48
      %v3159 = vpop.permute.xlu0 %3158
      %vm3176 = vcmask 458112
      %3177 = vst.msk [vmem:[#allocation3] sm:$0xff] %vm3176, %v3129
      %3178 = vst.msk [vmem:[#allocation3 + $0x8] sm:$0xff] %vm3176, %v3131
      %3179 = vst.msk [vmem:[#allocation3 + $0x10] sm:$0xff] %vm3176, %v3133
      %3180 = vst.msk [vmem:[#allocation3 + $0x18] sm:$0xff] %vm3176, %v3135
      %3181 = vst.msk [vmem:[#allocation3 + $0x20] sm:$0xff] %vm3176, %v3137
      %3182 = vst.msk [vmem:[#allocation3 + $0x28] sm:$0xff] %vm3176, %v3139
      %3183 = vst.msk [vmem:[#allocation3 + $0x30] sm:$0xff] %vm3176, %v3141
      %3184 = vst.msk [vmem:[#allocation3 + $0x38] sm:$0xff] %vm3176, %v3143
      %3185 = vst.msk [vmem:[#allocation3 + $0x40] sm:$0xff] %vm3176, %v3145
      %3186 = vst.msk [vmem:[#allocation3 + $0x48] sm:$0xff] %vm3176, %v3147
      %3187 = vst.msk [vmem:[#allocation3 + $0x50] sm:$0xff] %vm3176, %v3149
      %3188 = vst.msk [vmem:[#allocation3 + $0x58] sm:$0xff] %vm3176, %v3151
      %3189 = vst.msk [vmem:[#allocation3 + $0x60] sm:$0xff] %vm3176, %v3153
      %3190 = vst.msk [vmem:[#allocation3 + $0x68] sm:$0xff] %vm3176, %v3155
      %3191 = vst.msk [vmem:[#allocation3 + $0x70] sm:$0xff] %vm3176, %v3157
      %3192 = vst.msk [vmem:[#allocation3 + $0x78] sm:$0xff] %vm3176, %v3159
      %v3193 = vld [vmem:[%s2823] sm:$0xf0]
      %v3194 = vld [vmem:[%s2823 + $0x8] sm:$0xf]
      %v3195 = vld [vmem:[%s2823 + $0x10] sm:$0xf0]
      %v3196 = vld [vmem:[%s2823 + $0x18] sm:$0xf]
      %v3197 = vld [vmem:[%s2823 + $0x20] sm:$0xf0]
      %v3198 = vld [vmem:[%s2823 + $0x28] sm:$0xf]
      %v3199 = vld [vmem:[%s2823 + $0x30] sm:$0xf0]
      %v3200 = vld [vmem:[%s2823 + $0x38] sm:$0xf]
      %v3201 = vld [vmem:[%s2823 + $0x40] sm:$0xf0]
      %v3202 = vld [vmem:[%s2823 + $0x48] sm:$0xf]
      %v3203 = vld [vmem:[%s2823 + $0x50] sm:$0xf0]
      %v3204 = vld [vmem:[%s2823 + $0x58] sm:$0xf]
      %v3205 = vld [vmem:[%s2823 + $0x60] sm:$0xf0]
      %v3206 = vld [vmem:[%s2823 + $0x68] sm:$0xf]
      %v3207 = vld [vmem:[%s2823 + $0x70] sm:$0xf0]
      %v3208 = vld [vmem:[%s2823 + $0x78] sm:$0xf]
      %v3209 = vld [vmem:[%s2823 + $0x80] sm:$0xf0]
      %v3210 = vld [vmem:[%s2823 + $0x88] sm:$0xf]
      %v3211 = vld [vmem:[%s2823 + $0x90] sm:$0xf0]
      %v3212 = vld [vmem:[%s2823 + $0x98] sm:$0xf]
      %v3213 = vld [vmem:[%s2823 + $0xa0] sm:$0xf0]
      %v3214 = vld [vmem:[%s2823 + $0xa8] sm:$0xf]
      %v3215 = vld [vmem:[%s2823 + $0xb0] sm:$0xf0]
      %v3216 = vld [vmem:[%s2823 + $0xb8] sm:$0xf]
      %v3217 = vld [vmem:[%s2823 + $0xc0] sm:$0xf0]
      %v3218 = vld [vmem:[%s2823 + $0xc8] sm:$0xf]
      %v3219 = vld [vmem:[%s2823 + $0xd0] sm:$0xf0]
      %v3220 = vld [vmem:[%s2823 + $0xd8] sm:$0xf]
      %v3221 = vld [vmem:[%s2823 + $0xe0] sm:$0xf0]
      %v3222 = vld [vmem:[%s2823 + $0xe8] sm:$0xf]
      %v3223 = vld [vmem:[%s2823 + $0xf0] sm:$0xf0]
      %v3224 = vld [vmem:[%s2823 + $0xf8] sm:$0xf]
      %v3257 = vrot.slane %v3193, 4
      %v3258 = vrot.slane %v3194, 4
      %v3259 = vsel %vm1424, %v3257, %v3258
      %v3260 = vrot.slane %v3195, 4
      %v3261 = vrot.slane %v3196, 4
      %v3262 = vsel %vm1424, %v3260, %v3261
      %v3263 = vrot.slane %v3197, 4
      %v3264 = vrot.slane %v3198, 4
      %v3265 = vsel %vm1424, %v3263, %v3264
      %v3266 = vrot.slane %v3199, 4
      %v3267 = vrot.slane %v3200, 4
      %v3268 = vsel %vm1424, %v3266, %v3267
      %v3269 = vrot.slane %v3201, 4
      %v3270 = vrot.slane %v3202, 4
      %v3271 = vsel %vm1424, %v3269, %v3270
      %v3272 = vrot.slane %v3203, 4
      %v3273 = vrot.slane %v3204, 4
      %v3274 = vsel %vm1424, %v3272, %v3273
      %v3275 = vrot.slane %v3205, 4
      %v3276 = vrot.slane %v3206, 4
      %v3277 = vsel %vm1424, %v3275, %v3276
      %v3278 = vrot.slane %v3207, 4
      %v3279 = vrot.slane %v3208, 4
      %v3280 = vsel %vm1424, %v3278, %v3279
      %v3281 = vrot.slane %v3209, 4
      %v3282 = vrot.slane %v3210, 4
      %v3283 = vsel %vm1424, %v3281, %v3282
      %v3284 = vrot.slane %v3211, 4
      %v3285 = vrot.slane %v3212, 4
      %v3286 = vsel %vm1424, %v3284, %v3285
      %v3287 = vrot.slane %v3213, 4
      %v3288 = vrot.slane %v3214, 4
      %v3289 = vsel %vm1424, %v3287, %v3288
      %v3290 = vrot.slane %v3215, 4
      %v3291 = vrot.slane %v3216, 4
      %v3292 = vsel %vm1424, %v3290, %v3291
      %v3293 = vrot.slane %v3217, 4
      %v3294 = vrot.slane %v3218, 4
      %v3295 = vsel %vm1424, %v3293, %v3294
      %v3296 = vrot.slane %v3219, 4
      %v3297 = vrot.slane %v3220, 4
      %v3298 = vsel %vm1424, %v3296, %v3297
      %v3299 = vrot.slane %v3221, 4
      %v3300 = vrot.slane %v3222, 4
      %v3301 = vsel %vm1424, %v3299, %v3300
      %v3302 = vrot.slane %v3223, 4
      %v3303 = vrot.slane %v3224, 4
      %v3304 = vsel %vm1424, %v3302, %v3303
      %3305 = vrot.lane.b32.xlu0 %v3259, 56
      %v3306 = vpop.permute.xlu0 %3305
      %3307 = vrot.lane.b32.xlu0 %v3262, 56
      %v3308 = vpop.permute.xlu0 %3307
      %3309 = vrot.lane.b32.xlu0 %v3265, 56
      %v3310 = vpop.permute.xlu0 %3309
      %3311 = vrot.lane.b32.xlu0 %v3268, 56
      %v3312 = vpop.permute.xlu0 %3311
      %3313 = vrot.lane.b32.xlu0 %v3271, 56
      %v3314 = vpop.permute.xlu0 %3313
      %3315 = vrot.lane.b32.xlu0 %v3274, 56
      %v3316 = vpop.permute.xlu0 %3315
      %3317 = vrot.lane.b32.xlu0 %v3277, 56
      %v3318 = vpop.permute.xlu0 %3317
      %3319 = vrot.lane.b32.xlu0 %v3280, 56
      %v3320 = vpop.permute.xlu0 %3319
      %3321 = vrot.lane.b32.xlu0 %v3283, 56
      %v3322 = vpop.permute.xlu0 %3321
      %3323 = vrot.lane.b32.xlu0 %v3286, 56
      %v3324 = vpop.permute.xlu0 %3323
      %3325 = vrot.lane.b32.xlu0 %v3289, 56
      %v3326 = vpop.permute.xlu0 %3325
      %3327 = vrot.lane.b32.xlu0 %v3292, 56
      %v3328 = vpop.permute.xlu0 %3327
      %3329 = vrot.lane.b32.xlu0 %v3295, 56
      %v3330 = vpop.permute.xlu0 %3329
      %3331 = vrot.lane.b32.xlu0 %v3298, 56
      %v3332 = vpop.permute.xlu0 %3331
      %3333 = vrot.lane.b32.xlu0 %v3301, 56
      %v3334 = vpop.permute.xlu0 %3333
      %3335 = vrot.lane.b32.xlu0 %v3304, 56
      %v3336 = vpop.permute.xlu0 %3335
      %vm3353 = vcmask 523712
      %3354 = vst.msk [vmem:[#allocation3] sm:$0xff] %vm3353, %v3306
      %3355 = vst.msk [vmem:[#allocation3 + $0x8] sm:$0xff] %vm3353, %v3308
      %3356 = vst.msk [vmem:[#allocation3 + $0x10] sm:$0xff] %vm3353, %v3310
      %3357 = vst.msk [vmem:[#allocation3 + $0x18] sm:$0xff] %vm3353, %v3312
      %3358 = vst.msk [vmem:[#allocation3 + $0x20] sm:$0xff] %vm3353, %v3314
      %3359 = vst.msk [vmem:[#allocation3 + $0x28] sm:$0xff] %vm3353, %v3316
      %3360 = vst.msk [vmem:[#allocation3 + $0x30] sm:$0xff] %vm3353, %v3318
      %3361 = vst.msk [vmem:[#allocation3 + $0x38] sm:$0xff] %vm3353, %v3320
      %3362 = vst.msk [vmem:[#allocation3 + $0x40] sm:$0xff] %vm3353, %v3322
      %3363 = vst.msk [vmem:[#allocation3 + $0x48] sm:$0xff] %vm3353, %v3324
      %3364 = vst.msk [vmem:[#allocation3 + $0x50] sm:$0xff] %vm3353, %v3326
      %3365 = vst.msk [vmem:[#allocation3 + $0x58] sm:$0xff] %vm3353, %v3328
      %3366 = vst.msk [vmem:[#allocation3 + $0x60] sm:$0xff] %vm3353, %v3330
      %3367 = vst.msk [vmem:[#allocation3 + $0x68] sm:$0xff] %vm3353, %v3332
      %3368 = vst.msk [vmem:[#allocation3 + $0x70] sm:$0xff] %vm3353, %v3334
      %3369 = vst.msk [vmem:[#allocation3 + $0x78] sm:$0xff] %vm3353, %v3336
      %v3370 = vld [vmem:[%s2823] sm:$0xf0]
      %v3371 = vld [vmem:[%s2823 + $0x8] sm:$0x1f]
      %v3372 = vld [vmem:[%s2823 + $0x10] sm:$0xf0]
      %v3373 = vld [vmem:[%s2823 + $0x18] sm:$0x1f]
      %v3374 = vld [vmem:[%s2823 + $0x20] sm:$0xf0]
      %v3375 = vld [vmem:[%s2823 + $0x28] sm:$0x1f]
      %v3376 = vld [vmem:[%s2823 + $0x30] sm:$0xf0]
      %v3377 = vld [vmem:[%s2823 + $0x38] sm:$0x1f]
      %v3378 = vld [vmem:[%s2823 + $0x40] sm:$0xf0]
      %v3379 = vld [vmem:[%s2823 + $0x48] sm:$0x1f]
      %v3380 = vld [vmem:[%s2823 + $0x50] sm:$0xf0]
      %v3381 = vld [vmem:[%s2823 + $0x58] sm:$0x1f]
      %v3382 = vld [vmem:[%s2823 + $0x60] sm:$0xf0]
      %v3383 = vld [vmem:[%s2823 + $0x68] sm:$0x1f]
      %v3384 = vld [vmem:[%s2823 + $0x70] sm:$0xf0]
      %v3385 = vld [vmem:[%s2823 + $0x78] sm:$0x1f]
      %v3386 = vld [vmem:[%s2823 + $0x80] sm:$0xf0]
      %v3387 = vld [vmem:[%s2823 + $0x88] sm:$0x1f]
      %v3388 = vld [vmem:[%s2823 + $0x90] sm:$0xf0]
      %v3389 = vld [vmem:[%s2823 + $0x98] sm:$0x1f]
      %v3390 = vld [vmem:[%s2823 + $0xa0] sm:$0xf0]
      %v3391 = vld [vmem:[%s2823 + $0xa8] sm:$0x1f]
      %v3392 = vld [vmem:[%s2823 + $0xb0] sm:$0xf0]
      %v3393 = vld [vmem:[%s2823 + $0xb8] sm:$0x1f]
      %v3394 = vld [vmem:[%s2823 + $0xc0] sm:$0xf0]
      %v3395 = vld [vmem:[%s2823 + $0xc8] sm:$0x1f]
      %v3396 = vld [vmem:[%s2823 + $0xd0] sm:$0xf0]
      %v3397 = vld [vmem:[%s2823 + $0xd8] sm:$0x1f]
      %v3398 = vld [vmem:[%s2823 + $0xe0] sm:$0xf0]
      %v3399 = vld [vmem:[%s2823 + $0xe8] sm:$0x1f]
      %v3400 = vld [vmem:[%s2823 + $0xf0] sm:$0xf0]
      %v3401 = vld [vmem:[%s2823 + $0xf8] sm:$0x1f]
      %v3403 = vshrl.u32 %v3370, 16
      %v3405 = vrot.slane %v3403, 4
      %v3406 = vshll.u32 %v3370, 16
      %v3408 = vrot.slane %v3406, 5
      %v3409 = vor.u32 %v3405, %v3408
      %v3411 = vshrl.u32 %v3371, 16
      %v3413 = vrot.slane %v3411, 4
      %v3414 = vshll.u32 %v3371, 16
      %v3416 = vrot.slane %v3414, 5
      %v3417 = vor.u32 %v3413, %v3416
      %v3418 = vsel %vm1570, %v3409, %v3417
      %v3420 = vshrl.u32 %v3372, 16
      %v3422 = vrot.slane %v3420, 4
      %v3423 = vshll.u32 %v3372, 16
      %v3425 = vrot.slane %v3423, 5
      %v3426 = vor.u32 %v3422, %v3425
      %v3428 = vshrl.u32 %v3373, 16
      %v3430 = vrot.slane %v3428, 4
      %v3431 = vshll.u32 %v3373, 16
      %v3433 = vrot.slane %v3431, 5
      %v3434 = vor.u32 %v3430, %v3433
      %v3435 = vsel %vm1570, %v3426, %v3434
      %v3437 = vshrl.u32 %v3374, 16
      %v3439 = vrot.slane %v3437, 4
      %v3440 = vshll.u32 %v3374, 16
      %v3442 = vrot.slane %v3440, 5
      %v3443 = vor.u32 %v3439, %v3442
      %v3445 = vshrl.u32 %v3375, 16
      %v3447 = vrot.slane %v3445, 4
      %v3448 = vshll.u32 %v3375, 16
      %v3450 = vrot.slane %v3448, 5
      %v3451 = vor.u32 %v3447, %v3450
      %v3452 = vsel %vm1570, %v3443, %v3451
      %v3454 = vshrl.u32 %v3376, 16
      %v3456 = vrot.slane %v3454, 4
      %v3457 = vshll.u32 %v3376, 16
      %v3459 = vrot.slane %v3457, 5
      %v3460 = vor.u32 %v3456, %v3459
      %v3462 = vshrl.u32 %v3377, 16
      %v3464 = vrot.slane %v3462, 4
      %v3465 = vshll.u32 %v3377, 16
      %v3467 = vrot.slane %v3465, 5
      %v3468 = vor.u32 %v3464, %v3467
      %v3469 = vsel %vm1570, %v3460, %v3468
      %v3471 = vshrl.u32 %v3378, 16
      %v3473 = vrot.slane %v3471, 4
      %v3474 = vshll.u32 %v3378, 16
      %v3476 = vrot.slane %v3474, 5
      %v3477 = vor.u32 %v3473, %v3476
      %v3479 = vshrl.u32 %v3379, 16
      %v3481 = vrot.slane %v3479, 4
      %v3482 = vshll.u32 %v3379, 16
      %v3484 = vrot.slane %v3482, 5
      %v3485 = vor.u32 %v3481, %v3484
      %v3486 = vsel %vm1570, %v3477, %v3485
      %v3488 = vshrl.u32 %v3380, 16
      %v3490 = vrot.slane %v3488, 4
      %v3491 = vshll.u32 %v3380, 16
      %v3493 = vrot.slane %v3491, 5
      %v3494 = vor.u32 %v3490, %v3493
      %v3496 = vshrl.u32 %v3381, 16
      %v3498 = vrot.slane %v3496, 4
      %v3499 = vshll.u32 %v3381, 16
      %v3501 = vrot.slane %v3499, 5
      %v3502 = vor.u32 %v3498, %v3501
      %v3503 = vsel %vm1570, %v3494, %v3502
      %v3505 = vshrl.u32 %v3382, 16
      %v3507 = vrot.slane %v3505, 4
      %v3508 = vshll.u32 %v3382, 16
      %v3510 = vrot.slane %v3508, 5
      %v3511 = vor.u32 %v3507, %v3510
      %v3513 = vshrl.u32 %v3383, 16
      %v3515 = vrot.slane %v3513, 4
      %v3516 = vshll.u32 %v3383, 16
      %v3518 = vrot.slane %v3516, 5
      %v3519 = vor.u32 %v3515, %v3518
      %v3520 = vsel %vm1570, %v3511, %v3519
      %v3522 = vshrl.u32 %v3384, 16
      %v3524 = vrot.slane %v3522, 4
      %v3525 = vshll.u32 %v3384, 16
      %v3527 = vrot.slane %v3525, 5
      %v3528 = vor.u32 %v3524, %v3527
      %v3530 = vshrl.u32 %v3385, 16
      %v3532 = vrot.slane %v3530, 4
      %v3533 = vshll.u32 %v3385, 16
      %v3535 = vrot.slane %v3533, 5
      %v3536 = vor.u32 %v3532, %v3535
      %v3537 = vsel %vm1570, %v3528, %v3536
      %v3539 = vshrl.u32 %v3386, 16
      %v3541 = vrot.slane %v3539, 4
      %v3542 = vshll.u32 %v3386, 16
      %v3544 = vrot.slane %v3542, 5
      %v3545 = vor.u32 %v3541, %v3544
      %v3547 = vshrl.u32 %v3387, 16
      %v3549 = vrot.slane %v3547, 4
      %v3550 = vshll.u32 %v3387, 16
      %v3552 = vrot.slane %v3550, 5
      %v3553 = vor.u32 %v3549, %v3552
      %v3554 = vsel %vm1570, %v3545, %v3553
      %v3556 = vshrl.u32 %v3388, 16
      %v3558 = vrot.slane %v3556, 4
      %v3559 = vshll.u32 %v3388, 16
      %v3561 = vrot.slane %v3559, 5
      %v3562 = vor.u32 %v3558, %v3561
      %v3564 = vshrl.u32 %v3389, 16
      %v3566 = vrot.slane %v3564, 4
      %v3567 = vshll.u32 %v3389, 16
      %v3569 = vrot.slane %v3567, 5
      %v3570 = vor.u32 %v3566, %v3569
      %v3571 = vsel %vm1570, %v3562, %v3570
      %v3573 = vshrl.u32 %v3390, 16
      %v3575 = vrot.slane %v3573, 4
      %v3576 = vshll.u32 %v3390, 16
      %v3578 = vrot.slane %v3576, 5
      %v3579 = vor.u32 %v3575, %v3578
      %v3581 = vshrl.u32 %v3391, 16
      %v3583 = vrot.slane %v3581, 4
      %v3584 = vshll.u32 %v3391, 16
      %v3586 = vrot.slane %v3584, 5
      %v3587 = vor.u32 %v3583, %v3586
      %v3588 = vsel %vm1570, %v3579, %v3587
      %v3590 = vshrl.u32 %v3392, 16
      %v3592 = vrot.slane %v3590, 4
      %v3593 = vshll.u32 %v3392, 16
      %v3595 = vrot.slane %v3593, 5
      %v3596 = vor.u32 %v3592, %v3595
      %v3598 = vshrl.u32 %v3393, 16
      %v3600 = vrot.slane %v3598, 4
      %v3601 = vshll.u32 %v3393, 16
      %v3603 = vrot.slane %v3601, 5
      %v3604 = vor.u32 %v3600, %v3603
      %v3605 = vsel %vm1570, %v3596, %v3604
      %v3607 = vshrl.u32 %v3394, 16
      %v3609 = vrot.slane %v3607, 4
      %v3610 = vshll.u32 %v3394, 16
      %v3612 = vrot.slane %v3610, 5
      %v3613 = vor.u32 %v3609, %v3612
      %v3615 = vshrl.u32 %v3395, 16
      %v3617 = vrot.slane %v3615, 4
      %v3618 = vshll.u32 %v3395, 16
      %v3620 = vrot.slane %v3618, 5
      %v3621 = vor.u32 %v3617, %v3620
      %v3622 = vsel %vm1570, %v3613, %v3621
      %v3624 = vshrl.u32 %v3396, 16
      %v3626 = vrot.slane %v3624, 4
      %v3627 = vshll.u32 %v3396, 16
      %v3629 = vrot.slane %v3627, 5
      %v3630 = vor.u32 %v3626, %v3629
      %v3632 = vshrl.u32 %v3397, 16
      %v3634 = vrot.slane %v3632, 4
      %v3635 = vshll.u32 %v3397, 16
      %v3637 = vrot.slane %v3635, 5
      %v3638 = vor.u32 %v3634, %v3637
      %v3639 = vsel %vm1570, %v3630, %v3638
      %v3641 = vshrl.u32 %v3398, 16
      %v3643 = vrot.slane %v3641, 4
      %v3644 = vshll.u32 %v3398, 16
      %v3646 = vrot.slane %v3644, 5
      %v3647 = vor.u32 %v3643, %v3646
      %v3649 = vshrl.u32 %v3399, 16
      %v3651 = vrot.slane %v3649, 4
      %v3652 = vshll.u32 %v3399, 16
      %v3654 = vrot.slane %v3652, 5
      %v3655 = vor.u32 %v3651, %v3654
      %v3656 = vsel %vm1570, %v3647, %v3655
      %v3658 = vshrl.u32 %v3400, 16
      %v3660 = vrot.slane %v3658, 4
      %v3661 = vshll.u32 %v3400, 16
      %v3663 = vrot.slane %v3661, 5
      %v3664 = vor.u32 %v3660, %v3663
      %v3666 = vshrl.u32 %v3401, 16
      %v3668 = vrot.slane %v3666, 4
      %v3669 = vshll.u32 %v3401, 16
      %v3671 = vrot.slane %v3669, 5
      %v3672 = vor.u32 %v3668, %v3671
      %v3673 = vsel %vm1570, %v3664, %v3672
      %3674 = vrot.lane.b32.xlu0 %v3418, 64
      %v3675 = vpop.permute.xlu0 %3674
      %3676 = vrot.lane.b32.xlu0 %v3435, 64
      %v3677 = vpop.permute.xlu0 %3676
      %3678 = vrot.lane.b32.xlu0 %v3452, 64
      %v3679 = vpop.permute.xlu0 %3678
      %3680 = vrot.lane.b32.xlu0 %v3469, 64
      %v3681 = vpop.permute.xlu0 %3680
      %3682 = vrot.lane.b32.xlu0 %v3486, 64
      %v3683 = vpop.permute.xlu0 %3682
      %3684 = vrot.lane.b32.xlu0 %v3503, 64
      %v3685 = vpop.permute.xlu0 %3684
      %3686 = vrot.lane.b32.xlu0 %v3520, 64
      %v3687 = vpop.permute.xlu0 %3686
      %3688 = vrot.lane.b32.xlu0 %v3537, 64
      %v3689 = vpop.permute.xlu0 %3688
      %3690 = vrot.lane.b32.xlu0 %v3554, 64
      %v3691 = vpop.permute.xlu0 %3690
      %3692 = vrot.lane.b32.xlu0 %v3571, 64
      %v3693 = vpop.permute.xlu0 %3692
      %3694 = vrot.lane.b32.xlu0 %v3588, 64
      %v3695 = vpop.permute.xlu0 %3694
      %3696 = vrot.lane.b32.xlu0 %v3605, 64
      %v3697 = vpop.permute.xlu0 %3696
      %3698 = vrot.lane.b32.xlu0 %v3622, 64
      %v3699 = vpop.permute.xlu0 %3698
      %3700 = vrot.lane.b32.xlu0 %v3639, 64
      %v3701 = vpop.permute.xlu0 %3700
      %3702 = vrot.lane.b32.xlu0 %v3656, 64
      %v3703 = vpop.permute.xlu0 %3702
      %3704 = vrot.lane.b32.xlu0 %v3673, 64
      %v3705 = vpop.permute.xlu0 %3704
      %vm3722 = vcmask 589312
      %3723 = vst.msk [vmem:[#allocation3] sm:$0xff] %vm3722, %v3675
      %3724 = vst.msk [vmem:[#allocation3 + $0x8] sm:$0xff] %vm3722, %v3677
      %3725 = vst.msk [vmem:[#allocation3 + $0x10] sm:$0xff] %vm3722, %v3679
      %3726 = vst.msk [vmem:[#allocation3 + $0x18] sm:$0xff] %vm3722, %v3681
      %3727 = vst.msk [vmem:[#allocation3 + $0x20] sm:$0xff] %vm3722, %v3683
      %3728 = vst.msk [vmem:[#allocation3 + $0x28] sm:$0xff] %vm3722, %v3685
      %3729 = vst.msk [vmem:[#allocation3 + $0x30] sm:$0xff] %vm3722, %v3687
      %3730 = vst.msk [vmem:[#allocation3 + $0x38] sm:$0xff] %vm3722, %v3689
      %3731 = vst.msk [vmem:[#allocation3 + $0x40] sm:$0xff] %vm3722, %v3691
      %3732 = vst.msk [vmem:[#allocation3 + $0x48] sm:$0xff] %vm3722, %v3693
      %3733 = vst.msk [vmem:[#allocation3 + $0x50] sm:$0xff] %vm3722, %v3695
      %3734 = vst.msk [vmem:[#allocation3 + $0x58] sm:$0xff] %vm3722, %v3697
      %3735 = vst.msk [vmem:[#allocation3 + $0x60] sm:$0xff] %vm3722, %v3699
      %3736 = vst.msk [vmem:[#allocation3 + $0x68] sm:$0xff] %vm3722, %v3701
      %3737 = vst.msk [vmem:[#allocation3 + $0x70] sm:$0xff] %vm3722, %v3703
      %3738 = vst.msk [vmem:[#allocation3 + $0x78] sm:$0xff] %vm3722, %v3705
      %v3739 = vld [vmem:[#allocation3] sm:$0xff]
      %v3740 = vld [vmem:[#allocation3 + $0x8] sm:$0xff]
      %v3741 = vld [vmem:[#allocation3 + $0x10] sm:$0xff]
      %v3742 = vld [vmem:[#allocation3 + $0x18] sm:$0xff]
      %v3743 = vld [vmem:[#allocation3 + $0x20] sm:$0xff]
      %v3744 = vld [vmem:[#allocation3 + $0x28] sm:$0xff]
      %v3745 = vld [vmem:[#allocation3 + $0x30] sm:$0xff]
      %v3746 = vld [vmem:[#allocation3 + $0x38] sm:$0xff]
      %v3747 = vld [vmem:[#allocation3 + $0x40] sm:$0xff]
      %v3748 = vld [vmem:[#allocation3 + $0x48] sm:$0xff]
      %v3749 = vld [vmem:[#allocation3 + $0x50] sm:$0xff]
      %v3750 = vld [vmem:[#allocation3 + $0x58] sm:$0xff]
      %v3751 = vld [vmem:[#allocation3 + $0x60] sm:$0xff]
      %v3752 = vld [vmem:[#allocation3 + $0x68] sm:$0xff]
      %v3753 = vld [vmem:[#allocation3 + $0x70] sm:$0xff]
      %v3754 = vld [vmem:[#allocation3 + $0x78] sm:$0xff]
      %v3755 = vld [vmem:[%s4] sm:$0xf]
      %v3756 = vld [vmem:[%s4 + $0x4] sm:$0xf]
      %v3757 = vld [vmem:[%s4 + $0x8] sm:$0xf]
      %v3758 = vld [vmem:[%s4 + $0xc] sm:$0xf]
      %v3759 = vld [vmem:[%s4 + $0x10] sm:$0xf]
      %v3760 = vld [vmem:[%s4 + $0x14] sm:$0xf]
      %v3761 = vld [vmem:[%s4 + $0x18] sm:$0xf]
      %v3762 = vld [vmem:[%s4 + $0x1c] sm:$0xf]
      %v3763 = vld [vmem:[%s4 + $0x20] sm:$0xf]
      %v3773 = vunpack.c.l.b16 %v3755
      %v3774 = vunpack.c.l.b16 %v3756
      %v3775 = vunpack.c.l.b16 %v3757
      %v3776 = vunpack.c.l.b16 %v3758
      %v3777 = vunpack.c.l.b16 %v3759
      %v3778 = vunpack.c.l.b16 %v3760
      %v3779 = vunpack.c.l.b16 %v3761
      %v3780 = vunpack.c.l.b16 %v3762
      %v3781 = vunpack.c.l.b16 %v3763
      %v3782 = vpack.c.b16 %v3774, %v3773
      %v3783 = vpack.c.b16 %v3776, %v3775
      %v3784 = vpack.c.b16 %v3778, %v3777
      %v3785 = vpack.c.b16 %v3780, %v3779
      %v3786 = vpack.c.b16 %v3781, %v3781
      %vm3791 = vcmask 588800
      %v3793 = vsel %vm3791, %v3739, 0
      %v3796 = vsel %vm3791, %v3740, 0
      %v3799 = vsel %vm3791, %v3741, 0
      %v3802 = vsel %vm3791, %v3742, 0
      %v3805 = vsel %vm3791, %v3743, 0
      %v3808 = vsel %vm3791, %v3744, 0
      %v3811 = vsel %vm3791, %v3745, 0
      %v3814 = vsel %vm3791, %v3746, 0
      %v3817 = vsel %vm3791, %v3747, 0
      %v3820 = vsel %vm3791, %v3748, 0
      %v3823 = vsel %vm3791, %v3749, 0
      %v3826 = vsel %vm3791, %v3750, 0
      %v3829 = vsel %vm3791, %v3751, 0
      %v3832 = vsel %vm3791, %v3752, 0
      %v3835 = vsel %vm3791, %v3753, 0
      %v3838 = vsel %vm3791, %v3754, 0
      %vm3840 = vcmask 1043456
      %v3842 = vsel %vm3840, %v3786, 0
      %3844 = vmatprep.subr.bf16.mxu0 0
      %3845 = vmatpush1.bf16.msra.mxu0 %v3782
      %3846 = vmatprep.subr.bf16.mxu0 0
      %3847 = vmatpush1.bf16.msra.mxu0 %v3783
      %3848 = vmatprep.subr.bf16.mxu0 0
      %3849 = vmatpush1.bf16.msra.mxu0 %v3784
      %3850 = vmatprep.subr.bf16.mxu0 0
      %3851 = vmatpush1.bf16.msra.mxu0 %v3785
      %3852 = vmatprep.subr.bf16.mxu0 0
      %3853 = vmatpush1.bf16.msra.mxu0 %v3842
      %3854 = vmatprep.subr.bf16.mxu0 0
      %3855 = vmatpush1.bf16.msra.mxu0 0
      %3856 = vmatprep.subr.bf16.mxu0 0
      %3857 = vmatpush1.bf16.msra.mxu0 0
      %3858 = vmatprep.subr.bf16.mxu0 0
      %3859 = vmatpush1.bf16.msra.mxu0 0
      %3860 = vmatprep.subr.bf16.mxu0 0
      %3861 = vmatpush1.bf16.msra.mxu0 0
      %3862 = vmatprep.subr.bf16.mxu0 0
      %3863 = vmatpush1.bf16.msra.mxu0 0
      %3864 = vmatprep.subr.bf16.mxu0 0
      %3865 = vmatpush1.bf16.msra.mxu0 0
      %3866 = vmatprep.subr.bf16.mxu0 0
      %3867 = vmatpush1.bf16.msra.mxu0 0
      %3868 = vmatprep.subr.bf16.mxu0 0
      %3869 = vmatpush1.bf16.msra.mxu0 0
      %3870 = vmatprep.subr.bf16.mxu0 0
      %3871 = vmatpush1.bf16.msra.mxu0 0
      %3872 = vmatprep.subr.bf16.mxu0 0
      %3873 = vmatpush1.bf16.msra.mxu0 0
      %3874 = vmatprep.subr.bf16.mxu0 0
      %3875 = vmatpush1.bf16.msra.mxu0 0
      %3876 = vmatprep.mubr.bf16.mxu0 0
      %3877 = vmatmul.mubr.bf16.gmra.mrb[0].mxu0 %v3793
      %v3878 = vpop.f32.mrb[0].mxu0
      %v3879 = vadd.f32 0.0, %v3878
      %v3880 = vpop.f32.mrb[0].mxu0
      %v3881 = vpop.f32.mrb[0].mxu0
      %v3882 = vadd.f32 0.0, %v3881
      %v3883 = vpop.f32.mrb[0].mxu0
      %3884 = vmatprep.mubr.bf16.mxu0 0
      %3885 = vmatmul.mubr.bf16.gmra.mrb[0].mxu0 %v3796
      %v3886 = vpop.f32.mrb[0].mxu0
      %v3887 = vadd.f32 0.0, %v3886
      %v3888 = vpop.f32.mrb[0].mxu0
      %v3889 = vpop.f32.mrb[0].mxu0
      %v3890 = vadd.f32 0.0, %v3889
      %v3891 = vpop.f32.mrb[0].mxu0
      %3892 = vmatprep.mubr.bf16.mxu0 0
      %3893 = vmatmul.mubr.bf16.gmra.mrb[0].mxu0 %v3799
      %v3894 = vpop.f32.mrb[0].mxu0
      %v3895 = vadd.f32 0.0, %v3894
      %v3896 = vpop.f32.mrb[0].mxu0
      %v3897 = vpop.f32.mrb[0].mxu0
      %v3898 = vadd.f32 0.0, %v3897
      %v3899 = vpop.f32.mrb[0].mxu0
      %3900 = vmatprep.mubr.bf16.mxu0 0
      %3901 = vmatmul.mubr.bf16.gmra.mrb[0].mxu0 %v3802
      %v3902 = vpop.f32.mrb[0].mxu0
      %v3903 = vadd.f32 0.0, %v3902
      %v3904 = vpop.f32.mrb[0].mxu0
      %v3905 = vpop.f32.mrb[0].mxu0
      %v3906 = vadd.f32 0.0, %v3905
      %v3907 = vpop.f32.mrb[0].mxu0
      %3908 = vmatprep.mubr.bf16.mxu0 0
      %3909 = vmatmul.mubr.bf16.gmra.mrb[0].mxu0 %v3805
      %v3910 = vpop.f32.mrb[0].mxu0
      %v3911 = vadd.f32 0.0, %v3910
      %v3912 = vpop.f32.mrb[0].mxu0
      %v3913 = vpop.f32.mrb[0].mxu0
      %v3914 = vadd.f32 0.0, %v3913
      %v3915 = vpop.f32.mrb[0].mxu0
      %3916 = vmatprep.mubr.bf16.mxu0 0
      %3917 = vmatmul.mubr.bf16.gmra.mrb[0].mxu0 %v3808
      %v3918 = vpop.f32.mrb[0].mxu0
      %v3919 = vadd.f32 0.0, %v3918
      %v3920 = vpop.f32.mrb[0].mxu0
      %v3921 = vpop.f32.mrb[0].mxu0
      %v3922 = vadd.f32 0.0, %v3921
      %v3923 = vpop.f32.mrb[0].mxu0
      %3924 = vmatprep.mubr.bf16.mxu0 0
      %3925 = vmatmul.mubr.bf16.gmra.mrb[0].mxu0 %v3811
      %v3926 = vpop.f32.mrb[0].mxu0
      %v3927 = vadd.f32 0.0, %v3926
      %v3928 = vpop.f32.mrb[0].mxu0
      %v3929 = vpop.f32.mrb[0].mxu0
      %v3930 = vadd.f32 0.0, %v3929
      %v3931 = vpop.f32.mrb[0].mxu0
      %3932 = vmatprep.mubr.bf16.mxu0 0
      %3933 = vmatmul.mubr.bf16.gmra.mrb[0].mxu0 %v3814
      %v3934 = vpop.f32.mrb[0].mxu0
      %v3935 = vadd.f32 0.0, %v3934
      %v3936 = vpop.f32.mrb[0].mxu0
      %v3937 = vpop.f32.mrb[0].mxu0
      %v3938 = vadd.f32 0.0, %v3937
      %v3939 = vpop.f32.mrb[0].mxu0
      %3940 = vmatprep.mubr.bf16.mxu0 0
      %3941 = vmatmul.mubr.bf16.gmra.mrb[0].mxu0 %v3817
      %v3942 = vpop.f32.mrb[0].mxu0
      %v3943 = vadd.f32 0.0, %v3942
      %v3944 = vpop.f32.mrb[0].mxu0
      %v3945 = vpop.f32.mrb[0].mxu0
      %v3946 = vadd.f32 0.0, %v3945
      %v3947 = vpop.f32.mrb[0].mxu0
      %3948 = vmatprep.mubr.bf16.mxu0 0
      %3949 = vmatmul.mubr.bf16.gmra.mrb[0].mxu0 %v3820
      %v3950 = vpop.f32.mrb[0].mxu0
      %v3951 = vadd.f32 0.0, %v3950
      %v3952 = vpop.f32.mrb[0].mxu0
      %v3953 = vpop.f32.mrb[0].mxu0
      %v3954 = vadd.f32 0.0, %v3953
      %v3955 = vpop.f32.mrb[0].mxu0
      %3956 = vmatprep.mubr.bf16.mxu0 0
      %3957 = vmatmul.mubr.bf16.gmra.mrb[0].mxu0 %v3823
      %v3958 = vpop.f32.mrb[0].mxu0
      %v3959 = vadd.f32 0.0, %v3958
      %v3960 = vpop.f32.mrb[0].mxu0
      %v3961 = vpop.f32.mrb[0].mxu0
      %v3962 = vadd.f32 0.0, %v3961
      %v3963 = vpop.f32.mrb[0].mxu0
      %3964 = vmatprep.mubr.bf16.mxu0 0
      %3965 = vmatmul.mubr.bf16.gmra.mrb[0].mxu0 %v3826
      %v3966 = vpop.f32.mrb[0].mxu0
      %v3967 = vadd.f32 0.0, %v3966
      %v3968 = vpop.f32.mrb[0].mxu0
      %v3969 = vpop.f32.mrb[0].mxu0
      %v3970 = vadd.f32 0.0, %v3969
      %v3971 = vpop.f32.mrb[0].mxu0
      %3972 = vmatprep.mubr.bf16.mxu0 0
      %3973 = vmatmul.mubr.bf16.gmra.mrb[0].mxu0 %v3829
      %v3974 = vpop.f32.mrb[0].mxu0
      %v3975 = vadd.f32 0.0, %v3974
      %v3976 = vpop.f32.mrb[0].mxu0
      %v3977 = vpop.f32.mrb[0].mxu0
      %v3978 = vadd.f32 0.0, %v3977
      %v3979 = vpop.f32.mrb[0].mxu0
      %3980 = vmatprep.mubr.bf16.mxu0 0
      %3981 = vmatmul.mubr.bf16.gmra.mrb[0].mxu0 %v3832
      %v3982 = vpop.f32.mrb[0].mxu0
      %v3983 = vadd.f32 0.0, %v3982
      %v3984 = vpop.f32.mrb[0].mxu0
      %v3985 = vpop.f32.mrb[0].mxu0
      %v3986 = vadd.f32 0.0, %v3985
      %v3987 = vpop.f32.mrb[0].mxu0
      %3988 = vmatprep.mubr.bf16.mxu0 0
      %3989 = vmatmul.mubr.bf16.gmra.mrb[0].mxu0 %v3835
      %v3990 = vpop.f32.mrb[0].mxu0
      %v3991 = vadd.f32 0.0, %v3990
      %v3992 = vpop.f32.mrb[0].mxu0
      %v3993 = vpop.f32.mrb[0].mxu0
      %v3994 = vadd.f32 0.0, %v3993
      %v3995 = vpop.f32.mrb[0].mxu0
      %3996 = vmatprep.mubr.bf16.mxu0 0
      %3997 = vmatmul.mubr.bf16.gmra.mrb[0].mxu0 %v3838
      %v3998 = vpop.f32.mrb[0].mxu0
      %v3999 = vadd.f32 0.0, %v3998
      %v4000 = vpop.f32.mrb[0].mxu0
      %v4001 = vpop.f32.mrb[0].mxu0
      %v4002 = vadd.f32 0.0, %v4001
      %v4003 = vpop.f32.mrb[0].mxu0
      %4004 = vdwg.mxu0
      %v4005 = vld [vmem:[%s5] sm:$0x1]
      %v4007 = vlaneseq
      %v4008 = vshrl.u32 %v4007, 7
      %v4009 = vsub.s32 0, %v4008
      %v4010 = vrot.slane %v4005, %v4009
      %v4012 = vmul.f32 %v3879, %v4010
      %v4013 = vmul.f32 %v3882, %v4010
      %v4014 = vmul.f32 %v3887, %v4010
      %v4015 = vmul.f32 %v3890, %v4010
      %v4016 = vmul.f32 %v3895, %v4010
      %v4017 = vmul.f32 %v3898, %v4010
      %v4018 = vmul.f32 %v3903, %v4010
      %v4019 = vmul.f32 %v3906, %v4010
      %v4020 = vmul.f32 %v3911, %v4010
      %v4021 = vmul.f32 %v3914, %v4010
      %v4022 = vmul.f32 %v3919, %v4010
      %v4023 = vmul.f32 %v3922, %v4010
      %v4024 = vmul.f32 %v3927, %v4010
      %v4025 = vmul.f32 %v3930, %v4010
      %v4026 = vmul.f32 %v3935, %v4010
      %v4027 = vmul.f32 %v3938, %v4010
      %v4028 = vmul.f32 %v3943, %v4010
      %v4029 = vmul.f32 %v3946, %v4010
      %v4030 = vmul.f32 %v3951, %v4010
      %v4031 = vmul.f32 %v3954, %v4010
      %v4032 = vmul.f32 %v3959, %v4010
      %v4033 = vmul.f32 %v3962, %v4010
      %v4034 = vmul.f32 %v3967, %v4010
      %v4035 = vmul.f32 %v3970, %v4010
      %v4036 = vmul.f32 %v3975, %v4010
      %v4037 = vmul.f32 %v3978, %v4010
      %v4038 = vmul.f32 %v3983, %v4010
      %v4039 = vmul.f32 %v3986, %v4010
      %v4040 = vmul.f32 %v3991, %v4010
      %v4041 = vmul.f32 %v3994, %v4010
      %v4042 = vmul.f32 %v3999, %v4010
      %v4043 = vmul.f32 %v4002, %v4010
      %v4044 = vld [vmem:[%s6] sm:$0x1]
      %v4046 = vlaneseq
      %v4047 = vshrl.u32 %v4046, 7
      %v4048 = vsub.s32 0, %v4047
      %v4049 = vrot.slane %v4044, %v4048
      %v4051 = vadd.f32 %v4012, %v4049
      %v4052 = vadd.f32 %v4013, %v4049
      %v4053 = vadd.f32 %v4014, %v4049
      %v4054 = vadd.f32 %v4015, %v4049
      %v4055 = vadd.f32 %v4016, %v4049
      %v4056 = vadd.f32 %v4017, %v4049
      %v4057 = vadd.f32 %v4018, %v4049
      %v4058 = vadd.f32 %v4019, %v4049
      %v4059 = vadd.f32 %v4020, %v4049
      %v4060 = vadd.f32 %v4021, %v4049
      %v4061 = vadd.f32 %v4022, %v4049
      %v4062 = vadd.f32 %v4023, %v4049
      %v4063 = vadd.f32 %v4024, %v4049
      %v4064 = vadd.f32 %v4025, %v4049
      %v4065 = vadd.f32 %v4026, %v4049
      %v4066 = vadd.f32 %v4027, %v4049
      %v4067 = vadd.f32 %v4028, %v4049
      %v4068 = vadd.f32 %v4029, %v4049
      %v4069 = vadd.f32 %v4030, %v4049
      %v4070 = vadd.f32 %v4031, %v4049
      %v4071 = vadd.f32 %v4032, %v4049
      %v4072 = vadd.f32 %v4033, %v4049
      %v4073 = vadd.f32 %v4034, %v4049
      %v4074 = vadd.f32 %v4035, %v4049
      %v4075 = vadd.f32 %v4036, %v4049
      %v4076 = vadd.f32 %v4037, %v4049
      %v4077 = vadd.f32 %v4038, %v4049
      %v4078 = vadd.f32 %v4039, %v4049
      %v4079 = vadd.f32 %v4040, %v4049
      %v4080 = vadd.f32 %v4041, %v4049
      %v4081 = vadd.f32 %v4042, %v4049
      %v4082 = vadd.f32 %v4043, %v4049
      %v4083 = vmax.f32 %v4051, 0.0
      %v4084 = vmax.f32 %v4052, 0.0
      %v4085 = vmax.f32 %v4053, 0.0
      %v4086 = vmax.f32 %v4054, 0.0
      %v4087 = vmax.f32 %v4055, 0.0
      %v4088 = vmax.f32 %v4056, 0.0
      %v4089 = vmax.f32 %v4057, 0.0
      %v4090 = vmax.f32 %v4058, 0.0
      %v4091 = vmax.f32 %v4059, 0.0
      %v4092 = vmax.f32 %v4060, 0.0
      %v4093 = vmax.f32 %v4061, 0.0
      %v4094 = vmax.f32 %v4062, 0.0
      %v4095 = vmax.f32 %v4063, 0.0
      %v4096 = vmax.f32 %v4064, 0.0
      %v4097 = vmax.f32 %v4065, 0.0
      %v4098 = vmax.f32 %v4066, 0.0
      %v4099 = vmax.f32 %v4067, 0.0
      %v4100 = vmax.f32 %v4068, 0.0
      %v4101 = vmax.f32 %v4069, 0.0
      %v4102 = vmax.f32 %v4070, 0.0
      %v4103 = vmax.f32 %v4071, 0.0
      %v4104 = vmax.f32 %v4072, 0.0
      %v4105 = vmax.f32 %v4073, 0.0
      %v4106 = vmax.f32 %v4074, 0.0
      %v4107 = vmax.f32 %v4075, 0.0
      %v4108 = vmax.f32 %v4076, 0.0
      %v4109 = vmax.f32 %v4077, 0.0
      %v4110 = vmax.f32 %v4078, 0.0
      %v4111 = vmax.f32 %v4079, 0.0
      %v4112 = vmax.f32 %v4080, 0.0
      %v4113 = vmax.f32 %v4081, 0.0
      %v4114 = vmax.f32 %v4082, 0.0
      %v4115 = vpack.c.bf16 %v4084, %v4083
      %v4116 = vpack.c.bf16 %v4086, %v4085
      %v4117 = vpack.c.bf16 %v4088, %v4087
      %v4118 = vpack.c.bf16 %v4090, %v4089
      %v4119 = vpack.c.bf16 %v4092, %v4091
      %v4120 = vpack.c.bf16 %v4094, %v4093
      %v4121 = vpack.c.bf16 %v4096, %v4095
      %v4122 = vpack.c.bf16 %v4098, %v4097
      %v4123 = vpack.c.bf16 %v4100, %v4099
      %v4124 = vpack.c.bf16 %v4102, %v4101
      %v4125 = vpack.c.bf16 %v4104, %v4103
      %v4126 = vpack.c.bf16 %v4106, %v4105
      %v4127 = vpack.c.bf16 %v4108, %v4107
      %v4128 = vpack.c.bf16 %v4110, %v4109
      %v4129 = vpack.c.bf16 %v4112, %v4111
      %v4130 = vpack.c.bf16 %v4114, %v4113
      %v4131 = vld [vmem:[%s7] sm:$0xf]
      %v4133 = vsel %vm882, %v4115, 0
      %v4136 = vsel %vm882, %v4116, 0
      %v4139 = vsel %vm882, %v4117, 0
      %v4142 = vsel %vm882, %v4118, 0
      %v4145 = vsel %vm882, %v4119, 0
      %v4148 = vsel %vm882, %v4120, 0
      %v4151 = vsel %vm882, %v4121, 0
      %v4154 = vsel %vm882, %v4122, 0
      %v4157 = vsel %vm882, %v4123, 0
      %v4160 = vsel %vm882, %v4124, 0
      %v4163 = vsel %vm882, %v4125, 0
      %v4166 = vsel %vm882, %v4126, 0
      %v4169 = vsel %vm882, %v4127, 0
      %v4172 = vsel %vm882, %v4128, 0
      %v4175 = vsel %vm882, %v4129, 0
      %v4178 = vsel %vm882, %v4130, 0
      %v4181 = vsel %vm3840, %v4131, 0
      %4183 = vmatprep.subr.bf16.mxu0 0
      %4184 = vmatpush1.bf16.msra.mxu0 %v4181
      %4185 = vmatprep.subr.bf16.mxu0 0
      %4186 = vmatpush1.bf16.msra.mxu0 0
      %4187 = vmatprep.subr.bf16.mxu0 0
      %4188 = vmatpush1.bf16.msra.mxu0 0
      %4189 = vmatprep.subr.bf16.mxu0 0
      %4190 = vmatpush1.bf16.msra.mxu0 0
      %4191 = vmatprep.subr.bf16.mxu0 0
      %4192 = vmatpush1.bf16.msra.mxu0 0
      %4193 = vmatprep.subr.bf16.mxu0 0
      %4194 = vmatpush1.bf16.msra.mxu0 0
      %4195 = vmatprep.subr.bf16.mxu0 0
      %4196 = vmatpush1.bf16.msra.mxu0 0
      %4197 = vmatprep.subr.bf16.mxu0 0
      %4198 = vmatpush1.bf16.msra.mxu0 0
      %4199 = vmatprep.subr.bf16.mxu0 0
      %4200 = vmatpush1.bf16.msra.mxu0 0
      %4201 = vmatprep.subr.bf16.mxu0 0
      %4202 = vmatpush1.bf16.msra.mxu0 0
      %4203 = vmatprep.subr.bf16.mxu0 0
      %4204 = vmatpush1.bf16.msra.mxu0 0
      %4205 = vmatprep.subr.bf16.mxu0 0
      %4206 = vmatpush1.bf16.msra.mxu0 0
      %4207 = vmatprep.subr.bf16.mxu0 0
      %4208 = vmatpush1.bf16.msra.mxu0 0
      %4209 = vmatprep.subr.bf16.mxu0 0
      %4210 = vmatpush1.bf16.msra.mxu0 0
      %4211 = vmatprep.subr.bf16.mxu0 0
      %4212 = vmatpush1.bf16.msra.mxu0 0
      %4213 = vmatprep.subr.bf16.mxu0 0
      %4214 = vmatpush1.bf16.msra.mxu0 0
      %4215 = vmatprep.mubr.bf16.mxu0 0
      %4216 = vmatmul.mubr.bf16.gmra.mrb[0].mxu0 %v4133
      %v4217 = vpop.f32.mrb[0].mxu0
      %v4218 = vadd.f32 0.0, %v4217
      %v4219 = vpop.f32.mrb[0].mxu0
      %v4220 = vpop.f32.mrb[0].mxu0
      %v4221 = vadd.f32 0.0, %v4220
      %v4222 = vpop.f32.mrb[0].mxu0
      %4223 = vmatprep.mubr.bf16.mxu0 0
      %4224 = vmatmul.mubr.bf16.gmra.mrb[0].mxu0 %v4136
      %v4225 = vpop.f32.mrb[0].mxu0
      %v4226 = vadd.f32 0.0, %v4225
      %v4227 = vpop.f32.mrb[0].mxu0
      %v4228 = vpop.f32.mrb[0].mxu0
      %v4229 = vadd.f32 0.0, %v4228
      %v4230 = vpop.f32.mrb[0].mxu0
      %4231 = vmatprep.mubr.bf16.mxu0 0
      %4232 = vmatmul.mubr.bf16.gmra.mrb[0].mxu0 %v4139
      %v4233 = vpop.f32.mrb[0].mxu0
      %v4234 = vadd.f32 0.0, %v4233
      %v4235 = vpop.f32.mrb[0].mxu0
      %v4236 = vpop.f32.mrb[0].mxu0
      %v4237 = vadd.f32 0.0, %v4236
      %v4238 = vpop.f32.mrb[0].mxu0
      %4239 = vmatprep.mubr.bf16.mxu0 0
      %4240 = vmatmul.mubr.bf16.gmra.mrb[0].mxu0 %v4142
      %v4241 = vpop.f32.mrb[0].mxu0
      %v4242 = vadd.f32 0.0, %v4241
      %v4243 = vpop.f32.mrb[0].mxu0
      %v4244 = vpop.f32.mrb[0].mxu0
      %v4245 = vadd.f32 0.0, %v4244
      %v4246 = vpop.f32.mrb[0].mxu0
      %4247 = vmatprep.mubr.bf16.mxu0 0
      %4248 = vmatmul.mubr.bf16.gmra.mrb[0].mxu0 %v4145
      %v4249 = vpop.f32.mrb[0].mxu0
      %v4250 = vadd.f32 0.0, %v4249
      %v4251 = vpop.f32.mrb[0].mxu0
      %v4252 = vpop.f32.mrb[0].mxu0
      %v4253 = vadd.f32 0.0, %v4252
      %v4254 = vpop.f32.mrb[0].mxu0
      %4255 = vmatprep.mubr.bf16.mxu0 0
      %4256 = vmatmul.mubr.bf16.gmra.mrb[0].mxu0 %v4148
      %v4257 = vpop.f32.mrb[0].mxu0
      %v4258 = vadd.f32 0.0, %v4257
      %v4259 = vpop.f32.mrb[0].mxu0
      %v4260 = vpop.f32.mrb[0].mxu0
      %v4261 = vadd.f32 0.0, %v4260
      %v4262 = vpop.f32.mrb[0].mxu0
      %4263 = vmatprep.mubr.bf16.mxu0 0
      %4264 = vmatmul.mubr.bf16.gmra.mrb[0].mxu0 %v4151
      %v4265 = vpop.f32.mrb[0].mxu0
      %v4266 = vadd.f32 0.0, %v4265
      %v4267 = vpop.f32.mrb[0].mxu0
      %v4268 = vpop.f32.mrb[0].mxu0
      %v4269 = vadd.f32 0.0, %v4268
      %v4270 = vpop.f32.mrb[0].mxu0
      %4271 = vmatprep.mubr.bf16.mxu0 0
      %4272 = vmatmul.mubr.bf16.gmra.mrb[0].mxu0 %v4154
      %v4273 = vpop.f32.mrb[0].mxu0
      %v4274 = vadd.f32 0.0, %v4273
      %v4275 = vpop.f32.mrb[0].mxu0
      %v4276 = vpop.f32.mrb[0].mxu0
      %v4277 = vadd.f32 0.0, %v4276
      %v4278 = vpop.f32.mrb[0].mxu0
      %4279 = vmatprep.mubr.bf16.mxu0 0
      %4280 = vmatmul.mubr.bf16.gmra.mrb[0].mxu0 %v4157
      %v4281 = vpop.f32.mrb[0].mxu0
      %v4282 = vadd.f32 0.0, %v4281
      %v4283 = vpop.f32.mrb[0].mxu0
      %v4284 = vpop.f32.mrb[0].mxu0
      %v4285 = vadd.f32 0.0, %v4284
      %v4286 = vpop.f32.mrb[0].mxu0
      %4287 = vmatprep.mubr.bf16.mxu0 0
      %4288 = vmatmul.mubr.bf16.gmra.mrb[0].mxu0 %v4160
      %v4289 = vpop.f32.mrb[0].mxu0
      %v4290 = vadd.f32 0.0, %v4289
      %v4291 = vpop.f32.mrb[0].mxu0
      %v4292 = vpop.f32.mrb[0].mxu0
      %v4293 = vadd.f32 0.0, %v4292
      %v4294 = vpop.f32.mrb[0].mxu0
      %4295 = vmatprep.mubr.bf16.mxu0 0
      %4296 = vmatmul.mubr.bf16.gmra.mrb[0].mxu0 %v4163
      %v4297 = vpop.f32.mrb[0].mxu0
      %v4298 = vadd.f32 0.0, %v4297
      %v4299 = vpop.f32.mrb[0].mxu0
      %v4300 = vpop.f32.mrb[0].mxu0
      %v4301 = vadd.f32 0.0, %v4300
      %v4302 = vpop.f32.mrb[0].mxu0
      %4303 = vmatprep.mubr.bf16.mxu0 0
      %4304 = vmatmul.mubr.bf16.gmra.mrb[0].mxu0 %v4166
      %v4305 = vpop.f32.mrb[0].mxu0
      %v4306 = vadd.f32 0.0, %v4305
      %v4307 = vpop.f32.mrb[0].mxu0
      %v4308 = vpop.f32.mrb[0].mxu0
      %v4309 = vadd.f32 0.0, %v4308
      %v4310 = vpop.f32.mrb[0].mxu0
      %4311 = vmatprep.mubr.bf16.mxu0 0
      %4312 = vmatmul.mubr.bf16.gmra.mrb[0].mxu0 %v4169
      %v4313 = vpop.f32.mrb[0].mxu0
      %v4314 = vadd.f32 0.0, %v4313
      %v4315 = vpop.f32.mrb[0].mxu0
      %v4316 = vpop.f32.mrb[0].mxu0
      %v4317 = vadd.f32 0.0, %v4316
      %v4318 = vpop.f32.mrb[0].mxu0
      %4319 = vmatprep.mubr.bf16.mxu0 0
      %4320 = vmatmul.mubr.bf16.gmra.mrb[0].mxu0 %v4172
      %v4321 = vpop.f32.mrb[0].mxu0
      %v4322 = vadd.f32 0.0, %v4321
      %v4323 = vpop.f32.mrb[0].mxu0
      %v4324 = vpop.f32.mrb[0].mxu0
      %v4325 = vadd.f32 0.0, %v4324
      %v4326 = vpop.f32.mrb[0].mxu0
      %4327 = vmatprep.mubr.bf16.mxu0 0
      %4328 = vmatmul.mubr.bf16.gmra.mrb[0].mxu0 %v4175
      %v4329 = vpop.f32.mrb[0].mxu0
      %v4330 = vadd.f32 0.0, %v4329
      %v4331 = vpop.f32.mrb[0].mxu0
      %v4332 = vpop.f32.mrb[0].mxu0
      %v4333 = vadd.f32 0.0, %v4332
      %v4334 = vpop.f32.mrb[0].mxu0
      %4335 = vmatprep.mubr.bf16.mxu0 0
      %4336 = vmatmul.mubr.bf16.gmra.mrb[0].mxu0 %v4178
      %v4337 = vpop.f32.mrb[0].mxu0
      %v4338 = vadd.f32 0.0, %v4337
      %v4339 = vpop.f32.mrb[0].mxu0
      %v4340 = vpop.f32.mrb[0].mxu0
      %v4341 = vadd.f32 0.0, %v4340
      %v4342 = vpop.f32.mrb[0].mxu0
      %4343 = vdwg.mxu0
      %v4344 = vld [vmem:[%s8] sm:$0x1]
      %v4346 = vlaneseq
      %v4347 = vshrl.u32 %v4346, 7
      %v4348 = vsub.s32 0, %v4347
      %v4349 = vrot.slane %v4344, %v4348
      %v4351 = vmul.f32 %v4218, %v4349
      %v4352 = vmul.f32 %v4221, %v4349
      %v4353 = vmul.f32 %v4226, %v4349
      %v4354 = vmul.f32 %v4229, %v4349
      %v4355 = vmul.f32 %v4234, %v4349
      %v4356 = vmul.f32 %v4237, %v4349
      %v4357 = vmul.f32 %v4242, %v4349
      %v4358 = vmul.f32 %v4245, %v4349
      %v4359 = vmul.f32 %v4250, %v4349
      %v4360 = vmul.f32 %v4253, %v4349
      %v4361 = vmul.f32 %v4258, %v4349
      %v4362 = vmul.f32 %v4261, %v4349
      %v4363 = vmul.f32 %v4266, %v4349
      %v4364 = vmul.f32 %v4269, %v4349
      %v4365 = vmul.f32 %v4274, %v4349
      %v4366 = vmul.f32 %v4277, %v4349
      %v4367 = vmul.f32 %v4282, %v4349
      %v4368 = vmul.f32 %v4285, %v4349
      %v4369 = vmul.f32 %v4290, %v4349
      %v4370 = vmul.f32 %v4293, %v4349
      %v4371 = vmul.f32 %v4298, %v4349
      %v4372 = vmul.f32 %v4301, %v4349
      %v4373 = vmul.f32 %v4306, %v4349
      %v4374 = vmul.f32 %v4309, %v4349
      %v4375 = vmul.f32 %v4314, %v4349
      %v4376 = vmul.f32 %v4317, %v4349
      %v4377 = vmul.f32 %v4322, %v4349
      %v4378 = vmul.f32 %v4325, %v4349
      %v4379 = vmul.f32 %v4330, %v4349
      %v4380 = vmul.f32 %v4333, %v4349
      %v4381 = vmul.f32 %v4338, %v4349
      %v4382 = vmul.f32 %v4341, %v4349
      %v4383 = vld [vmem:[%s9] sm:$0x1]
      %v4385 = vlaneseq
      %v4386 = vshrl.u32 %v4385, 7
      %v4387 = vsub.s32 0, %v4386
      %v4388 = vrot.slane %v4383, %v4387
      %v4390 = vadd.f32 %v4351, %v4388
      %v4391 = vadd.f32 %v4352, %v4388
      %v4392 = vadd.f32 %v4353, %v4388
      %v4393 = vadd.f32 %v4354, %v4388
      %v4394 = vadd.f32 %v4355, %v4388
      %v4395 = vadd.f32 %v4356, %v4388
      %v4396 = vadd.f32 %v4357, %v4388
      %v4397 = vadd.f32 %v4358, %v4388
      %v4398 = vadd.f32 %v4359, %v4388
      %v4399 = vadd.f32 %v4360, %v4388
      %v4400 = vadd.f32 %v4361, %v4388
      %v4401 = vadd.f32 %v4362, %v4388
      %v4402 = vadd.f32 %v4363, %v4388
      %v4403 = vadd.f32 %v4364, %v4388
      %v4404 = vadd.f32 %v4365, %v4388
      %v4405 = vadd.f32 %v4366, %v4388
      %v4406 = vadd.f32 %v4367, %v4388
      %v4407 = vadd.f32 %v4368, %v4388
      %v4408 = vadd.f32 %v4369, %v4388
      %v4409 = vadd.f32 %v4370, %v4388
      %v4410 = vadd.f32 %v4371, %v4388
      %v4411 = vadd.f32 %v4372, %v4388
      %v4412 = vadd.f32 %v4373, %v4388
      %v4413 = vadd.f32 %v4374, %v4388
      %v4414 = vadd.f32 %v4375, %v4388
      %v4415 = vadd.f32 %v4376, %v4388
      %v4416 = vadd.f32 %v4377, %v4388
      %v4417 = vadd.f32 %v4378, %v4388
      %v4418 = vadd.f32 %v4379, %v4388
      %v4419 = vadd.f32 %v4380, %v4388
      %v4420 = vadd.f32 %v4381, %v4388
      %v4421 = vadd.f32 %v4382, %v4388
      %v4422 = vld [vmem:[%s10] sm:$0xf]
      %v4423 = vld [vmem:[%s10 + $0x4] sm:$0xf]
      %v4426 = vunpack.c.l.b16 %v4422
      %v4427 = vunpack.c.l.b16 %v4423
      %v4428 = vpack.c.b16 %v4427, %v4426
      %4430 = vmatprep.subr.bf16.mxu0 0
      %4431 = vmatpush1.bf16.msra.mxu0 %v4428
      %4432 = vmatprep.subr.bf16.mxu0 0
      %4433 = vmatpush1.bf16.msra.mxu0 0
      %4434 = vmatprep.subr.bf16.mxu0 0
      %4435 = vmatpush1.bf16.msra.mxu0 0
      %4436 = vmatprep.subr.bf16.mxu0 0
      %4437 = vmatpush1.bf16.msra.mxu0 0
      %4438 = vmatprep.subr.bf16.mxu0 0
      %4439 = vmatpush1.bf16.msra.mxu0 0
      %4440 = vmatprep.subr.bf16.mxu0 0
      %4441 = vmatpush1.bf16.msra.mxu0 0
      %4442 = vmatprep.subr.bf16.mxu0 0
      %4443 = vmatpush1.bf16.msra.mxu0 0
      %4444 = vmatprep.subr.bf16.mxu0 0
      %4445 = vmatpush1.bf16.msra.mxu0 0
      %4446 = vmatprep.subr.bf16.mxu0 0
      %4447 = vmatpush1.bf16.msra.mxu0 0
      %4448 = vmatprep.subr.bf16.mxu0 0
      %4449 = vmatpush1.bf16.msra.mxu0 0
      %4450 = vmatprep.subr.bf16.mxu0 0
      %4451 = vmatpush1.bf16.msra.mxu0 0
      %4452 = vmatprep.subr.bf16.mxu0 0
      %4453 = vmatpush1.bf16.msra.mxu0 0
      %4454 = vmatprep.subr.bf16.mxu0 0
      %4455 = vmatpush1.bf16.msra.mxu0 0
      %4456 = vmatprep.subr.bf16.mxu0 0
      %4457 = vmatpush1.bf16.msra.mxu0 0
      %4458 = vmatprep.subr.bf16.mxu0 0
      %4459 = vmatpush1.bf16.msra.mxu0 0
      %4460 = vmatprep.subr.bf16.mxu0 0
      %4461 = vmatpush1.bf16.msra.mxu0 0
      %4462 = vmatprep.mubr.bf16.mxu0 0
      %4463 = vmatmul.mubr.bf16.gmra.mrb[0].mxu0 %v564
      %v4464 = vpop.f32.mrb[0].mxu0
      %v4465 = vadd.f32 0.0, %v4464
      %v4466 = vpop.f32.mrb[0].mxu0
      %v4467 = vpop.f32.mrb[0].mxu0
      %v4468 = vadd.f32 0.0, %v4467
      %v4469 = vpop.f32.mrb[0].mxu0
      %4470 = vmatprep.mubr.bf16.mxu0 0
      %4471 = vmatmul.mubr.bf16.gmra.mrb[0].mxu0 %v567
      %v4472 = vpop.f32.mrb[0].mxu0
      %v4473 = vadd.f32 0.0, %v4472
      %v4474 = vpop.f32.mrb[0].mxu0
      %v4475 = vpop.f32.mrb[0].mxu0
      %v4476 = vadd.f32 0.0, %v4475
      %v4477 = vpop.f32.mrb[0].mxu0
      %4478 = vmatprep.mubr.bf16.mxu0 0
      %4479 = vmatmul.mubr.bf16.gmra.mrb[0].mxu0 %v570
      %v4480 = vpop.f32.mrb[0].mxu0
      %v4481 = vadd.f32 0.0, %v4480
      %v4482 = vpop.f32.mrb[0].mxu0
      %v4483 = vpop.f32.mrb[0].mxu0
      %v4484 = vadd.f32 0.0, %v4483
      %v4485 = vpop.f32.mrb[0].mxu0
      %4486 = vmatprep.mubr.bf16.mxu0 0
      %4487 = vmatmul.mubr.bf16.gmra.mrb[0].mxu0 %v573
      %v4488 = vpop.f32.mrb[0].mxu0
      %v4489 = vadd.f32 0.0, %v4488
      %v4490 = vpop.f32.mrb[0].mxu0
      %v4491 = vpop.f32.mrb[0].mxu0
      %v4492 = vadd.f32 0.0, %v4491
      %v4493 = vpop.f32.mrb[0].mxu0
      %4494 = vmatprep.mubr.bf16.mxu0 0
      %4495 = vmatmul.mubr.bf16.gmra.mrb[0].mxu0 %v576
      %v4496 = vpop.f32.mrb[0].mxu0
      %v4497 = vadd.f32 0.0, %v4496
      %v4498 = vpop.f32.mrb[0].mxu0
      %v4499 = vpop.f32.mrb[0].mxu0
      %v4500 = vadd.f32 0.0, %v4499
      %v4501 = vpop.f32.mrb[0].mxu0
      %4502 = vmatprep.mubr.bf16.mxu0 0
      %4503 = vmatmul.mubr.bf16.gmra.mrb[0].mxu0 %v579
      %v4504 = vpop.f32.mrb[0].mxu0
      %v4505 = vadd.f32 0.0, %v4504
      %v4506 = vpop.f32.mrb[0].mxu0
      %v4507 = vpop.f32.mrb[0].mxu0
      %v4508 = vadd.f32 0.0, %v4507
      %v4509 = vpop.f32.mrb[0].mxu0
      %4510 = vmatprep.mubr.bf16.mxu0 0
      %4511 = vmatmul.mubr.bf16.gmra.mrb[0].mxu0 %v582
      %v4512 = vpop.f32.mrb[0].mxu0
      %v4513 = vadd.f32 0.0, %v4512
      %v4514 = vpop.f32.mrb[0].mxu0
      %v4515 = vpop.f32.mrb[0].mxu0
      %v4516 = vadd.f32 0.0, %v4515
      %v4517 = vpop.f32.mrb[0].mxu0
      %4518 = vmatprep.mubr.bf16.mxu0 0
      %4519 = vmatmul.mubr.bf16.gmra.mrb[0].mxu0 %v585
      %v4520 = vpop.f32.mrb[0].mxu0
      %v4521 = vadd.f32 0.0, %v4520
      %v4522 = vpop.f32.mrb[0].mxu0
      %v4523 = vpop.f32.mrb[0].mxu0
      %v4524 = vadd.f32 0.0, %v4523
      %v4525 = vpop.f32.mrb[0].mxu0
      %4526 = vmatprep.mubr.bf16.mxu0 0
      %4527 = vmatmul.mubr.bf16.gmra.mrb[0].mxu0 %v588
      %v4528 = vpop.f32.mrb[0].mxu0
      %v4529 = vadd.f32 0.0, %v4528
      %v4530 = vpop.f32.mrb[0].mxu0
      %v4531 = vpop.f32.mrb[0].mxu0
      %v4532 = vadd.f32 0.0, %v4531
      %v4533 = vpop.f32.mrb[0].mxu0
      %4534 = vmatprep.mubr.bf16.mxu0 0
      %4535 = vmatmul.mubr.bf16.gmra.mrb[0].mxu0 %v591
      %v4536 = vpop.f32.mrb[0].mxu0
      %v4537 = vadd.f32 0.0, %v4536
      %v4538 = vpop.f32.mrb[0].mxu0
      %v4539 = vpop.f32.mrb[0].mxu0
      %v4540 = vadd.f32 0.0, %v4539
      %v4541 = vpop.f32.mrb[0].mxu0
      %4542 = vmatprep.mubr.bf16.mxu0 0
      %4543 = vmatmul.mubr.bf16.gmra.mrb[0].mxu0 %v594
      %v4544 = vpop.f32.mrb[0].mxu0
      %v4545 = vadd.f32 0.0, %v4544
      %v4546 = vpop.f32.mrb[0].mxu0
      %v4547 = vpop.f32.mrb[0].mxu0
      %v4548 = vadd.f32 0.0, %v4547
      %v4549 = vpop.f32.mrb[0].mxu0
      %4550 = vmatprep.mubr.bf16.mxu0 0
      %4551 = vmatmul.mubr.bf16.gmra.mrb[0].mxu0 %v597
      %v4552 = vpop.f32.mrb[0].mxu0
      %v4553 = vadd.f32 0.0, %v4552
      %v4554 = vpop.f32.mrb[0].mxu0
      %v4555 = vpop.f32.mrb[0].mxu0
      %v4556 = vadd.f32 0.0, %v4555
      %v4557 = vpop.f32.mrb[0].mxu0
      %4558 = vmatprep.mubr.bf16.mxu0 0
      %4559 = vmatmul.mubr.bf16.gmra.mrb[0].mxu0 %v600
      %v4560 = vpop.f32.mrb[0].mxu0
      %v4561 = vadd.f32 0.0, %v4560
      %v4562 = vpop.f32.mrb[0].mxu0
      %v4563 = vpop.f32.mrb[0].mxu0
      %v4564 = vadd.f32 0.0, %v4563
      %v4565 = vpop.f32.mrb[0].mxu0
      %4566 = vmatprep.mubr.bf16.mxu0 0
      %4567 = vmatmul.mubr.bf16.gmra.mrb[0].mxu0 %v603
      %v4568 = vpop.f32.mrb[0].mxu0
      %v4569 = vadd.f32 0.0, %v4568
      %v4570 = vpop.f32.mrb[0].mxu0
      %v4571 = vpop.f32.mrb[0].mxu0
      %v4572 = vadd.f32 0.0, %v4571
      %v4573 = vpop.f32.mrb[0].mxu0
      %4574 = vmatprep.mubr.bf16.mxu0 0
      %4575 = vmatmul.mubr.bf16.gmra.mrb[0].mxu0 %v606
      %v4576 = vpop.f32.mrb[0].mxu0
      %v4577 = vadd.f32 0.0, %v4576
      %v4578 = vpop.f32.mrb[0].mxu0
      %v4579 = vpop.f32.mrb[0].mxu0
      %v4580 = vadd.f32 0.0, %v4579
      %v4581 = vpop.f32.mrb[0].mxu0
      %4582 = vmatprep.mubr.bf16.mxu0 0
      %4583 = vmatmul.mubr.bf16.gmra.mrb[0].mxu0 %v609
      %v4584 = vpop.f32.mrb[0].mxu0
      %v4585 = vadd.f32 0.0, %v4584
      %v4586 = vpop.f32.mrb[0].mxu0
      %v4587 = vpop.f32.mrb[0].mxu0
      %v4588 = vadd.f32 0.0, %v4587
      %v4589 = vpop.f32.mrb[0].mxu0
      %4590 = vdwg.mxu0
      %v4591 = vld [vmem:[%s11] sm:$0x1]
      %v4593 = vlaneseq
      %v4594 = vshrl.u32 %v4593, 7
      %v4595 = vsub.s32 0, %v4594
      %v4596 = vrot.slane %v4591, %v4595
      %v4598 = vmul.f32 %v4465, %v4596
      %v4599 = vmul.f32 %v4468, %v4596
      %v4600 = vmul.f32 %v4473, %v4596
      %v4601 = vmul.f32 %v4476, %v4596
      %v4602 = vmul.f32 %v4481, %v4596
      %v4603 = vmul.f32 %v4484, %v4596
      %v4604 = vmul.f32 %v4489, %v4596
      %v4605 = vmul.f32 %v4492, %v4596
      %v4606 = vmul.f32 %v4497, %v4596
      %v4607 = vmul.f32 %v4500, %v4596
      %v4608 = vmul.f32 %v4505, %v4596
      %v4609 = vmul.f32 %v4508, %v4596
      %v4610 = vmul.f32 %v4513, %v4596
      %v4611 = vmul.f32 %v4516, %v4596
      %v4612 = vmul.f32 %v4521, %v4596
      %v4613 = vmul.f32 %v4524, %v4596
      %v4614 = vmul.f32 %v4529, %v4596
      %v4615 = vmul.f32 %v4532, %v4596
      %v4616 = vmul.f32 %v4537, %v4596
      %v4617 = vmul.f32 %v4540, %v4596
      %v4618 = vmul.f32 %v4545, %v4596
      %v4619 = vmul.f32 %v4548, %v4596
      %v4620 = vmul.f32 %v4553, %v4596
      %v4621 = vmul.f32 %v4556, %v4596
      %v4622 = vmul.f32 %v4561, %v4596
      %v4623 = vmul.f32 %v4564, %v4596
      %v4624 = vmul.f32 %v4569, %v4596
      %v4625 = vmul.f32 %v4572, %v4596
      %v4626 = vmul.f32 %v4577, %v4596
      %v4627 = vmul.f32 %v4580, %v4596
      %v4628 = vmul.f32 %v4585, %v4596
      %v4629 = vmul.f32 %v4588, %v4596
      %v4630 = vld [vmem:[%s12] sm:$0x1]
      %v4632 = vlaneseq
      %v4633 = vshrl.u32 %v4632, 7
      %v4634 = vsub.s32 0, %v4633
      %v4635 = vrot.slane %v4630, %v4634
      %v4637 = vadd.f32 %v4598, %v4635
      %v4638 = vadd.f32 %v4599, %v4635
      %v4639 = vadd.f32 %v4600, %v4635
      %v4640 = vadd.f32 %v4601, %v4635
      %v4641 = vadd.f32 %v4602, %v4635
      %v4642 = vadd.f32 %v4603, %v4635
      %v4643 = vadd.f32 %v4604, %v4635
      %v4644 = vadd.f32 %v4605, %v4635
      %v4645 = vadd.f32 %v4606, %v4635
      %v4646 = vadd.f32 %v4607, %v4635
      %v4647 = vadd.f32 %v4608, %v4635
      %v4648 = vadd.f32 %v4609, %v4635
      %v4649 = vadd.f32 %v4610, %v4635
      %v4650 = vadd.f32 %v4611, %v4635
      %v4651 = vadd.f32 %v4612, %v4635
      %v4652 = vadd.f32 %v4613, %v4635
      %v4653 = vadd.f32 %v4614, %v4635
      %v4654 = vadd.f32 %v4615, %v4635
      %v4655 = vadd.f32 %v4616, %v4635
      %v4656 = vadd.f32 %v4617, %v4635
      %v4657 = vadd.f32 %v4618, %v4635
      %v4658 = vadd.f32 %v4619, %v4635
      %v4659 = vadd.f32 %v4620, %v4635
      %v4660 = vadd.f32 %v4621, %v4635
      %v4661 = vadd.f32 %v4622, %v4635
      %v4662 = vadd.f32 %v4623, %v4635
      %v4663 = vadd.f32 %v4624, %v4635
      %v4664 = vadd.f32 %v4625, %v4635
      %v4665 = vadd.f32 %v4626, %v4635
      %v4666 = vadd.f32 %v4627, %v4635
      %v4667 = vadd.f32 %v4628, %v4635
      %v4668 = vadd.f32 %v4629, %v4635
      %v4669 = vadd.f32 %v4390, %v4637
      %v4670 = vadd.f32 %v4391, %v4638
      %v4671 = vadd.f32 %v4392, %v4639
      %v4672 = vadd.f32 %v4393, %v4640
      %v4673 = vadd.f32 %v4394, %v4641
      %v4674 = vadd.f32 %v4395, %v4642
      %v4675 = vadd.f32 %v4396, %v4643
      %v4676 = vadd.f32 %v4397, %v4644
      %v4677 = vadd.f32 %v4398, %v4645
      %v4678 = vadd.f32 %v4399, %v4646
      %v4679 = vadd.f32 %v4400, %v4647
      %v4680 = vadd.f32 %v4401, %v4648
      %v4681 = vadd.f32 %v4402, %v4649
      %v4682 = vadd.f32 %v4403, %v4650
      %v4683 = vadd.f32 %v4404, %v4651
      %v4684 = vadd.f32 %v4405, %v4652
      %v4685 = vadd.f32 %v4406, %v4653
      %v4686 = vadd.f32 %v4407, %v4654
      %v4687 = vadd.f32 %v4408, %v4655
      %v4688 = vadd.f32 %v4409, %v4656
      %v4689 = vadd.f32 %v4410, %v4657
      %v4690 = vadd.f32 %v4411, %v4658
      %v4691 = vadd.f32 %v4412, %v4659
      %v4692 = vadd.f32 %v4413, %v4660
      %v4693 = vadd.f32 %v4414, %v4661
      %v4694 = vadd.f32 %v4415, %v4662
      %v4695 = vadd.f32 %v4416, %v4663
      %v4696 = vadd.f32 %v4417, %v4664
      %v4697 = vadd.f32 %v4418, %v4665
      %v4698 = vadd.f32 %v4419, %v4666
      %v4699 = vadd.f32 %v4420, %v4667
      %v4700 = vadd.f32 %v4421, %v4668
      %v4701 = vmax.f32 %v4669, 0.0
      %v4702 = vmax.f32 %v4670, 0.0
      %v4703 = vmax.f32 %v4671, 0.0
      %v4704 = vmax.f32 %v4672, 0.0
      %v4705 = vmax.f32 %v4673, 0.0
      %v4706 = vmax.f32 %v4674, 0.0
      %v4707 = vmax.f32 %v4675, 0.0
      %v4708 = vmax.f32 %v4676, 0.0
      %v4709 = vmax.f32 %v4677, 0.0
      %v4710 = vmax.f32 %v4678, 0.0
      %v4711 = vmax.f32 %v4679, 0.0
      %v4712 = vmax.f32 %v4680, 0.0
      %v4713 = vmax.f32 %v4681, 0.0
      %v4714 = vmax.f32 %v4682, 0.0
      %v4715 = vmax.f32 %v4683, 0.0
      %v4716 = vmax.f32 %v4684, 0.0
      %v4717 = vmax.f32 %v4685, 0.0
      %v4718 = vmax.f32 %v4686, 0.0
      %v4719 = vmax.f32 %v4687, 0.0
      %v4720 = vmax.f32 %v4688, 0.0
      %v4721 = vmax.f32 %v4689, 0.0
      %v4722 = vmax.f32 %v4690, 0.0
      %v4723 = vmax.f32 %v4691, 0.0
      %v4724 = vmax.f32 %v4692, 0.0
      %v4725 = vmax.f32 %v4693, 0.0
      %v4726 = vmax.f32 %v4694, 0.0
      %v4727 = vmax.f32 %v4695, 0.0
      %v4728 = vmax.f32 %v4696, 0.0
      %v4729 = vmax.f32 %v4697, 0.0
      %v4730 = vmax.f32 %v4698, 0.0
      %v4731 = vmax.f32 %v4699, 0.0
      %v4732 = vmax.f32 %v4700, 0.0
      %v4733 = vpack.c.bf16 %v4702, %v4701
      %v4734 = vpack.c.bf16 %v4704, %v4703
      %v4735 = vpack.c.bf16 %v4706, %v4705
      %v4736 = vpack.c.bf16 %v4708, %v4707
      %v4737 = vpack.c.bf16 %v4710, %v4709
      %v4738 = vpack.c.bf16 %v4712, %v4711
      %v4739 = vpack.c.bf16 %v4714, %v4713
      %v4740 = vpack.c.bf16 %v4716, %v4715
      %v4741 = vpack.c.bf16 %v4718, %v4717
      %v4742 = vpack.c.bf16 %v4720, %v4719
      %v4743 = vpack.c.bf16 %v4722, %v4721
      %v4744 = vpack.c.bf16 %v4724, %v4723
      %v4745 = vpack.c.bf16 %v4726, %v4725
      %v4746 = vpack.c.bf16 %v4728, %v4727
      %v4747 = vpack.c.bf16 %v4730, %v4729
      %v4748 = vpack.c.bf16 %v4732, %v4731
      %v4765 = vunpack.c.l.b16 %v4733
      %v4766 = vunpack.c.h.b16 %v4733
      %v4767 = vunpack.c.l.b16 %v4734
      %v4768 = vunpack.c.h.b16 %v4734
      %v4769 = vunpack.c.l.b16 %v4735
      %v4770 = vunpack.c.h.b16 %v4735
      %v4771 = vunpack.c.l.b16 %v4736
      %v4772 = vunpack.c.h.b16 %v4736
      %v4773 = vunpack.c.l.b16 %v4737
      %v4774 = vunpack.c.h.b16 %v4737
      %v4775 = vunpack.c.l.b16 %v4738
      %v4776 = vunpack.c.h.b16 %v4738
      %v4777 = vunpack.c.l.b16 %v4739
      %v4778 = vunpack.c.h.b16 %v4739
      %v4779 = vunpack.c.l.b16 %v4740
      %v4780 = vunpack.c.h.b16 %v4740
      %v4781 = vunpack.c.l.b16 %v4741
      %v4782 = vunpack.c.h.b16 %v4741
      %v4783 = vunpack.c.l.b16 %v4742
      %v4784 = vunpack.c.h.b16 %v4742
      %v4785 = vunpack.c.l.b16 %v4743
      %v4786 = vunpack.c.h.b16 %v4743
      %v4787 = vunpack.c.l.b16 %v4744
      %v4788 = vunpack.c.h.b16 %v4744
      %v4789 = vunpack.c.l.b16 %v4745
      %v4790 = vunpack.c.h.b16 %v4745
      %v4791 = vunpack.c.l.b16 %v4746
      %v4792 = vunpack.c.h.b16 %v4746
      %v4793 = vunpack.c.l.b16 %v4747
      %v4794 = vunpack.c.h.b16 %v4747
      %v4795 = vunpack.c.l.b16 %v4748
      %v4796 = vunpack.c.h.b16 %v4748
      %v4797 = vpack.c.b16 %v4765, %v4765
      %v4798 = vpack.c.b16 %v4766, %v4766
      %v4799 = vpack.c.b16 %v4767, %v4767
      %v4800 = vpack.c.b16 %v4768, %v4768
      %v4801 = vpack.c.b16 %v4769, %v4769
      %v4802 = vpack.c.b16 %v4770, %v4770
      %v4803 = vpack.c.b16 %v4771, %v4771
      %v4804 = vpack.c.b16 %v4772, %v4772
      %v4805 = vpack.c.b16 %v4773, %v4773
      %v4806 = vpack.c.b16 %v4774, %v4774
      %v4807 = vpack.c.b16 %v4775, %v4775
      %v4808 = vpack.c.b16 %v4776, %v4776
      %v4809 = vpack.c.b16 %v4777, %v4777
      %v4810 = vpack.c.b16 %v4778, %v4778
      %v4811 = vpack.c.b16 %v4779, %v4779
      %v4812 = vpack.c.b16 %v4780, %v4780
      %v4813 = vpack.c.b16 %v4781, %v4781
      %v4814 = vpack.c.b16 %v4782, %v4782
      %v4815 = vpack.c.b16 %v4783, %v4783
      %v4816 = vpack.c.b16 %v4784, %v4784
      %v4817 = vpack.c.b16 %v4785, %v4785
      %v4818 = vpack.c.b16 %v4786, %v4786
      %v4819 = vpack.c.b16 %v4787, %v4787
      %v4820 = vpack.c.b16 %v4788, %v4788
      %v4821 = vpack.c.b16 %v4789, %v4789
      %v4822 = vpack.c.b16 %v4790, %v4790
      %v4823 = vpack.c.b16 %v4791, %v4791
      %v4824 = vpack.c.b16 %v4792, %v4792
      %v4825 = vpack.c.b16 %v4793, %v4793
      %v4826 = vpack.c.b16 %v4794, %v4794
      %v4827 = vpack.c.b16 %v4795, %v4795
      %v4828 = vpack.c.b16 %v4796, %v4796
      %vm4861 = vcmask 257024
      %4862 = vst.msk [vmem:[%s440] sm:$0xf] %vm4861, %v4797
      %4863 = vst.msk [vmem:[%s440 + $0x4] sm:$0xf] %vm4861, %v4798
      %4864 = vst.msk [vmem:[%s440 + $0x8] sm:$0xf] %vm4861, %v4799
      %4865 = vst.msk [vmem:[%s440 + $0xc] sm:$0xf] %vm4861, %v4800
      %4866 = vst.msk [vmem:[%s440 + $0x10] sm:$0xf] %vm4861, %v4801
      %4867 = vst.msk [vmem:[%s440 + $0x14] sm:$0xf] %vm4861, %v4802
      %4868 = vst.msk [vmem:[%s440 + $0x18] sm:$0xf] %vm4861, %v4803
      %4869 = vst.msk [vmem:[%s440 + $0x1c] sm:$0xf] %vm4861, %v4804
      %4870 = vst.msk [vmem:[%s440 + $0x20] sm:$0xf] %vm4861, %v4805
      %4871 = vst.msk [vmem:[%s440 + $0x24] sm:$0xf] %vm4861, %v4806
      %4872 = vst.msk [vmem:[%s440 + $0x28] sm:$0xf] %vm4861, %v4807
      %4873 = vst.msk [vmem:[%s440 + $0x2c] sm:$0xf] %vm4861, %v4808
      %4874 = vst.msk [vmem:[%s440 + $0x30] sm:$0xf] %vm4861, %v4809
      %4875 = vst.msk [vmem:[%s440 + $0x34] sm:$0xf] %vm4861, %v4810
      %4876 = vst.msk [vmem:[%s440 + $0x38] sm:$0xf] %vm4861, %v4811
      %4877 = vst.msk [vmem:[%s440 + $0x3c] sm:$0xf] %vm4861, %v4812
      %4878 = vst.msk [vmem:[%s440 + $0x40] sm:$0xf] %vm4861, %v4813
      %4879 = vst.msk [vmem:[%s440 + $0x44] sm:$0xf] %vm4861, %v4814
      %4880 = vst.msk [vmem:[%s440 + $0x48] sm:$0xf] %vm4861, %v4815
      %4881 = vst.msk [vmem:[%s440 + $0x4c] sm:$0xf] %vm4861, %v4816
      %4882 = vst.msk [vmem:[%s440 + $0x50] sm:$0xf] %vm4861, %v4817
      %4883 = vst.msk [vmem:[%s440 + $0x54] sm:$0xf] %vm4861, %v4818
      %4884 = vst.msk [vmem:[%s440 + $0x58] sm:$0xf] %vm4861, %v4819
      %4885 = vst.msk [vmem:[%s440 + $0x5c] sm:$0xf] %vm4861, %v4820
      %4886 = vst.msk [vmem:[%s440 + $0x60] sm:$0xf] %vm4861, %v4821
      %4887 = vst.msk [vmem:[%s440 + $0x64] sm:$0xf] %vm4861, %v4822
      %4888 = vst.msk [vmem:[%s440 + $0x68] sm:$0xf] %vm4861, %v4823
      %4889 = vst.msk [vmem:[%s440 + $0x6c] sm:$0xf] %vm4861, %v4824
      %4890 = vst.msk [vmem:[%s440 + $0x70] sm:$0xf] %vm4861, %v4825
      %4891 = vst.msk [vmem:[%s440 + $0x74] sm:$0xf] %vm4861, %v4826
      %4892 = vst.msk [vmem:[%s440 + $0x78] sm:$0xf] %vm4861, %v4827
      %4893 = vst.msk [vmem:[%s440 + $0x7c] sm:$0xf] %vm4861, %v4828
      %p4894 = scmp.lt.s32.totalorder %s24, 1
      %s4895 = scalar_select %p4894, %s24, 1
      %s4896 = smul.addr %s4895, 32
      %s4897 = smul.addr %s4896, 4
      %s4898 = scalar_lea.vmem %s13, %s4897
      // Predicated region
      $region73: #{bottleneck_forward.1} parent=71 // pred_check
        %p4899 = pneg %p320
      $region74: #{bottleneck_forward.1} parent=71 // pred_check_branch
        %4901 = sbr.rel (%p4899) target = $region76
      $region75: #{bottleneck_forward.1} parent=71 // pred_region
        _
      $region76: #{bottleneck_forward.1} parent=71 // pred_fallthru
        _
    $region72: #{bottleneck_forward.1} parent=5 // pred_fallthru
      _
    %p4902 = scmp.le.s32.totalorder 2, %s19
    // Predicated region
    $region77: #{bottleneck_forward.1} parent=5 // pred_check
      %p4903 = pneg %p4902
    $region78: #{bottleneck_forward.1} parent=5 // pred_check_branch
      %4905 = sbr.rel (%p4903) target = $region80
    $region79: #{bottleneck_forward.1} parent=5 // pred_region
      %s4906 = ssub.s32 %s19, 2
      // Predicated region
      $region81: #{bottleneck_forward.1} parent=79 // pred_check
        %p4907 = pneg %p326
      $region82: #{bottleneck_forward.1} parent=79 // pred_check_branch
        %4909 = sbr.rel (%p4907) target = $region84
      $region83: #{bottleneck_forward.1} parent=79 // pred_region
        %p4910 = scmp.lt.s32.totalorder %s25, 1
        %s4911 = scalar_select %p4910, %s25, 1
        %s4912 = smul.addr %s4911, 32
        %s4913 = smul.addr %s4912, 4
        %s4914 = scalar_lea.vmem %s13, %s4913
      $region84: #{bottleneck_forward.1} parent=79 // pred_fallthru
        _
    $region80: #{bottleneck_forward.1} parent=5 // pred_fallthru
      _
  $region6: #{bottleneck_forward.1} parent=0 // loop_footer
    %s23 = sadd.s32 1, %s19
  $region7: #{bottleneck_forward.1} parent=0 // loop_footer_branch
    %18 = sbr.rel target = $region3
  $region8: #{bottleneck_forward.1} parent=0 // loop_exit
    _

</llo_original>
